<compile_context>
chip_gen: v5e
topology: v5e:2x2
jax: 0.10.0
libtpu: 0.0.40
codegen_flags: <defaults>
</compile_context>

<pallas_src>
import math

import jax
import jax.numpy as jnp
from jax import lax
from jax.experimental import pallas as pl
from jax.experimental.pallas import tpu as pltpu

# ---------------- model hyper-parameters (small, consistent with the module) ----
EMBED_DIM = 32
NUM_HEADS = 4
HEAD_DIM = EMBED_DIM // NUM_HEADS
FFN_DIM = 64
NUM_LAYERS = 2
PROJ_DIM = 16
LN_EPS = 1e-5

SLAB_WIDTH = 128
ROW_ALIGN = 8


# ---------------- shared math helpers --------------------------------------------
def _gelu_tanh(x):
    # tanh approximation of GELU: the tanh goes to the (otherwise idle) EUP.
    c = 0.7978845608028654  # sqrt(2/pi)
    return 0.5 * x * (1.0 + jnp.tanh(c * (x + 0.044715 * x * x * x)))


def _pos_encoding(seq_len, d_model):
    position = jnp.arange(seq_len, dtype=jnp.float32)[:, None]
    div_term = jnp.exp(jnp.arange(0, d_model, 2, dtype=jnp.float32)
                       * (-math.log(10000.0) / d_model))
    pe = jnp.zeros((seq_len, d_model), jnp.float32)
    pe = pe.at[:, 0::2].set(jnp.sin(position * div_term))
    pe = pe.at[:, 1::2].set(jnp.cos(position * div_term))
    return pe


# ---------------- host-side constants for the head-stacked attention -------------
def _head_mask_stack(nq):
    """[H*nq, E] : row block h keeps only head h's feature lanes."""
    row = jnp.arange(NUM_HEADS * nq)[:, None]
    col = jnp.arange(EMBED_DIM)[None, :]
    return ((col // HEAD_DIM) == (row // nq)).astype(jnp.float32)


def _rep_matrix(nq):
    """[H*nq, nq] : replicates the query rows once per head (rep @ q)."""
    row = jnp.arange(NUM_HEADS * nq)[:, None] % nq
    col = jnp.arange(nq)[None, :]
    return (row == col).astype(jnp.float32)


def _cross_batch_mask(sq, sk, batch):
    """Additive mask [H*B*sq, B*sk]: 0 for same-batch (q,k) pairs, -1e30 otherwise."""
    nq, nk = batch * sq, batch * sk
    qb = (jnp.arange(NUM_HEADS * nq) % nq) // sq
    kb = jnp.arange(nk) // sk
    same = qb[:, None] == kb[None, :]
    return jnp.where(same, 0.0, -1e30).astype(jnp.float32)


def _pool_matrix(batch, s1, s2):
    """[2B, B*(s1+s2)] mean-pool matrix over the combined activation slab."""
    n1 = batch * s1
    n = n1 + batch * s2
    col = jnp.arange(n)
    m = jnp.zeros((2 * batch, n), jnp.float32)
    for b in range(batch):
        m = m.at[b].set(jnp.where((col >= b * s1) & (col < (b + 1) * s1),
                                  1.0 / s1, 0.0))
        m = m.at[batch + b].set(jnp.where((col >= n1 + b * s2) & (col < n1 + (b + 1) * s2),
                                          1.0 / s2, 0.0))
    return m


def build_constants(batch, s1, s2):
    n1, n2 = batch * s1, batch * s2
    pe = jnp.concatenate([jnp.tile(_pos_encoding(s1, EMBED_DIM), (batch, 1)),
                          jnp.tile(_pos_encoding(s2, EMBED_DIM), (batch, 1))], axis=0)
    rep1, rep2 = _rep_matrix(n1), _rep_matrix(n2)
    return {
        "pe": pe,
        "hm1": _head_mask_stack(n1), "hm2": _head_mask_stack(n2),
        "rep1": rep1, "unstk1": rep1.T,
        "rep2": rep2, "unstk2": rep2.T,
        "mask1": _cross_batch_mask(s1, s2, batch),
        "mask2": _cross_batch_mask(s2, s1, batch),
        "pool": _pool_matrix(batch, s1, s2),
    }


# ---------------- parameters (torch-equivalent, random init) ---------------------
def init_params(key):
    keys = iter(jax.random.split(key, 40))

    def w(shape, scale=0.02):
        return jax.random.normal(next(keys), shape, jnp.float32) * scale

    p = {}
    for l in range(NUM_LAYERS):
        pre = f"l{l}_"
        for m in (1, 2):
            p[pre + f"attn_ln{m}_g"] = jnp.ones((EMBED_DIM,), jnp.float32)
            p[pre + f"attn_ln{m}_b"] = jnp.zeros((EMBED_DIM,), jnp.float32)
            # merged (Wq|Wk|Wv) per modality
            p[pre + f"qkv{m}_w"] = w((EMBED_DIM, 3 * EMBED_DIM))
            p[pre + f"qkv{m}_b"] = w((3 * EMBED_DIM,), 0.01)
            p[pre + f"out{m}_w"] = w((EMBED_DIM, EMBED_DIM))
            p[pre + f"out{m}_b"] = w((EMBED_DIM,), 0.01)
            p[pre + f"ffn_ln{m}_g"] = jnp.ones((EMBED_DIM,), jnp.float32)
            p[pre + f"ffn_ln{m}_b"] = jnp.zeros((EMBED_DIM,), jnp.float32)
            p[pre + f"ffn{m}_win"] = w((EMBED_DIM, FFN_DIM))
            p[pre + f"ffn{m}_bin"] = w((FFN_DIM,), 0.01)
            p[pre + f"ffn{m}_lng"] = jnp.ones((FFN_DIM,), jnp.float32)
            p[pre + f"ffn{m}_lnb"] = jnp.zeros((FFN_DIM,), jnp.float32)
            p[pre + f"ffn{m}_wout"] = w((FFN_DIM, EMBED_DIM))
            p[pre + f"ffn{m}_bout"] = w((EMBED_DIM,), 0.01)
    for m in (1, 2):
        p[f"final_ln{m}_g"] = jnp.ones((EMBED_DIM,), jnp.float32)
        p[f"final_ln{m}_b"] = jnp.zeros((EMBED_DIM,), jnp.float32)
        p[f"proj{m}_w"] = w((EMBED_DIM, PROJ_DIM))
        p[f"proj{m}_b"] = w((PROJ_DIM,), 0.01)
    return p


# ---------------- pack everything into ONE [R, 128] f32 slab ---------------------
def pack_slab(named):
    """named: ordered dict name -> array (1-D or 2-D, last dim <= 128).
    Returns (slab [R, 128] f32, offsets name -> (row_off, nrows, ncols))."""
    offsets, blocks, cur = {}, [], 0
    for name, arr in named.items():
        arr = jnp.asarray(arr, jnp.float32)
        if arr.ndim == 1:
            arr = arr[None, :]
        r, c = arr.shape
        assert c <= SLAB_WIDTH, name
        r_pad = -(-r // ROW_ALIGN) * ROW_ALIGN
        blk = jnp.zeros((r_pad, SLAB_WIDTH), jnp.float32).at[:r, :c].set(arr)
        blocks.append(blk)
        offsets[name] = (cur, r, c)
        cur += r_pad
    return jnp.concatenate(blocks, axis=0), offsets


# ---------------- fused whole-forward kernel -------------------------------------
def make_fused_kernel(off, batch, s1, s2):
    n1, n2 = batch * s1, batch * s2
    scale = HEAD_DIM ** -0.5

    def kernel(x_ref, w_ref, o_ref, xc_ref, hc_ref):
        def P(name):
            r, nr, nc = off[name]
            return w_ref[pl.ds(r, nr), pl.ds(0, nc)]

        def ln_pair(x, g1, b1, g2, b2):
            """One fused LayerNorm over the row-concatenated slab; per-modality affine."""
            mu = jnp.mean(x, axis=-1, keepdims=True)
            d = x - mu
            var = jnp.mean(d * d, axis=-1, keepdims=True)
            xh = d * lax.rsqrt(var + LN_EPS)
            return xh[:n1] * g1 + b1, xh[n1:] * g2 + b2

        def cross_attn(q, k, v, rep, unstk, hm, amask, w_o, b_o):
            """Head-stacked multi-head cross attention: one matmul each for
            scores / softmax@V covering all (batch, head) pairs."""
            q_st = jnp.dot(rep, q, preferred_element_type=jnp.float32) * hm     # [H*Nq, E]
            s = lax.dot_general(q_st, k, (((1,), (1,)), ((), ())),
                                preferred_element_type=jnp.float32)             # [H*Nq, Nk]
            s = s * scale + amask                                                # additive batch mask
            s = s - jnp.max(s, axis=-1, keepdims=True)
            p = jnp.exp(s)
            p = p * pl.reciprocal(jnp.sum(p, axis=-1, keepdims=True), approx=True)
            o_st = jnp.dot(p, v, preferred_element_type=jnp.float32) * hm        # [H*Nq, E]
            att = jnp.dot(unstk, o_st, preferred_element_type=jnp.float32)       # [Nq, E]
            return jnp.dot(att, w_o, preferred_element_type=jnp.float32) + b_o

        # ---- positional encoding add (dropout = identity in eval) ----
        xc_ref[...] = x_ref[...] + P("pe")

        # constants loaded once, reused across layers / directions
        hm1, hm2 = P("hm1"), P("hm2")
        rep1, unstk1 = P("rep1"), P("unstk1")
        rep2, unstk2 = P("rep2"), P("unstk2")
        amask1, amask2 = P("mask1"), P("mask2")

        for l in range(NUM_LAYERS):
            pre = f"l{l}_"

            # ---- attention block (pre-LN, residual) ----
            na, nb = ln_pair(xc_ref[...],
                             P(pre + "attn_ln1_g"), P(pre + "attn_ln1_b"),
                             P(pre + "attn_ln2_g"), P(pre + "attn_ln2_b"))
            qkv1 = jnp.dot(na, P(pre + "qkv1_w"),
                           preferred_element_type=jnp.float32) + P(pre + "qkv1_b")
            qkv2 = jnp.dot(nb, P(pre + "qkv2_w"),
                           preferred_element_type=jnp.float32) + P(pre + "qkv2_b")
            q1, k1, v1 = (qkv1[:, :EMBED_DIM], qkv1[:, EMBED_DIM:2 * EMBED_DIM],
                          qkv1[:, 2 * EMBED_DIM:])
            q2, k2, v2 = (qkv2[:, :EMBED_DIM], qkv2[:, EMBED_DIM:2 * EMBED_DIM],
                          qkv2[:, 2 * EMBED_DIM:])
            a1 = cross_attn(q1, k2, v2, rep1, unstk1, hm1, amask1,
                            P(pre + "out1_w"), P(pre + "out1_b"))
            a2 = cross_attn(q2, k1, v1, rep2, unstk2, hm2, amask2,
                            P(pre + "out2_w"), P(pre + "out2_b"))
            xc_ref[pl.ds(0, n1), :] = xc_ref[pl.ds(0, n1), :] + a1
            xc_ref[pl.ds(n1, n2), :] = xc_ref[pl.ds(n1, n2), :] + a2

            # ---- feed-forward block (pre-LN, residual) ----
            ma, mb = ln_pair(xc_ref[...],
                             P(pre + "ffn_ln1_g"), P(pre + "ffn_ln1_b"),
                             P(pre + "ffn_ln2_g"), P(pre + "ffn_ln2_b"))
            hc_ref[pl.ds(0, n1), :] = (jnp.dot(ma, P(pre + "ffn1_win"),
                                               preferred_element_type=jnp.float32)
                                       + P(pre + "ffn1_bin"))
            hc_ref[pl.ds(n1, n2), :] = (jnp.dot(mb, P(pre + "ffn2_win"),
                                                preferred_element_type=jnp.float32)
                                        + P(pre + "ffn2_bin"))
            ga, gb = ln_pair(_gelu_tanh(hc_ref[...]),
                             P(pre + "ffn1_lng"), P(pre + "ffn1_lnb"),
                             P(pre + "ffn2_lng"), P(pre + "ffn2_lnb"))
            f1 = jnp.dot(ga, P(pre + "ffn1_wout"),
                         preferred_element_type=jnp.float32) + P(pre + "ffn1_bout")
            f2 = jnp.dot(gb, P(pre + "ffn2_wout"),
                         preferred_element_type=jnp.float32) + P(pre + "ffn2_bout")
            xc_ref[pl.ds(0, n1), :] = xc_ref[pl.ds(0, n1), :] + f1
            xc_ref[pl.ds(n1, n2), :] = xc_ref[pl.ds(n1, n2), :] + f2

        # ---- final LN (stats fused) -> mean pool -> projection -> L2 normalize ----
        xc = xc_ref[...]
        mu = jnp.mean(xc, axis=-1, keepdims=True)
        d = xc - mu
        var = jnp.mean(d * d, axis=-1, keepdims=True)
        xh = d * lax.rsqrt(var + LN_EPS)
        pooled = jnp.dot(P("pool"), xh, preferred_element_type=jnp.float32)   # [2B, E]
        # LN affine and pooling commute (both linear): apply gamma/beta after the pool.
        p1 = pooled[:batch] * P("final_ln1_g") + P("final_ln1_b")
        p2 = pooled[batch:] * P("final_ln2_g") + P("final_ln2_b")
        e1 = jnp.dot(p1, P("proj1_w"), preferred_element_type=jnp.float32) + P("proj1_b")
        e2 = jnp.dot(p2, P("proj2_w"), preferred_element_type=jnp.float32) + P("proj2_b")
        e1 = e1 * lax.rsqrt(jnp.maximum(jnp.sum(e1 * e1, axis=-1, keepdims=True), 1e-24))
        e2 = e2 * lax.rsqrt(jnp.maximum(jnp.sum(e2 * e2, axis=-1, keepdims=True), 1e-24))
        o_ref[...] = jnp.concatenate([e1, e2], axis=-1)   # single lane-dense store

    return kernel


# ---------------- host-side wrapper ----------------------------------------------
def build_forward(offsets, slab_shape, batch, s1, s2):
    n = batch * (s1 + s2)
    kernel = make_fused_kernel(offsets, batch, s1, s2)

    @jax.jit
    def fwd(x1, x2, slab):
        xc = jnp.concatenate([x1.reshape(batch * s1, EMBED_DIM),
                              x2.reshape(batch * s2, EMBED_DIM)], axis=0)
        out = pl.pallas_call(
            kernel,
            out_shape=jax.ShapeDtypeStruct((batch, 2 * PROJ_DIM), jnp.float32),
            grid=(1,),
            in_specs=[pl.BlockSpec((n, EMBED_DIM), lambda i: (0, 0)),
                      pl.BlockSpec(slab_shape, lambda i: (0, 0))],
            out_specs=pl.BlockSpec((batch, 2 * PROJ_DIM), lambda i: (0, 0)),
            scratch_shapes=[pltpu.VMEM((n, EMBED_DIM), jnp.float32),   # residual stream
                            pltpu.VMEM((n, FFN_DIM), jnp.float32)],    # FFN hidden slab
            compiler_params=pltpu.CompilerParams(dimension_semantics=("arbitrary",)),
        )(xc, slab)
        return out[:, :PROJ_DIM], out[:, PROJ_DIM:]

    return fwd


# ---------------- pure-JAX reference (standard 4-D multi-head attention) ---------
def _ln_ref(x, g, b):
    mu = x.mean(-1, keepdims=True)
    var = ((x - mu) ** 2).mean(-1, keepdims=True)
    return (x - mu) / jnp.sqrt(var + LN_EPS) * g + b


def _mha_ref(q_in, kv_in, wq, bq, wk, bk, wv, bv, wo, bo):
    bsz, sq, _ = q_in.shape
    sk = kv_in.shape[1]
    q = (q_in @ wq + bq).reshape(bsz, sq, NUM_HEADS, HEAD_DIM).transpose(0, 2, 1, 3)
    k = (kv_in @ wk + bk).reshape(bsz, sk, NUM_HEADS, HEAD_DIM).transpose(0, 2, 1, 3)
    v = (kv_in @ wv + bv).reshape(bsz, sk, NUM_HEADS, HEAD_DIM).transpose(0, 2, 1, 3)
    s = jnp.einsum('bhqd,bhkd->bhqk', q, k) * (HEAD_DIM ** -0.5)
    p = jax.nn.softmax(s, axis=-1)
    o = jnp.einsum('bhqk,bhkd->bhqd', p, v).transpose(0, 2, 1, 3).reshape(bsz, sq, EMBED_DIM)
    return o @ wo + bo


def reference_forward(x1, x2, prm):
    E = EMBED_DIM
    x1 = x1 + _pos_encoding(x1.shape[1], E)[None]
    x2 = x2 + _pos_encoding(x2.shape[1], E)[None]
    for l in range(NUM_LAYERS):
        p = f"l{l}_"
        na = _ln_ref(x1, prm[p + "attn_ln1_g"], prm[p + "attn_ln1_b"])
        nb = _ln_ref(x2, prm[p + "attn_ln2_g"], prm[p + "attn_ln2_b"])
        W1, b1 = prm[p + "qkv1_w"], prm[p + "qkv1_b"]
        W2, b2 = prm[p + "qkv2_w"], prm[p + "qkv2_b"]
        a1 = _mha_ref(na, nb, W1[:, :E], b1[:E], W2[:, E:2 * E], b2[E:2 * E],
                      W2[:, 2 * E:], b2[2 * E:], prm[p + "out1_w"], prm[p + "out1_b"])
        a2 = _mha_ref(nb, na, W2[:, :E], b2[:E], W1[:, E:2 * E], b1[E:2 * E],
                      W1[:, 2 * E:], b1[2 * E:], prm[p + "out2_w"], prm[p + "out2_b"])
        x1, x2 = x1 + a1, x2 + a2
        ma = _ln_ref(x1, prm[p + "ffn_ln1_g"], prm[p + "ffn_ln1_b"])
        mb = _ln_ref(x2, prm[p + "ffn_ln2_g"], prm[p + "ffn_ln2_b"])

        def ffn(x, s):
            h = x @ prm[p + f"ffn{s}_win"] + prm[p + f"ffn{s}_bin"]
            h = _ln_ref(_gelu_tanh(h), prm[p + f"ffn{s}_lng"], prm[p + f"ffn{s}_lnb"])
            return h @ prm[p + f"ffn{s}_wout"] + prm[p + f"ffn{s}_bout"]

        x1, x2 = x1 + ffn(ma, 1), x2 + ffn(mb, 2)
    x1 = _ln_ref(x1, prm["final_ln1_g"], prm["final_ln1_b"]).mean(1)
    x2 = _ln_ref(x2, prm["final_ln2_g"], prm["final_ln2_b"]).mean(1)
    e1 = x1 @ prm["proj1_w"] + prm["proj1_b"]
    e2 = x2 @ prm["proj2_w"] + prm["proj2_b"]
    e1 = e1 / jnp.maximum(jnp.linalg.norm(e1, axis=-1, keepdims=True), 1e-12)
    e2 = e2 / jnp.maximum(jnp.linalg.norm(e2, axis=-1, keepdims=True), 1e-12)
    return e1, e2


# ---------------- main ------------------------------------------------------------
if __name__ == "__main__":
    key = jax.random.PRNGKey(0)
    k1, k2, kp = jax.random.split(key, 3)

    B, S1, S2 = 2, 8, 12
    x1 = jax.random.normal(k1, (B, S1, EMBED_DIM), jnp.float32)
    x2 = jax.random.normal(k2, (B, S2, EMBED_DIM), jnp.float32)

    params = init_params(kp)
    consts = build_constants(B, S1, S2)
    slab, offsets = pack_slab({**consts, **params})

    fwd = build_forward(offsets, slab.shape, B, S1, S2)
    p1, p2 = fwd(x1, x2, slab)
    jax.block_until_ready((p1, p2))

    assert p1.shape == (B, PROJ_DIM) and p2.shape == (B, PROJ_DIM)
    assert bool(jnp.all(jnp.isfinite(p1))) and bool(jnp.all(jnp.isfinite(p2)))
    # L2-normalized outputs
    assert bool(jnp.allclose(jnp.sum(p1 * p1, -1), 1.0, atol=1e-3))
    assert bool(jnp.allclose(jnp.sum(p2 * p2, -1), 1.0, atol=1e-3))

    # parity against a plain-JAX reference (exact softmax / exact divides);
    # loose tolerance covers the approx-reciprocal softmax in the kernel.
    r1, r2 = reference_forward(x1, x2, params)
    assert bool(jnp.allclose(p1, r1, atol=5e-2)), (p1, r1)
    assert bool(jnp.allclose(p2, r2, atol=5e-2)), (p2, r2)

    print("KERNEL_OK")
</pallas_src>

<mosaic_0001>
module attributes {stable_mosaic.version = 11 : i64} {
  func.func @kernel(%arg0: i32, %arg1: memref<40x32xf32, #tpu.memory_space<vmem>>, %arg2: memref<1640x128xf32, #tpu.memory_space<vmem>>, %arg3: memref<2x32xf32, #tpu.memory_space<vmem>>, %arg4: memref<40x32xf32, #tpu.memory_space<vmem>>, %arg5: memref<40x64xf32, #tpu.memory_space<vmem>>) attributes {dimension_semantics = [#tpu.dimension_semantics<arbitrary>], iteration_bounds = array<i64: 1>, scalar_prefetch = 0 : i64, scratch_operands = 2 : i64, tpu.core_type = #tpu.core_type<tc>, window_params = [{pipeline_mode = #tpu.pipeline_mode<synchronous>, transform_indices = @transform_0, window_bounds = array<i64: 40, 32>}, {pipeline_mode = #tpu.pipeline_mode<synchronous>, transform_indices = @transform_1, window_bounds = array<i64: 1640, 128>}, {pipeline_mode = #tpu.pipeline_mode<synchronous>, transform_indices = @transform_2, window_bounds = array<i64: 2, 32>}]} {
    %c0 = arith.constant 0 : index
    %c0_0 = arith.constant 0 : index
    %0 = vector.load %arg1[%c0, %c0_0] : memref<40x32xf32, #tpu.memory_space<vmem>>, vector<40x32xf32>
    %c0_1 = arith.constant 0 : index
    %c0_2 = arith.constant 0 : index
    %1 = vector.load %arg2[%c0_1, %c0_2] : memref<1640x128xf32, #tpu.memory_space<vmem>>, vector<40x32xf32>
    %2 = arith.addf %0, %1 : vector<40x32xf32>
    %c0_3 = arith.constant 0 : index
    %c0_4 = arith.constant 0 : index
    %3 = vector.load %arg4[%c0_3, %c0_4] : memref<40x32xf32, #tpu.memory_space<vmem>>, vector<40x32xf32>
    tpu.vector_store %arg4[%c0_3, %c0_4], %2 {strides = array<i32>} : memref<40x32xf32, #tpu.memory_space<vmem>>, vector<40x32xf32>,
    %c40 = arith.constant 40 : index
    %c0_5 = arith.constant 0 : index
    %4 = vector.load %arg2[%c40, %c0_5] : memref<1640x128xf32, #tpu.memory_space<vmem>>, vector<64x32xf32>
    %c104 = arith.constant 104 : index
    %c0_6 = arith.constant 0 : index
    %5 = vector.load %arg2[%c104, %c0_6] : memref<1640x128xf32, #tpu.memory_space<vmem>>, vector<96x32xf32>
    %c200 = arith.constant 200 : index
    %c0_7 = arith.constant 0 : index
    %6 = vector.load %arg2[%c200, %c0_7] : memref<1640x128xf32, #tpu.memory_space<vmem>>, vector<64x16xf32>
    %c264 = arith.constant 264 : index
    %c0_8 = arith.constant 0 : index
    %7 = vector.load %arg2[%c264, %c0_8] : memref<1640x128xf32, #tpu.memory_space<vmem>>, vector<16x64xf32>
    %c280 = arith.constant 280 : index
    %c0_9 = arith.constant 0 : index
    %8 = vector.load %arg2[%c280, %c0_9] : memref<1640x128xf32, #tpu.memory_space<vmem>>, vector<96x24xf32>
    %c376 = arith.constant 376 : index
    %c0_10 = arith.constant 0 : index
    %9 = vector.load %arg2[%c376, %c0_10] : memref<1640x128xf32, #tpu.memory_space<vmem>>, vector<24x96xf32>
    %c400 = arith.constant 400 : index
    %c0_11 = arith.constant 0 : index
    %10 = vector.load %arg2[%c400, %c0_11] : memref<1640x128xf32, #tpu.memory_space<vmem>>, vector<64x24xf32>
    %c464 = arith.constant 464 : index
    %c0_12 = arith.constant 0 : index
    %11 = vector.load %arg2[%c464, %c0_12] : memref<1640x128xf32, #tpu.memory_space<vmem>>, vector<96x16xf32>
    %c0_13 = arith.constant 0 : index
    %c0_14 = arith.constant 0 : index
    %12 = vector.load %arg4[%c0_13, %c0_14] : memref<40x32xf32, #tpu.memory_space<vmem>>, vector<40x32xf32>
    %c568 = arith.constant 568 : index
    %c0_15 = arith.constant 0 : index
    %13 = vector.load %arg2[%c568, %c0_15] : memref<1640x128xf32, #tpu.memory_space<vmem>>, vector<1x32xf32>
    %c576 = arith.constant 576 : index
    %c0_16 = arith.constant 0 : index
    %14 = vector.load %arg2[%c576, %c0_16] : memref<1640x128xf32, #tpu.memory_space<vmem>>, vector<1x32xf32>
    %c808 = arith.constant 808 : index
    %c0_17 = arith.constant 0 : index
    %15 = vector.load %arg2[%c808, %c0_17] : memref<1640x128xf32, #tpu.memory_space<vmem>>, vector<1x32xf32>
    %c816 = arith.constant 816 : index
    %c0_18 = arith.constant 0 : index
    %16 = vector.load %arg2[%c816, %c0_18] : memref<1640x128xf32, #tpu.memory_space<vmem>>, vector<1x32xf32>
    %cst = arith.constant dense<0.000000e+00> : vector<40xf32>
    %17 = vector.multi_reduction <add>, %12, %cst [1] : vector<40x32xf32> to vector<40xf32>
    %18 = vector.shape_cast %17 : vector<40xf32> to vector<40x1xf32>
    %cst_19 = arith.constant 3.200000e+01 : f32
    %19 = vector.broadcast %cst_19 : f32 to vector<40x1xf32>
    %20 = arith.divf %18, %19 : vector<40x1xf32>
    %21 = vector.broadcast %20 : vector<40x1xf32> to vector<40x32xf32>
    %22 = arith.subf %12, %21 : vector<40x32xf32>
    %23 = arith.mulf %22, %22 : vector<40x32xf32>
    %cst_20 = arith.constant dense<0.000000e+00> : vector<40xf32>
    %24 = vector.multi_reduction <add>, %23, %cst_20 [1] : vector<40x32xf32> to vector<40xf32>
    %25 = vector.shape_cast %24 : vector<40xf32> to vector<40x1xf32>
    %cst_21 = arith.constant 3.200000e+01 : f32
    %26 = vector.broadcast %cst_21 : f32 to vector<40x1xf32>
    %27 = arith.divf %25, %26 : vector<40x1xf32>
    %cst_22 = arith.constant 9.99999974E-6 : f32
    %28 = vector.broadcast %cst_22 : f32 to vector<40x1xf32>
    %29 = arith.addf %27, %28 : vector<40x1xf32>
    %30 = math.rsqrt %29 : vector<40x1xf32>
    %31 = vector.broadcast %30 : vector<40x1xf32> to vector<40x32xf32>
    %32 = arith.mulf %22, %31 : vector<40x32xf32>
    %33 = vector.extract_strided_slice %32 {offsets = [0, 0], sizes = [16, 32], strides = [1, 1]} : vector<40x32xf32> to vector<16x32xf32>
    %34 = vector.broadcast %13 : vector<1x32xf32> to vector<16x32xf32>
    %35 = arith.mulf %33, %34 : vector<16x32xf32>
    %36 = vector.broadcast %14 : vector<1x32xf32> to vector<16x32xf32>
    %37 = arith.addf %35, %36 : vector<16x32xf32>
    %38 = vector.extract_strided_slice %32 {offsets = [16, 0], sizes = [24, 32], strides = [1, 1]} : vector<40x32xf32> to vector<24x32xf32>
    %39 = vector.broadcast %15 : vector<1x32xf32> to vector<24x32xf32>
    %40 = arith.mulf %38, %39 : vector<24x32xf32>
    %41 = vector.broadcast %16 : vector<1x32xf32> to vector<24x32xf32>
    %42 = arith.addf %40, %41 : vector<24x32xf32>
    %c584 = arith.constant 584 : index
    %c0_23 = arith.constant 0 : index
    %43 = vector.load %arg2[%c584, %c0_23] : memref<1640x128xf32, #tpu.memory_space<vmem>>, vector<32x96xf32>
    %cst_24 = arith.constant dense<0.000000e+00> : vector<16x96xf32>
    %44 = tpu.matmul %37, %43, %cst_24 {dimension_numbers = #tpu.dot_dimension_numbers<[1], [0], [0], [1], [0, 0, 1, 1], [], []>} : vector<16x32xf32>, vector<32x96xf32>, vector<16x96xf32> -> vector<16x96xf32>
    %c616 = arith.constant 616 : index
    %c0_25 = arith.constant 0 : index
    %45 = vector.load %arg2[%c616, %c0_25] : memref<1640x128xf32, #tpu.memory_space<vmem>>, vector<1x96xf32>
    %46 = vector.broadcast %45 : vector<1x96xf32> to vector<16x96xf32>
    %47 = arith.addf %44, %46 : vector<16x96xf32>
    %c824 = arith.constant 824 : index
    %c0_26 = arith.constant 0 : index
    %48 = vector.load %arg2[%c824, %c0_26] : memref<1640x128xf32, #tpu.memory_space<vmem>>, vector<32x96xf32>
    %cst_27 = arith.constant dense<0.000000e+00> : vector<24x96xf32>
    %49 = tpu.matmul %42, %48, %cst_27 {dimension_numbers = #tpu.dot_dimension_numbers<[1], [0], [0], [1], [0, 0, 1, 1], [], []>} : vector<24x32xf32>, vector<32x96xf32>, vector<24x96xf32> -> vector<24x96xf32>
    %c856 = arith.constant 856 : index
    %c0_28 = arith.constant 0 : index
    %50 = vector.load %arg2[%c856, %c0_28] : memref<1640x128xf32, #tpu.memory_space<vmem>>, vector<1x96xf32>
    %51 = vector.broadcast %50 : vector<1x96xf32> to vector<24x96xf32>
    %52 = arith.addf %49, %51 : vector<24x96xf32>
    %53 = vector.extract_strided_slice %47 {offsets = [0, 0], sizes = [16, 32], strides = [1, 1]} : vector<16x96xf32> to vector<16x32xf32>
    %54 = vector.extract_strided_slice %47 {offsets = [0, 32], sizes = [16, 32], strides = [1, 1]} : vector<16x96xf32> to vector<16x32xf32>
    %55 = vector.extract_strided_slice %47 {offsets = [0, 64], sizes = [16, 32], strides = [1, 1]} : vector<16x96xf32> to vector<16x32xf32>
    %56 = vector.extract_strided_slice %52 {offsets = [0, 0], sizes = [24, 32], strides = [1, 1]} : vector<24x96xf32> to vector<24x32xf32>
    %57 = vector.extract_strided_slice %52 {offsets = [0, 32], sizes = [24, 32], strides = [1, 1]} : vector<24x96xf32> to vector<24x32xf32>
    %58 = vector.extract_strided_slice %52 {offsets = [0, 64], sizes = [24, 32], strides = [1, 1]} : vector<24x96xf32> to vector<24x32xf32>
    %c624 = arith.constant 624 : index
    %c0_29 = arith.constant 0 : index
    %59 = vector.load %arg2[%c624, %c0_29] : memref<1640x128xf32, #tpu.memory_space<vmem>>, vector<32x32xf32>
    %c656 = arith.constant 656 : index
    %c0_30 = arith.constant 0 : index
    %60 = vector.load %arg2[%c656, %c0_30] : memref<1640x128xf32, #tpu.memory_space<vmem>>, vector<1x32xf32>
    %cst_31 = arith.constant dense<0.000000e+00> : vector<64x32xf32>
    %61 = tpu.matmul %6, %53, %cst_31 {dimension_numbers = #tpu.dot_dimension_numbers<[1], [0], [0], [1], [0, 0, 1, 1], [], []>} : vector<64x16xf32>, vector<16x32xf32>, vector<64x32xf32> -> vector<64x32xf32>
    %62 = arith.mulf %61, %4 : vector<64x32xf32>
    %cst_32 = arith.constant dense<0.000000e+00> : vector<64x24xf32>
    %63 = tpu.matmul %62, %57, %cst_32 {dimension_numbers = #tpu.dot_dimension_numbers<[1], [1], [0], [0], [0, 0, 1, 0], [], []>} : vector<64x32xf32>, vector<24x32xf32>, vector<64x24xf32> -> vector<64x24xf32>
    %cst_33 = arith.constant 0.353553385 : f32
    %64 = vector.broadcast %cst_33 : f32 to vector<64x24xf32>
    %65 = arith.mulf %63, %64 : vector<64x24xf32>
    %66 = arith.addf %65, %10 : vector<64x24xf32>
    %cst_34 = arith.constant dense<0xFF800000> : vector<64xf32>
    %67 = vector.multi_reduction <maximumf>, %66, %cst_34 [1] : vector<64x24xf32> to vector<64xf32>
    %68 = vector.shape_cast %67 : vector<64xf32> to vector<64x1xf32>
    %69 = vector.broadcast %68 : vector<64x1xf32> to vector<64x24xf32>
    %70 = arith.subf %66, %69 : vector<64x24xf32>
    %71 = math.exp %70 : vector<64x24xf32>
    %cst_35 = arith.constant dense<0.000000e+00> : vector<64xf32>
    %72 = vector.multi_reduction <add>, %71, %cst_35 [1] : vector<64x24xf32> to vector<64xf32>
    %73 = vector.shape_cast %72 : vector<64xf32> to vector<64x1xf32>
    %74 = tpu.reciprocal %73 {approx = true} : vector<64x1xf32> -> vector<64x1xf32>
    %75 = vector.broadcast %74 : vector<64x1xf32> to vector<64x24xf32>
    %76 = arith.mulf %71, %75 : vector<64x24xf32>
    %cst_36 = arith.constant dense<0.000000e+00> : vector<64x32xf32>
    %77 = tpu.matmul %76, %58, %cst_36 {dimension_numbers = #tpu.dot_dimension_numbers<[1], [0], [0], [1], [0, 0, 1, 1], [], []>} : vector<64x24xf32>, vector<24x32xf32>, vector<64x32xf32> -> vector<64x32xf32>
    %78 = arith.mulf %77, %4 : vector<64x32xf32>
    %cst_37 = arith.constant dense<0.000000e+00> : vector<16x32xf32>
    %79 = tpu.matmul %7, %78, %cst_37 {dimension_numbers = #tpu.dot_dimension_numbers<[1], [0], [0], [1], [0, 0, 1, 1], [], []>} : vector<16x64xf32>, vector<64x32xf32>, vector<16x32xf32> -> vector<16x32xf32>
    %cst_38 = arith.constant dense<0.000000e+00> : vector<16x32xf32>
    %80 = tpu.matmul %79, %59, %cst_38 {dimension_numbers = #tpu.dot_dimension_numbers<[1], [0], [0], [1], [0, 0, 1, 1], [], []>} : vector<16x32xf32>, vector<32x32xf32>, vector<16x32xf32> -> vector<16x32xf32>
    %81 = vector.broadcast %60 : vector<1x32xf32> to vector<16x32xf32>
    %82 = arith.addf %80, %81 : vector<16x32xf32>
    %c864 = arith.constant 864 : index
    %c0_39 = arith.constant 0 : index
    %83 = vector.load %arg2[%c864, %c0_39] : memref<1640x128xf32, #tpu.memory_space<vmem>>, vector<32x32xf32>
    %c896 = arith.constant 896 : index
    %c0_40 = arith.constant 0 : index
    %84 = vector.load %arg2[%c896, %c0_40] : memref<1640x128xf32, #tpu.memory_space<vmem>>, vector<1x32xf32>
    %cst_41 = arith.constant dense<0.000000e+00> : vector<96x32xf32>
    %85 = tpu.matmul %8, %56, %cst_41 {dimension_numbers = #tpu.dot_dimension_numbers<[1], [0], [0], [1], [0, 0, 1, 1], [], []>} : vector<96x24xf32>, vector<24x32xf32>, vector<96x32xf32> -> vector<96x32xf32>
    %86 = arith.mulf %85, %5 : vector<96x32xf32>
    %cst_42 = arith.constant dense<0.000000e+00> : vector<96x16xf32>
    %87 = tpu.matmul %86, %54, %cst_42 {dimension_numbers = #tpu.dot_dimension_numbers<[1], [1], [0], [0], [0, 0, 1, 0], [], []>} : vector<96x32xf32>, vector<16x32xf32>, vector<96x16xf32> -> vector<96x16xf32>
    %cst_43 = arith.constant 0.353553385 : f32
    %88 = vector.broadcast %cst_43 : f32 to vector<96x16xf32>
    %89 = arith.mulf %87, %88 : vector<96x16xf32>
    %90 = arith.addf %89, %11 : vector<96x16xf32>
    %cst_44 = arith.constant dense<0xFF800000> : vector<96xf32>
    %91 = vector.multi_reduction <maximumf>, %90, %cst_44 [1] : vector<96x16xf32> to vector<96xf32>
    %92 = vector.shape_cast %91 : vector<96xf32> to vector<96x1xf32>
    %93 = vector.broadcast %92 : vector<96x1xf32> to vector<96x16xf32>
    %94 = arith.subf %90, %93 : vector<96x16xf32>
    %95 = math.exp %94 : vector<96x16xf32>
    %cst_45 = arith.constant dense<0.000000e+00> : vector<96xf32>
    %96 = vector.multi_reduction <add>, %95, %cst_45 [1] : vector<96x16xf32> to vector<96xf32>
    %97 = vector.shape_cast %96 : vector<96xf32> to vector<96x1xf32>
    %98 = tpu.reciprocal %97 {approx = true} : vector<96x1xf32> -> vector<96x1xf32>
    %99 = vector.broadcast %98 : vector<96x1xf32> to vector<96x16xf32>
    %100 = arith.mulf %95, %99 : vector<96x16xf32>
    %cst_46 = arith.constant dense<0.000000e+00> : vector<96x32xf32>
    %101 = tpu.matmul %100, %55, %cst_46 {dimension_numbers = #tpu.dot_dimension_numbers<[1], [0], [0], [1], [0, 0, 1, 1], [], []>} : vector<96x16xf32>, vector<16x32xf32>, vector<96x32xf32> -> vector<96x32xf32>
    %102 = arith.mulf %101, %5 : vector<96x32xf32>
    %cst_47 = arith.constant dense<0.000000e+00> : vector<24x32xf32>
    %103 = tpu.matmul %9, %102, %cst_47 {dimension_numbers = #tpu.dot_dimension_numbers<[1], [0], [0], [1], [0, 0, 1, 1], [], []>} : vector<24x96xf32>, vector<96x32xf32>, vector<24x32xf32> -> vector<24x32xf32>
    %cst_48 = arith.constant dense<0.000000e+00> : vector<24x32xf32>
    %104 = tpu.matmul %103, %83, %cst_48 {dimension_numbers = #tpu.dot_dimension_numbers<[1], [0], [0], [1], [0, 0, 1, 1], [], []>} : vector<24x32xf32>, vector<32x32xf32>, vector<24x32xf32> -> vector<24x32xf32>
    %105 = vector.broadcast %84 : vector<1x32xf32> to vector<24x32xf32>
    %106 = arith.addf %104, %105 : vector<24x32xf32>
    %c0_49 = arith.constant 0 : index
    %c0_50 = arith.constant 0 : index
    %107 = vector.load %arg4[%c0_49, %c0_50] : memref<40x32xf32, #tpu.memory_space<vmem>>, vector<16x32xf32>
    %108 = arith.addf %107, %82 : vector<16x32xf32>
    %c0_51 = arith.constant 0 : index
    %c0_52 = arith.constant 0 : index
    %109 = vector.load %arg4[%c0_51, %c0_52] : memref<40x32xf32, #tpu.memory_space<vmem>>, vector<16x32xf32>
    tpu.vector_store %arg4[%c0_51, %c0_52], %108 {strides = array<i32>} : memref<40x32xf32, #tpu.memory_space<vmem>>, vector<16x32xf32>,
    %c16 = arith.constant 16 : index
    %c0_53 = arith.constant 0 : index
    %110 = vector.load %arg4[%c16, %c0_53] : memref<40x32xf32, #tpu.memory_space<vmem>>, vector<24x32xf32>
    %111 = arith.addf %110, %106 : vector<24x32xf32>
    %c16_54 = arith.constant 16 : index
    %c0_55 = arith.constant 0 : index
    %112 = vector.load %arg4[%c16_54, %c0_55] : memref<40x32xf32, #tpu.memory_space<vmem>>, vector<24x32xf32>
    tpu.vector_store %arg4[%c16_54, %c0_55], %111 {strides = array<i32>} : memref<40x32xf32, #tpu.memory_space<vmem>>, vector<24x32xf32>,
    %c0_56 = arith.constant 0 : index
    %c0_57 = arith.constant 0 : index
    %113 = vector.load %arg4[%c0_56, %c0_57] : memref<40x32xf32, #tpu.memory_space<vmem>>, vector<40x32xf32>
    %c664 = arith.constant 664 : index
    %c0_58 = arith.constant 0 : index
    %114 = vector.load %arg2[%c664, %c0_58] : memref<1640x128xf32, #tpu.memory_space<vmem>>, vector<1x32xf32>
    %c672 = arith.constant 672 : index
    %c0_59 = arith.constant 0 : index
    %115 = vector.load %arg2[%c672, %c0_59] : memref<1640x128xf32, #tpu.memory_space<vmem>>, vector<1x32xf32>
    %c904 = arith.constant 904 : index
    %c0_60 = arith.constant 0 : index
    %116 = vector.load %arg2[%c904, %c0_60] : memref<1640x128xf32, #tpu.memory_space<vmem>>, vector<1x32xf32>
    %c912 = arith.constant 912 : index
    %c0_61 = arith.constant 0 : index
    %117 = vector.load %arg2[%c912, %c0_61] : memref<1640x128xf32, #tpu.memory_space<vmem>>, vector<1x32xf32>
    %cst_62 = arith.constant dense<0.000000e+00> : vector<40xf32>
    %118 = vector.multi_reduction <add>, %113, %cst_62 [1] : vector<40x32xf32> to vector<40xf32>
    %119 = vector.shape_cast %118 : vector<40xf32> to vector<40x1xf32>
    %cst_63 = arith.constant 3.200000e+01 : f32
    %120 = vector.broadcast %cst_63 : f32 to vector<40x1xf32>
    %121 = arith.divf %119, %120 : vector<40x1xf32>
    %122 = vector.broadcast %121 : vector<40x1xf32> to vector<40x32xf32>
    %123 = arith.subf %113, %122 : vector<40x32xf32>
    %124 = arith.mulf %123, %123 : vector<40x32xf32>
    %cst_64 = arith.constant dense<0.000000e+00> : vector<40xf32>
    %125 = vector.multi_reduction <add>, %124, %cst_64 [1] : vector<40x32xf32> to vector<40xf32>
    %126 = vector.shape_cast %125 : vector<40xf32> to vector<40x1xf32>
    %cst_65 = arith.constant 3.200000e+01 : f32
    %127 = vector.broadcast %cst_65 : f32 to vector<40x1xf32>
    %128 = arith.divf %126, %127 : vector<40x1xf32>
    %cst_66 = arith.constant 9.99999974E-6 : f32
    %129 = vector.broadcast %cst_66 : f32 to vector<40x1xf32>
    %130 = arith.addf %128, %129 : vector<40x1xf32>
    %131 = math.rsqrt %130 : vector<40x1xf32>
    %132 = vector.broadcast %131 : vector<40x1xf32> to vector<40x32xf32>
    %133 = arith.mulf %123, %132 : vector<40x32xf32>
    %134 = vector.extract_strided_slice %133 {offsets = [0, 0], sizes = [16, 32], strides = [1, 1]} : vector<40x32xf32> to vector<16x32xf32>
    %135 = vector.broadcast %114 : vector<1x32xf32> to vector<16x32xf32>
    %136 = arith.mulf %134, %135 : vector<16x32xf32>
    %137 = vector.broadcast %115 : vector<1x32xf32> to vector<16x32xf32>
    %138 = arith.addf %136, %137 : vector<16x32xf32>
    %139 = vector.extract_strided_slice %133 {offsets = [16, 0], sizes = [24, 32], strides = [1, 1]} : vector<40x32xf32> to vector<24x32xf32>
    %140 = vector.broadcast %116 : vector<1x32xf32> to vector<24x32xf32>
    %141 = arith.mulf %139, %140 : vector<24x32xf32>
    %142 = vector.broadcast %117 : vector<1x32xf32> to vector<24x32xf32>
    %143 = arith.addf %141, %142 : vector<24x32xf32>
    %c680 = arith.constant 680 : index
    %c0_67 = arith.constant 0 : index
    %144 = vector.load %arg2[%c680, %c0_67] : memref<1640x128xf32, #tpu.memory_space<vmem>>, vector<32x64xf32>
    %cst_68 = arith.constant dense<0.000000e+00> : vector<16x64xf32>
    %145 = tpu.matmul %138, %144, %cst_68 {dimension_numbers = #tpu.dot_dimension_numbers<[1], [0], [0], [1], [0, 0, 1, 1], [], []>} : vector<16x32xf32>, vector<32x64xf32>, vector<16x64xf32> -> vector<16x64xf32>
    %c712 = arith.constant 712 : index
    %c0_69 = arith.constant 0 : index
    %146 = vector.load %arg2[%c712, %c0_69] : memref<1640x128xf32, #tpu.memory_space<vmem>>, vector<1x64xf32>
    %147 = vector.broadcast %146 : vector<1x64xf32> to vector<16x64xf32>
    %148 = arith.addf %145, %147 : vector<16x64xf32>
    %c0_70 = arith.constant 0 : index
    %c0_71 = arith.constant 0 : index
    %149 = vector.load %arg5[%c0_70, %c0_71] : memref<40x64xf32, #tpu.memory_space<vmem>>, vector<16x64xf32>
    tpu.vector_store %arg5[%c0_70, %c0_71], %148 {strides = array<i32>} : memref<40x64xf32, #tpu.memory_space<vmem>>, vector<16x64xf32>,
    %c920 = arith.constant 920 : index
    %c0_72 = arith.constant 0 : index
    %150 = vector.load %arg2[%c920, %c0_72] : memref<1640x128xf32, #tpu.memory_space<vmem>>, vector<32x64xf32>
    %cst_73 = arith.constant dense<0.000000e+00> : vector<24x64xf32>
    %151 = tpu.matmul %143, %150, %cst_73 {dimension_numbers = #tpu.dot_dimension_numbers<[1], [0], [0], [1], [0, 0, 1, 1], [], []>} : vector<24x32xf32>, vector<32x64xf32>, vector<24x64xf32> -> vector<24x64xf32>
    %c952 = arith.constant 952 : index
    %c0_74 = arith.constant 0 : index
    %152 = vector.load %arg2[%c952, %c0_74] : memref<1640x128xf32, #tpu.memory_space<vmem>>, vector<1x64xf32>
    %153 = vector.broadcast %152 : vector<1x64xf32> to vector<24x64xf32>
    %154 = arith.addf %151, %153 : vector<24x64xf32>
    %c16_75 = arith.constant 16 : index
    %c0_76 = arith.constant 0 : index
    %155 = vector.load %arg5[%c16_75, %c0_76] : memref<40x64xf32, #tpu.memory_space<vmem>>, vector<24x64xf32>
    tpu.vector_store %arg5[%c16_75, %c0_76], %154 {strides = array<i32>} : memref<40x64xf32, #tpu.memory_space<vmem>>, vector<24x64xf32>,
    %c0_77 = arith.constant 0 : index
    %c0_78 = arith.constant 0 : index
    %156 = vector.load %arg5[%c0_77, %c0_78] : memref<40x64xf32, #tpu.memory_space<vmem>>, vector<40x64xf32>
    %cst_79 = arith.constant 5.000000e-01 : f32
    %157 = vector.broadcast %cst_79 : f32 to vector<40x64xf32>
    %158 = arith.mulf %157, %156 : vector<40x64xf32>
    %cst_80 = arith.constant 4.471500e-02 : f32
    %159 = vector.broadcast %cst_80 : f32 to vector<40x64xf32>
    %160 = arith.mulf %159, %156 : vector<40x64xf32>
    %161 = arith.mulf %160, %156 : vector<40x64xf32>
    %162 = arith.mulf %161, %156 : vector<40x64xf32>
    %163 = arith.addf %156, %162 : vector<40x64xf32>
    %cst_81 = arith.constant 0.797884583 : f32
    %164 = vector.broadcast %cst_81 : f32 to vector<40x64xf32>
    %165 = arith.mulf %164, %163 : vector<40x64xf32>
    %166 = math.tanh %165 : vector<40x64xf32>
    %cst_82 = arith.constant 1.000000e+00 : f32
    %167 = vector.broadcast %cst_82 : f32 to vector<40x64xf32>
    %168 = arith.addf %167, %166 : vector<40x64xf32>
    %169 = arith.mulf %158, %168 : vector<40x64xf32>
    %c720 = arith.constant 720 : index
    %c0_83 = arith.constant 0 : index
    %170 = vector.load %arg2[%c720, %c0_83] : memref<1640x128xf32, #tpu.memory_space<vmem>>, vector<1x64xf32>
    %c728 = arith.constant 728 : index
    %c0_84 = arith.constant 0 : index
    %171 = vector.load %arg2[%c728, %c0_84] : memref<1640x128xf32, #tpu.memory_space<vmem>>, vector<1x64xf32>
    %c960 = arith.constant 960 : index
    %c0_85 = arith.constant 0 : index
    %172 = vector.load %arg2[%c960, %c0_85] : memref<1640x128xf32, #tpu.memory_space<vmem>>, vector<1x64xf32>
    %c968 = arith.constant 968 : index
    %c0_86 = arith.constant 0 : index
    %173 = vector.load %arg2[%c968, %c0_86] : memref<1640x128xf32, #tpu.memory_space<vmem>>, vector<1x64xf32>
    %cst_87 = arith.constant dense<0.000000e+00> : vector<40xf32>
    %174 = vector.multi_reduction <add>, %169, %cst_87 [1] : vector<40x64xf32> to vector<40xf32>
    %175 = vector.shape_cast %174 : vector<40xf32> to vector<40x1xf32>
    %cst_88 = arith.constant 6.400000e+01 : f32
    %176 = vector.broadcast %cst_88 : f32 to vector<40x1xf32>
    %177 = arith.divf %175, %176 : vector<40x1xf32>
    %178 = vector.broadcast %177 : vector<40x1xf32> to vector<40x64xf32>
    %179 = arith.subf %169, %178 : vector<40x64xf32>
    %180 = arith.mulf %179, %179 : vector<40x64xf32>
    %cst_89 = arith.constant dense<0.000000e+00> : vector<40xf32>
    %181 = vector.multi_reduction <add>, %180, %cst_89 [1] : vector<40x64xf32> to vector<40xf32>
    %182 = vector.shape_cast %181 : vector<40xf32> to vector<40x1xf32>
    %cst_90 = arith.constant 6.400000e+01 : f32
    %183 = vector.broadcast %cst_90 : f32 to vector<40x1xf32>
    %184 = arith.divf %182, %183 : vector<40x1xf32>
    %cst_91 = arith.constant 9.99999974E-6 : f32
    %185 = vector.broadcast %cst_91 : f32 to vector<40x1xf32>
    %186 = arith.addf %184, %185 : vector<40x1xf32>
    %187 = math.rsqrt %186 : vector<40x1xf32>
    %188 = vector.broadcast %187 : vector<40x1xf32> to vector<40x64xf32>
    %189 = arith.mulf %179, %188 : vector<40x64xf32>
    %190 = vector.extract_strided_slice %189 {offsets = [0, 0], sizes = [16, 64], strides = [1, 1]} : vector<40x64xf32> to vector<16x64xf32>
    %191 = vector.broadcast %170 : vector<1x64xf32> to vector<16x64xf32>
    %192 = arith.mulf %190, %191 : vector<16x64xf32>
    %193 = vector.broadcast %171 : vector<1x64xf32> to vector<16x64xf32>
    %194 = arith.addf %192, %193 : vector<16x64xf32>
    %195 = vector.extract_strided_slice %189 {offsets = [16, 0], sizes = [24, 64], strides = [1, 1]} : vector<40x64xf32> to vector<24x64xf32>
    %196 = vector.broadcast %172 : vector<1x64xf32> to vector<24x64xf32>
    %197 = arith.mulf %195, %196 : vector<24x64xf32>
    %198 = vector.broadcast %173 : vector<1x64xf32> to vector<24x64xf32>
    %199 = arith.addf %197, %198 : vector<24x64xf32>
    %c736 = arith.constant 736 : index
    %c0_92 = arith.constant 0 : index
    %200 = vector.load %arg2[%c736, %c0_92] : memref<1640x128xf32, #tpu.memory_space<vmem>>, vector<64x32xf32>
    %cst_93 = arith.constant dense<0.000000e+00> : vector<16x32xf32>
    %201 = tpu.matmul %194, %200, %cst_93 {dimension_numbers = #tpu.dot_dimension_numbers<[1], [0], [0], [1], [0, 0, 1, 1], [], []>} : vector<16x64xf32>, vector<64x32xf32>, vector<16x32xf32> -> vector<16x32xf32>
    %c800 = arith.constant 800 : index
    %c0_94 = arith.constant 0 : index
    %202 = vector.load %arg2[%c800, %c0_94] : memref<1640x128xf32, #tpu.memory_space<vmem>>, vector<1x32xf32>
    %203 = vector.broadcast %202 : vector<1x32xf32> to vector<16x32xf32>
    %204 = arith.addf %201, %203 : vector<16x32xf32>
    %c976 = arith.constant 976 : index
    %c0_95 = arith.constant 0 : index
    %205 = vector.load %arg2[%c976, %c0_95] : memref<1640x128xf32, #tpu.memory_space<vmem>>, vector<64x32xf32>
    %cst_96 = arith.constant dense<0.000000e+00> : vector<24x32xf32>
    %206 = tpu.matmul %199, %205, %cst_96 {dimension_numbers = #tpu.dot_dimension_numbers<[1], [0], [0], [1], [0, 0, 1, 1], [], []>} : vector<24x64xf32>, vector<64x32xf32>, vector<24x32xf32> -> vector<24x32xf32>
    %c1040 = arith.constant 1040 : index
    %c0_97 = arith.constant 0 : index
    %207 = vector.load %arg2[%c1040, %c0_97] : memref<1640x128xf32, #tpu.memory_space<vmem>>, vector<1x32xf32>
    %208 = vector.broadcast %207 : vector<1x32xf32> to vector<24x32xf32>
    %209 = arith.addf %206, %208 : vector<24x32xf32>
    %c0_98 = arith.constant 0 : index
    %c0_99 = arith.constant 0 : index
    %210 = vector.load %arg4[%c0_98, %c0_99] : memref<40x32xf32, #tpu.memory_space<vmem>>, vector<16x32xf32>
    %211 = arith.addf %210, %204 : vector<16x32xf32>
    %c0_100 = arith.constant 0 : index
    %c0_101 = arith.constant 0 : index
    %212 = vector.load %arg4[%c0_100, %c0_101] : memref<40x32xf32, #tpu.memory_space<vmem>>, vector<16x32xf32>
    tpu.vector_store %arg4[%c0_100, %c0_101], %211 {strides = array<i32>} : memref<40x32xf32, #tpu.memory_space<vmem>>, vector<16x32xf32>,
    %c16_102 = arith.constant 16 : index
    %c0_103 = arith.constant 0 : index
    %213 = vector.load %arg4[%c16_102, %c0_103] : memref<40x32xf32, #tpu.memory_space<vmem>>, vector<24x32xf32>
    %214 = arith.addf %213, %209 : vector<24x32xf32>
    %c16_104 = arith.constant 16 : index
    %c0_105 = arith.constant 0 : index
    %215 = vector.load %arg4[%c16_104, %c0_105] : memref<40x32xf32, #tpu.memory_space<vmem>>, vector<24x32xf32>
    tpu.vector_store %arg4[%c16_104, %c0_105], %214 {strides = array<i32>} : memref<40x32xf32, #tpu.memory_space<vmem>>, vector<24x32xf32>,
    %c0_106 = arith.constant 0 : index
    %c0_107 = arith.constant 0 : index
    %216 = vector.load %arg4[%c0_106, %c0_107] : memref<40x32xf32, #tpu.memory_space<vmem>>, vector<40x32xf32>
    %c1048 = arith.constant 1048 : index
    %c0_108 = arith.constant 0 : index
    %217 = vector.load %arg2[%c1048, %c0_108] : memref<1640x128xf32, #tpu.memory_space<vmem>>, vector<1x32xf32>
    %c1056 = arith.constant 1056 : index
    %c0_109 = arith.constant 0 : index
    %218 = vector.load %arg2[%c1056, %c0_109] : memref<1640x128xf32, #tpu.memory_space<vmem>>, vector<1x32xf32>
    %c1288 = arith.constant 1288 : index
    %c0_110 = arith.constant 0 : index
    %219 = vector.load %arg2[%c1288, %c0_110] : memref<1640x128xf32, #tpu.memory_space<vmem>>, vector<1x32xf32>
    %c1296 = arith.constant 1296 : index
    %c0_111 = arith.constant 0 : index
    %220 = vector.load %arg2[%c1296, %c0_111] : memref<1640x128xf32, #tpu.memory_space<vmem>>, vector<1x32xf32>
    %cst_112 = arith.constant dense<0.000000e+00> : vector<40xf32>
    %221 = vector.multi_reduction <add>, %216, %cst_112 [1] : vector<40x32xf32> to vector<40xf32>
    %222 = vector.shape_cast %221 : vector<40xf32> to vector<40x1xf32>
    %cst_113 = arith.constant 3.200000e+01 : f32
    %223 = vector.broadcast %cst_113 : f32 to vector<40x1xf32>
    %224 = arith.divf %222, %223 : vector<40x1xf32>
    %225 = vector.broadcast %224 : vector<40x1xf32> to vector<40x32xf32>
    %226 = arith.subf %216, %225 : vector<40x32xf32>
    %227 = arith.mulf %226, %226 : vector<40x32xf32>
    %cst_114 = arith.constant dense<0.000000e+00> : vector<40xf32>
    %228 = vector.multi_reduction <add>, %227, %cst_114 [1] : vector<40x32xf32> to vector<40xf32>
    %229 = vector.shape_cast %228 : vector<40xf32> to vector<40x1xf32>
    %cst_115 = arith.constant 3.200000e+01 : f32
    %230 = vector.broadcast %cst_115 : f32 to vector<40x1xf32>
    %231 = arith.divf %229, %230 : vector<40x1xf32>
    %cst_116 = arith.constant 9.99999974E-6 : f32
    %232 = vector.broadcast %cst_116 : f32 to vector<40x1xf32>
    %233 = arith.addf %231, %232 : vector<40x1xf32>
    %234 = math.rsqrt %233 : vector<40x1xf32>
    %235 = vector.broadcast %234 : vector<40x1xf32> to vector<40x32xf32>
    %236 = arith.mulf %226, %235 : vector<40x32xf32>
    %237 = vector.extract_strided_slice %236 {offsets = [0, 0], sizes = [16, 32], strides = [1, 1]} : vector<40x32xf32> to vector<16x32xf32>
    %238 = vector.broadcast %217 : vector<1x32xf32> to vector<16x32xf32>
    %239 = arith.mulf %237, %238 : vector<16x32xf32>
    %240 = vector.broadcast %218 : vector<1x32xf32> to vector<16x32xf32>
    %241 = arith.addf %239, %240 : vector<16x32xf32>
    %242 = vector.extract_strided_slice %236 {offsets = [16, 0], sizes = [24, 32], strides = [1, 1]} : vector<40x32xf32> to vector<24x32xf32>
    %243 = vector.broadcast %219 : vector<1x32xf32> to vector<24x32xf32>
    %244 = arith.mulf %242, %243 : vector<24x32xf32>
    %245 = vector.broadcast %220 : vector<1x32xf32> to vector<24x32xf32>
    %246 = arith.addf %244, %245 : vector<24x32xf32>
    %c1064 = arith.constant 1064 : index
    %c0_117 = arith.constant 0 : index
    %247 = vector.load %arg2[%c1064, %c0_117] : memref<1640x128xf32, #tpu.memory_space<vmem>>, vector<32x96xf32>
    %cst_118 = arith.constant dense<0.000000e+00> : vector<16x96xf32>
    %248 = tpu.matmul %241, %247, %cst_118 {dimension_numbers = #tpu.dot_dimension_numbers<[1], [0], [0], [1], [0, 0, 1, 1], [], []>} : vector<16x32xf32>, vector<32x96xf32>, vector<16x96xf32> -> vector<16x96xf32>
    %c1096 = arith.constant 1096 : index
    %c0_119 = arith.constant 0 : index
    %249 = vector.load %arg2[%c1096, %c0_119] : memref<1640x128xf32, #tpu.memory_space<vmem>>, vector<1x96xf32>
    %250 = vector.broadcast %249 : vector<1x96xf32> to vector<16x96xf32>
    %251 = arith.addf %248, %250 : vector<16x96xf32>
    %c1304 = arith.constant 1304 : index
    %c0_120 = arith.constant 0 : index
    %252 = vector.load %arg2[%c1304, %c0_120] : memref<1640x128xf32, #tpu.memory_space<vmem>>, vector<32x96xf32>
    %cst_121 = arith.constant dense<0.000000e+00> : vector<24x96xf32>
    %253 = tpu.matmul %246, %252, %cst_121 {dimension_numbers = #tpu.dot_dimension_numbers<[1], [0], [0], [1], [0, 0, 1, 1], [], []>} : vector<24x32xf32>, vector<32x96xf32>, vector<24x96xf32> -> vector<24x96xf32>
    %c1336 = arith.constant 1336 : index
    %c0_122 = arith.constant 0 : index
    %254 = vector.load %arg2[%c1336, %c0_122] : memref<1640x128xf32, #tpu.memory_space<vmem>>, vector<1x96xf32>
    %255 = vector.broadcast %254 : vector<1x96xf32> to vector<24x96xf32>
    %256 = arith.addf %253, %255 : vector<24x96xf32>
    %257 = vector.extract_strided_slice %251 {offsets = [0, 0], sizes = [16, 32], strides = [1, 1]} : vector<16x96xf32> to vector<16x32xf32>
    %258 = vector.extract_strided_slice %251 {offsets = [0, 32], sizes = [16, 32], strides = [1, 1]} : vector<16x96xf32> to vector<16x32xf32>
    %259 = vector.extract_strided_slice %251 {offsets = [0, 64], sizes = [16, 32], strides = [1, 1]} : vector<16x96xf32> to vector<16x32xf32>
    %260 = vector.extract_strided_slice %256 {offsets = [0, 0], sizes = [24, 32], strides = [1, 1]} : vector<24x96xf32> to vector<24x32xf32>
    %261 = vector.extract_strided_slice %256 {offsets = [0, 32], sizes = [24, 32], strides = [1, 1]} : vector<24x96xf32> to vector<24x32xf32>
    %262 = vector.extract_strided_slice %256 {offsets = [0, 64], sizes = [24, 32], strides = [1, 1]} : vector<24x96xf32> to vector<24x32xf32>
    %c1104 = arith.constant 1104 : index
    %c0_123 = arith.constant 0 : index
    %263 = vector.load %arg2[%c1104, %c0_123] : memref<1640x128xf32, #tpu.memory_space<vmem>>, vector<32x32xf32>
    %c1136 = arith.constant 1136 : index
    %c0_124 = arith.constant 0 : index
    %264 = vector.load %arg2[%c1136, %c0_124] : memref<1640x128xf32, #tpu.memory_space<vmem>>, vector<1x32xf32>
    %cst_125 = arith.constant dense<0.000000e+00> : vector<64x32xf32>
    %265 = tpu.matmul %6, %257, %cst_125 {dimension_numbers = #tpu.dot_dimension_numbers<[1], [0], [0], [1], [0, 0, 1, 1], [], []>} : vector<64x16xf32>, vector<16x32xf32>, vector<64x32xf32> -> vector<64x32xf32>
    %266 = arith.mulf %265, %4 : vector<64x32xf32>
    %cst_126 = arith.constant dense<0.000000e+00> : vector<64x24xf32>
    %267 = tpu.matmul %266, %261, %cst_126 {dimension_numbers = #tpu.dot_dimension_numbers<[1], [1], [0], [0], [0, 0, 1, 0], [], []>} : vector<64x32xf32>, vector<24x32xf32>, vector<64x24xf32> -> vector<64x24xf32>
    %cst_127 = arith.constant 0.353553385 : f32
    %268 = vector.broadcast %cst_127 : f32 to vector<64x24xf32>
    %269 = arith.mulf %267, %268 : vector<64x24xf32>
    %270 = arith.addf %269, %10 : vector<64x24xf32>
    %cst_128 = arith.constant dense<0xFF800000> : vector<64xf32>
    %271 = vector.multi_reduction <maximumf>, %270, %cst_128 [1] : vector<64x24xf32> to vector<64xf32>
    %272 = vector.shape_cast %271 : vector<64xf32> to vector<64x1xf32>
    %273 = vector.broadcast %272 : vector<64x1xf32> to vector<64x24xf32>
    %274 = arith.subf %270, %273 : vector<64x24xf32>
    %275 = math.exp %274 : vector<64x24xf32>
    %cst_129 = arith.constant dense<0.000000e+00> : vector<64xf32>
    %276 = vector.multi_reduction <add>, %275, %cst_129 [1] : vector<64x24xf32> to vector<64xf32>
    %277 = vector.shape_cast %276 : vector<64xf32> to vector<64x1xf32>
    %278 = tpu.reciprocal %277 {approx = true} : vector<64x1xf32> -> vector<64x1xf32>
    %279 = vector.broadcast %278 : vector<64x1xf32> to vector<64x24xf32>
    %280 = arith.mulf %275, %279 : vector<64x24xf32>
    %cst_130 = arith.constant dense<0.000000e+00> : vector<64x32xf32>
    %281 = tpu.matmul %280, %262, %cst_130 {dimension_numbers = #tpu.dot_dimension_numbers<[1], [0], [0], [1], [0, 0, 1, 1], [], []>} : vector<64x24xf32>, vector<24x32xf32>, vector<64x32xf32> -> vector<64x32xf32>
    %282 = arith.mulf %281, %4 : vector<64x32xf32>
    %cst_131 = arith.constant dense<0.000000e+00> : vector<16x32xf32>
    %283 = tpu.matmul %7, %282, %cst_131 {dimension_numbers = #tpu.dot_dimension_numbers<[1], [0], [0], [1], [0, 0, 1, 1], [], []>} : vector<16x64xf32>, vector<64x32xf32>, vector<16x32xf32> -> vector<16x32xf32>
    %cst_132 = arith.constant dense<0.000000e+00> : vector<16x32xf32>
    %284 = tpu.matmul %283, %263, %cst_132 {dimension_numbers = #tpu.dot_dimension_numbers<[1], [0], [0], [1], [0, 0, 1, 1], [], []>} : vector<16x32xf32>, vector<32x32xf32>, vector<16x32xf32> -> vector<16x32xf32>
    %285 = vector.broadcast %264 : vector<1x32xf32> to vector<16x32xf32>
    %286 = arith.addf %284, %285 : vector<16x32xf32>
    %c1344 = arith.constant 1344 : index
    %c0_133 = arith.constant 0 : index
    %287 = vector.load %arg2[%c1344, %c0_133] : memref<1640x128xf32, #tpu.memory_space<vmem>>, vector<32x32xf32>
    %c1376 = arith.constant 1376 : index
    %c0_134 = arith.constant 0 : index
    %288 = vector.load %arg2[%c1376, %c0_134] : memref<1640x128xf32, #tpu.memory_space<vmem>>, vector<1x32xf32>
    %cst_135 = arith.constant dense<0.000000e+00> : vector<96x32xf32>
    %289 = tpu.matmul %8, %260, %cst_135 {dimension_numbers = #tpu.dot_dimension_numbers<[1], [0], [0], [1], [0, 0, 1, 1], [], []>} : vector<96x24xf32>, vector<24x32xf32>, vector<96x32xf32> -> vector<96x32xf32>
    %290 = arith.mulf %289, %5 : vector<96x32xf32>
    %cst_136 = arith.constant dense<0.000000e+00> : vector<96x16xf32>
    %291 = tpu.matmul %290, %258, %cst_136 {dimension_numbers = #tpu.dot_dimension_numbers<[1], [1], [0], [0], [0, 0, 1, 0], [], []>} : vector<96x32xf32>, vector<16x32xf32>, vector<96x16xf32> -> vector<96x16xf32>
    %cst_137 = arith.constant 0.353553385 : f32
    %292 = vector.broadcast %cst_137 : f32 to vector<96x16xf32>
    %293 = arith.mulf %291, %292 : vector<96x16xf32>
    %294 = arith.addf %293, %11 : vector<96x16xf32>
    %cst_138 = arith.constant dense<0xFF800000> : vector<96xf32>
    %295 = vector.multi_reduction <maximumf>, %294, %cst_138 [1] : vector<96x16xf32> to vector<96xf32>
    %296 = vector.shape_cast %295 : vector<96xf32> to vector<96x1xf32>
    %297 = vector.broadcast %296 : vector<96x1xf32> to vector<96x16xf32>
    %298 = arith.subf %294, %297 : vector<96x16xf32>
    %299 = math.exp %298 : vector<96x16xf32>
    %cst_139 = arith.constant dense<0.000000e+00> : vector<96xf32>
    %300 = vector.multi_reduction <add>, %299, %cst_139 [1] : vector<96x16xf32> to vector<96xf32>
    %301 = vector.shape_cast %300 : vector<96xf32> to vector<96x1xf32>
    %302 = tpu.reciprocal %301 {approx = true} : vector<96x1xf32> -> vector<96x1xf32>
    %303 = vector.broadcast %302 : vector<96x1xf32> to vector<96x16xf32>
    %304 = arith.mulf %299, %303 : vector<96x16xf32>
    %cst_140 = arith.constant dense<0.000000e+00> : vector<96x32xf32>
    %305 = tpu.matmul %304, %259, %cst_140 {dimension_numbers = #tpu.dot_dimension_numbers<[1], [0], [0], [1], [0, 0, 1, 1], [], []>} : vector<96x16xf32>, vector<16x32xf32>, vector<96x32xf32> -> vector<96x32xf32>
    %306 = arith.mulf %305, %5 : vector<96x32xf32>
    %cst_141 = arith.constant dense<0.000000e+00> : vector<24x32xf32>
    %307 = tpu.matmul %9, %306, %cst_141 {dimension_numbers = #tpu.dot_dimension_numbers<[1], [0], [0], [1], [0, 0, 1, 1], [], []>} : vector<24x96xf32>, vector<96x32xf32>, vector<24x32xf32> -> vector<24x32xf32>
    %cst_142 = arith.constant dense<0.000000e+00> : vector<24x32xf32>
    %308 = tpu.matmul %307, %287, %cst_142 {dimension_numbers = #tpu.dot_dimension_numbers<[1], [0], [0], [1], [0, 0, 1, 1], [], []>} : vector<24x32xf32>, vector<32x32xf32>, vector<24x32xf32> -> vector<24x32xf32>
    %309 = vector.broadcast %288 : vector<1x32xf32> to vector<24x32xf32>
    %310 = arith.addf %308, %309 : vector<24x32xf32>
    %c0_143 = arith.constant 0 : index
    %c0_144 = arith.constant 0 : index
    %311 = vector.load %arg4[%c0_143, %c0_144] : memref<40x32xf32, #tpu.memory_space<vmem>>, vector<16x32xf32>
    %312 = arith.addf %311, %286 : vector<16x32xf32>
    %c0_145 = arith.constant 0 : index
    %c0_146 = arith.constant 0 : index
    %313 = vector.load %arg4[%c0_145, %c0_146] : memref<40x32xf32, #tpu.memory_space<vmem>>, vector<16x32xf32>
    tpu.vector_store %arg4[%c0_145, %c0_146], %312 {strides = array<i32>} : memref<40x32xf32, #tpu.memory_space<vmem>>, vector<16x32xf32>,
    %c16_147 = arith.constant 16 : index
    %c0_148 = arith.constant 0 : index
    %314 = vector.load %arg4[%c16_147, %c0_148] : memref<40x32xf32, #tpu.memory_space<vmem>>, vector<24x32xf32>
    %315 = arith.addf %314, %310 : vector<24x32xf32>
    %c16_149 = arith.constant 16 : index
    %c0_150 = arith.constant 0 : index
    %316 = vector.load %arg4[%c16_149, %c0_150] : memref<40x32xf32, #tpu.memory_space<vmem>>, vector<24x32xf32>
    tpu.vector_store %arg4[%c16_149, %c0_150], %315 {strides = array<i32>} : memref<40x32xf32, #tpu.memory_space<vmem>>, vector<24x32xf32>,
    %c0_151 = arith.constant 0 : index
    %c0_152 = arith.constant 0 : index
    %317 = vector.load %arg4[%c0_151, %c0_152] : memref<40x32xf32, #tpu.memory_space<vmem>>, vector<40x32xf32>
    %c1144 = arith.constant 1144 : index
    %c0_153 = arith.constant 0 : index
    %318 = vector.load %arg2[%c1144, %c0_153] : memref<1640x128xf32, #tpu.memory_space<vmem>>, vector<1x32xf32>
    %c1152 = arith.constant 1152 : index
    %c0_154 = arith.constant 0 : index
    %319 = vector.load %arg2[%c1152, %c0_154] : memref<1640x128xf32, #tpu.memory_space<vmem>>, vector<1x32xf32>
    %c1384 = arith.constant 1384 : index
    %c0_155 = arith.constant 0 : index
    %320 = vector.load %arg2[%c1384, %c0_155] : memref<1640x128xf32, #tpu.memory_space<vmem>>, vector<1x32xf32>
    %c1392 = arith.constant 1392 : index
    %c0_156 = arith.constant 0 : index
    %321 = vector.load %arg2[%c1392, %c0_156] : memref<1640x128xf32, #tpu.memory_space<vmem>>, vector<1x32xf32>
    %cst_157 = arith.constant dense<0.000000e+00> : vector<40xf32>
    %322 = vector.multi_reduction <add>, %317, %cst_157 [1] : vector<40x32xf32> to vector<40xf32>
    %323 = vector.shape_cast %322 : vector<40xf32> to vector<40x1xf32>
    %cst_158 = arith.constant 3.200000e+01 : f32
    %324 = vector.broadcast %cst_158 : f32 to vector<40x1xf32>
    %325 = arith.divf %323, %324 : vector<40x1xf32>
    %326 = vector.broadcast %325 : vector<40x1xf32> to vector<40x32xf32>
    %327 = arith.subf %317, %326 : vector<40x32xf32>
    %328 = arith.mulf %327, %327 : vector<40x32xf32>
    %cst_159 = arith.constant dense<0.000000e+00> : vector<40xf32>
    %329 = vector.multi_reduction <add>, %328, %cst_159 [1] : vector<40x32xf32> to vector<40xf32>
    %330 = vector.shape_cast %329 : vector<40xf32> to vector<40x1xf32>
    %cst_160 = arith.constant 3.200000e+01 : f32
    %331 = vector.broadcast %cst_160 : f32 to vector<40x1xf32>
    %332 = arith.divf %330, %331 : vector<40x1xf32>
    %cst_161 = arith.constant 9.99999974E-6 : f32
    %333 = vector.broadcast %cst_161 : f32 to vector<40x1xf32>
    %334 = arith.addf %332, %333 : vector<40x1xf32>
    %335 = math.rsqrt %334 : vector<40x1xf32>
    %336 = vector.broadcast %335 : vector<40x1xf32> to vector<40x32xf32>
    %337 = arith.mulf %327, %336 : vector<40x32xf32>
    %338 = vector.extract_strided_slice %337 {offsets = [0, 0], sizes = [16, 32], strides = [1, 1]} : vector<40x32xf32> to vector<16x32xf32>
    %339 = vector.broadcast %318 : vector<1x32xf32> to vector<16x32xf32>
    %340 = arith.mulf %338, %339 : vector<16x32xf32>
    %341 = vector.broadcast %319 : vector<1x32xf32> to vector<16x32xf32>
    %342 = arith.addf %340, %341 : vector<16x32xf32>
    %343 = vector.extract_strided_slice %337 {offsets = [16, 0], sizes = [24, 32], strides = [1, 1]} : vector<40x32xf32> to vector<24x32xf32>
    %344 = vector.broadcast %320 : vector<1x32xf32> to vector<24x32xf32>
    %345 = arith.mulf %343, %344 : vector<24x32xf32>
    %346 = vector.broadcast %321 : vector<1x32xf32> to vector<24x32xf32>
    %347 = arith.addf %345, %346 : vector<24x32xf32>
    %c1160 = arith.constant 1160 : index
    %c0_162 = arith.constant 0 : index
    %348 = vector.load %arg2[%c1160, %c0_162] : memref<1640x128xf32, #tpu.memory_space<vmem>>, vector<32x64xf32>
    %cst_163 = arith.constant dense<0.000000e+00> : vector<16x64xf32>
    %349 = tpu.matmul %342, %348, %cst_163 {dimension_numbers = #tpu.dot_dimension_numbers<[1], [0], [0], [1], [0, 0, 1, 1], [], []>} : vector<16x32xf32>, vector<32x64xf32>, vector<16x64xf32> -> vector<16x64xf32>
    %c1192 = arith.constant 1192 : index
    %c0_164 = arith.constant 0 : index
    %350 = vector.load %arg2[%c1192, %c0_164] : memref<1640x128xf32, #tpu.memory_space<vmem>>, vector<1x64xf32>
    %351 = vector.broadcast %350 : vector<1x64xf32> to vector<16x64xf32>
    %352 = arith.addf %349, %351 : vector<16x64xf32>
    %c0_165 = arith.constant 0 : index
    %c0_166 = arith.constant 0 : index
    %353 = vector.load %arg5[%c0_165, %c0_166] : memref<40x64xf32, #tpu.memory_space<vmem>>, vector<16x64xf32>
    tpu.vector_store %arg5[%c0_165, %c0_166], %352 {strides = array<i32>} : memref<40x64xf32, #tpu.memory_space<vmem>>, vector<16x64xf32>,
    %c1400 = arith.constant 1400 : index
    %c0_167 = arith.constant 0 : index
    %354 = vector.load %arg2[%c1400, %c0_167] : memref<1640x128xf32, #tpu.memory_space<vmem>>, vector<32x64xf32>
    %cst_168 = arith.constant dense<0.000000e+00> : vector<24x64xf32>
    %355 = tpu.matmul %347, %354, %cst_168 {dimension_numbers = #tpu.dot_dimension_numbers<[1], [0], [0], [1], [0, 0, 1, 1], [], []>} : vector<24x32xf32>, vector<32x64xf32>, vector<24x64xf32> -> vector<24x64xf32>
    %c1432 = arith.constant 1432 : index
    %c0_169 = arith.constant 0 : index
    %356 = vector.load %arg2[%c1432, %c0_169] : memref<1640x128xf32, #tpu.memory_space<vmem>>, vector<1x64xf32>
    %357 = vector.broadcast %356 : vector<1x64xf32> to vector<24x64xf32>
    %358 = arith.addf %355, %357 : vector<24x64xf32>
    %c16_170 = arith.constant 16 : index
    %c0_171 = arith.constant 0 : index
    %359 = vector.load %arg5[%c16_170, %c0_171] : memref<40x64xf32, #tpu.memory_space<vmem>>, vector<24x64xf32>
    tpu.vector_store %arg5[%c16_170, %c0_171], %358 {strides = array<i32>} : memref<40x64xf32, #tpu.memory_space<vmem>>, vector<24x64xf32>,
    %c0_172 = arith.constant 0 : index
    %c0_173 = arith.constant 0 : index
    %360 = vector.load %arg5[%c0_172, %c0_173] : memref<40x64xf32, #tpu.memory_space<vmem>>, vector<40x64xf32>
    %cst_174 = arith.constant 5.000000e-01 : f32
    %361 = vector.broadcast %cst_174 : f32 to vector<40x64xf32>
    %362 = arith.mulf %361, %360 : vector<40x64xf32>
    %cst_175 = arith.constant 4.471500e-02 : f32
    %363 = vector.broadcast %cst_175 : f32 to vector<40x64xf32>
    %364 = arith.mulf %363, %360 : vector<40x64xf32>
    %365 = arith.mulf %364, %360 : vector<40x64xf32>
    %366 = arith.mulf %365, %360 : vector<40x64xf32>
    %367 = arith.addf %360, %366 : vector<40x64xf32>
    %cst_176 = arith.constant 0.797884583 : f32
    %368 = vector.broadcast %cst_176 : f32 to vector<40x64xf32>
    %369 = arith.mulf %368, %367 : vector<40x64xf32>
    %370 = math.tanh %369 : vector<40x64xf32>
    %cst_177 = arith.constant 1.000000e+00 : f32
    %371 = vector.broadcast %cst_177 : f32 to vector<40x64xf32>
    %372 = arith.addf %371, %370 : vector<40x64xf32>
    %373 = arith.mulf %362, %372 : vector<40x64xf32>
    %c1200 = arith.constant 1200 : index
    %c0_178 = arith.constant 0 : index
    %374 = vector.load %arg2[%c1200, %c0_178] : memref<1640x128xf32, #tpu.memory_space<vmem>>, vector<1x64xf32>
    %c1208 = arith.constant 1208 : index
    %c0_179 = arith.constant 0 : index
    %375 = vector.load %arg2[%c1208, %c0_179] : memref<1640x128xf32, #tpu.memory_space<vmem>>, vector<1x64xf32>
    %c1440 = arith.constant 1440 : index
    %c0_180 = arith.constant 0 : index
    %376 = vector.load %arg2[%c1440, %c0_180] : memref<1640x128xf32, #tpu.memory_space<vmem>>, vector<1x64xf32>
    %c1448 = arith.constant 1448 : index
    %c0_181 = arith.constant 0 : index
    %377 = vector.load %arg2[%c1448, %c0_181] : memref<1640x128xf32, #tpu.memory_space<vmem>>, vector<1x64xf32>
    %cst_182 = arith.constant dense<0.000000e+00> : vector<40xf32>
    %378 = vector.multi_reduction <add>, %373, %cst_182 [1] : vector<40x64xf32> to vector<40xf32>
    %379 = vector.shape_cast %378 : vector<40xf32> to vector<40x1xf32>
    %cst_183 = arith.constant 6.400000e+01 : f32
    %380 = vector.broadcast %cst_183 : f32 to vector<40x1xf32>
    %381 = arith.divf %379, %380 : vector<40x1xf32>
    %382 = vector.broadcast %381 : vector<40x1xf32> to vector<40x64xf32>
    %383 = arith.subf %373, %382 : vector<40x64xf32>
    %384 = arith.mulf %383, %383 : vector<40x64xf32>
    %cst_184 = arith.constant dense<0.000000e+00> : vector<40xf32>
    %385 = vector.multi_reduction <add>, %384, %cst_184 [1] : vector<40x64xf32> to vector<40xf32>
    %386 = vector.shape_cast %385 : vector<40xf32> to vector<40x1xf32>
    %cst_185 = arith.constant 6.400000e+01 : f32
    %387 = vector.broadcast %cst_185 : f32 to vector<40x1xf32>
    %388 = arith.divf %386, %387 : vector<40x1xf32>
    %cst_186 = arith.constant 9.99999974E-6 : f32
    %389 = vector.broadcast %cst_186 : f32 to vector<40x1xf32>
    %390 = arith.addf %388, %389 : vector<40x1xf32>
    %391 = math.rsqrt %390 : vector<40x1xf32>
    %392 = vector.broadcast %391 : vector<40x1xf32> to vector<40x64xf32>
    %393 = arith.mulf %383, %392 : vector<40x64xf32>
    %394 = vector.extract_strided_slice %393 {offsets = [0, 0], sizes = [16, 64], strides = [1, 1]} : vector<40x64xf32> to vector<16x64xf32>
    %395 = vector.broadcast %374 : vector<1x64xf32> to vector<16x64xf32>
    %396 = arith.mulf %394, %395 : vector<16x64xf32>
    %397 = vector.broadcast %375 : vector<1x64xf32> to vector<16x64xf32>
    %398 = arith.addf %396, %397 : vector<16x64xf32>
    %399 = vector.extract_strided_slice %393 {offsets = [16, 0], sizes = [24, 64], strides = [1, 1]} : vector<40x64xf32> to vector<24x64xf32>
    %400 = vector.broadcast %376 : vector<1x64xf32> to vector<24x64xf32>
    %401 = arith.mulf %399, %400 : vector<24x64xf32>
    %402 = vector.broadcast %377 : vector<1x64xf32> to vector<24x64xf32>
    %403 = arith.addf %401, %402 : vector<24x64xf32>
    %c1216 = arith.constant 1216 : index
    %c0_187 = arith.constant 0 : index
    %404 = vector.load %arg2[%c1216, %c0_187] : memref<1640x128xf32, #tpu.memory_space<vmem>>, vector<64x32xf32>
    %cst_188 = arith.constant dense<0.000000e+00> : vector<16x32xf32>
    %405 = tpu.matmul %398, %404, %cst_188 {dimension_numbers = #tpu.dot_dimension_numbers<[1], [0], [0], [1], [0, 0, 1, 1], [], []>} : vector<16x64xf32>, vector<64x32xf32>, vector<16x32xf32> -> vector<16x32xf32>
    %c1280 = arith.constant 1280 : index
    %c0_189 = arith.constant 0 : index
    %406 = vector.load %arg2[%c1280, %c0_189] : memref<1640x128xf32, #tpu.memory_space<vmem>>, vector<1x32xf32>
    %407 = vector.broadcast %406 : vector<1x32xf32> to vector<16x32xf32>
    %408 = arith.addf %405, %407 : vector<16x32xf32>
    %c1456 = arith.constant 1456 : index
    %c0_190 = arith.constant 0 : index
    %409 = vector.load %arg2[%c1456, %c0_190] : memref<1640x128xf32, #tpu.memory_space<vmem>>, vector<64x32xf32>
    %cst_191 = arith.constant dense<0.000000e+00> : vector<24x32xf32>
    %410 = tpu.matmul %403, %409, %cst_191 {dimension_numbers = #tpu.dot_dimension_numbers<[1], [0], [0], [1], [0, 0, 1, 1], [], []>} : vector<24x64xf32>, vector<64x32xf32>, vector<24x32xf32> -> vector<24x32xf32>
    %c1520 = arith.constant 1520 : index
    %c0_192 = arith.constant 0 : index
    %411 = vector.load %arg2[%c1520, %c0_192] : memref<1640x128xf32, #tpu.memory_space<vmem>>, vector<1x32xf32>
    %412 = vector.broadcast %411 : vector<1x32xf32> to vector<24x32xf32>
    %413 = arith.addf %410, %412 : vector<24x32xf32>
    %c0_193 = arith.constant 0 : index
    %c0_194 = arith.constant 0 : index
    %414 = vector.load %arg4[%c0_193, %c0_194] : memref<40x32xf32, #tpu.memory_space<vmem>>, vector<16x32xf32>
    %415 = arith.addf %414, %408 : vector<16x32xf32>
    %c0_195 = arith.constant 0 : index
    %c0_196 = arith.constant 0 : index
    %416 = vector.load %arg4[%c0_195, %c0_196] : memref<40x32xf32, #tpu.memory_space<vmem>>, vector<16x32xf32>
    tpu.vector_store %arg4[%c0_195, %c0_196], %415 {strides = array<i32>} : memref<40x32xf32, #tpu.memory_space<vmem>>, vector<16x32xf32>,
    %c16_197 = arith.constant 16 : index
    %c0_198 = arith.constant 0 : index
    %417 = vector.load %arg4[%c16_197, %c0_198] : memref<40x32xf32, #tpu.memory_space<vmem>>, vector<24x32xf32>
    %418 = arith.addf %417, %413 : vector<24x32xf32>
    %c16_199 = arith.constant 16 : index
    %c0_200 = arith.constant 0 : index
    %419 = vector.load %arg4[%c16_199, %c0_200] : memref<40x32xf32, #tpu.memory_space<vmem>>, vector<24x32xf32>
    tpu.vector_store %arg4[%c16_199, %c0_200], %418 {strides = array<i32>} : memref<40x32xf32, #tpu.memory_space<vmem>>, vector<24x32xf32>,
    %c0_201 = arith.constant 0 : index
    %c0_202 = arith.constant 0 : index
    %420 = vector.load %arg4[%c0_201, %c0_202] : memref<40x32xf32, #tpu.memory_space<vmem>>, vector<40x32xf32>
    %cst_203 = arith.constant dense<0.000000e+00> : vector<40xf32>
    %421 = vector.multi_reduction <add>, %420, %cst_203 [1] : vector<40x32xf32> to vector<40xf32>
    %422 = vector.shape_cast %421 : vector<40xf32> to vector<40x1xf32>
    %cst_204 = arith.constant 3.200000e+01 : f32
    %423 = vector.broadcast %cst_204 : f32 to vector<40x1xf32>
    %424 = arith.divf %422, %423 : vector<40x1xf32>
    %425 = vector.broadcast %424 : vector<40x1xf32> to vector<40x32xf32>
    %426 = arith.subf %420, %425 : vector<40x32xf32>
    %427 = arith.mulf %426, %426 : vector<40x32xf32>
    %cst_205 = arith.constant dense<0.000000e+00> : vector<40xf32>
    %428 = vector.multi_reduction <add>, %427, %cst_205 [1] : vector<40x32xf32> to vector<40xf32>
    %429 = vector.shape_cast %428 : vector<40xf32> to vector<40x1xf32>
    %cst_206 = arith.constant 3.200000e+01 : f32
    %430 = vector.broadcast %cst_206 : f32 to vector<40x1xf32>
    %431 = arith.divf %429, %430 : vector<40x1xf32>
    %cst_207 = arith.constant 9.99999974E-6 : f32
    %432 = vector.broadcast %cst_207 : f32 to vector<40x1xf32>
    %433 = arith.addf %431, %432 : vector<40x1xf32>
    %434 = math.rsqrt %433 : vector<40x1xf32>
    %435 = vector.broadcast %434 : vector<40x1xf32> to vector<40x32xf32>
    %436 = arith.mulf %426, %435 : vector<40x32xf32>
    %c560 = arith.constant 560 : index
    %c0_208 = arith.constant 0 : index
    %437 = vector.load %arg2[%c560, %c0_208] : memref<1640x128xf32, #tpu.memory_space<vmem>>, vector<4x40xf32>
    %cst_209 = arith.constant dense<0.000000e+00> : vector<4x32xf32>
    %438 = tpu.matmul %437, %436, %cst_209 {dimension_numbers = #tpu.dot_dimension_numbers<[1], [0], [0], [1], [0, 0, 1, 1], [], []>} : vector<4x40xf32>, vector<40x32xf32>, vector<4x32xf32> -> vector<4x32xf32>
    %439 = vector.extract_strided_slice %438 {offsets = [0, 0], sizes = [2, 32], strides = [1, 1]} : vector<4x32xf32> to vector<2x32xf32>
    %c1528 = arith.constant 1528 : index
    %c0_210 = arith.constant 0 : index
    %440 = vector.load %arg2[%c1528, %c0_210] : memref<1640x128xf32, #tpu.memory_space<vmem>>, vector<1x32xf32>
    %441 = vector.broadcast %440 : vector<1x32xf32> to vector<2x32xf32>
    %442 = arith.mulf %439, %441 : vector<2x32xf32>
    %c1536 = arith.constant 1536 : index
    %c0_211 = arith.constant 0 : index
    %443 = vector.load %arg2[%c1536, %c0_211] : memref<1640x128xf32, #tpu.memory_space<vmem>>, vector<1x32xf32>
    %444 = vector.broadcast %443 : vector<1x32xf32> to vector<2x32xf32>
    %445 = arith.addf %442, %444 : vector<2x32xf32>
    %446 = vector.extract_strided_slice %438 {offsets = [2, 0], sizes = [2, 32], strides = [1, 1]} : vector<4x32xf32> to vector<2x32xf32>
    %c1584 = arith.constant 1584 : index
    %c0_212 = arith.constant 0 : index
    %447 = vector.load %arg2[%c1584, %c0_212] : memref<1640x128xf32, #tpu.memory_space<vmem>>, vector<1x32xf32>
    %448 = vector.broadcast %447 : vector<1x32xf32> to vector<2x32xf32>
    %449 = arith.mulf %446, %448 : vector<2x32xf32>
    %c1592 = arith.constant 1592 : index
    %c0_213 = arith.constant 0 : index
    %450 = vector.load %arg2[%c1592, %c0_213] : memref<1640x128xf32, #tpu.memory_space<vmem>>, vector<1x32xf32>
    %451 = vector.broadcast %450 : vector<1x32xf32> to vector<2x32xf32>
    %452 = arith.addf %449, %451 : vector<2x32xf32>
    %c1544 = arith.constant 1544 : index
    %c0_214 = arith.constant 0 : index
    %453 = vector.load %arg2[%c1544, %c0_214] : memref<1640x128xf32, #tpu.memory_space<vmem>>, vector<32x16xf32>
    %cst_215 = arith.constant dense<0.000000e+00> : vector<2x16xf32>
    %454 = tpu.matmul %445, %453, %cst_215 {dimension_numbers = #tpu.dot_dimension_numbers<[1], [0], [0], [1], [0, 0, 1, 1], [], []>} : vector<2x32xf32>, vector<32x16xf32>, vector<2x16xf32> -> vector<2x16xf32>
    %c1576 = arith.constant 1576 : index
    %c0_216 = arith.constant 0 : index
    %455 = vector.load %arg2[%c1576, %c0_216] : memref<1640x128xf32, #tpu.memory_space<vmem>>, vector<1x16xf32>
    %456 = vector.broadcast %455 : vector<1x16xf32> to vector<2x16xf32>
    %457 = arith.addf %454, %456 : vector<2x16xf32>
    %c1600 = arith.constant 1600 : index
    %c0_217 = arith.constant 0 : index
    %458 = vector.load %arg2[%c1600, %c0_217] : memref<1640x128xf32, #tpu.memory_space<vmem>>, vector<32x16xf32>
    %cst_218 = arith.constant dense<0.000000e+00> : vector<2x16xf32>
    %459 = tpu.matmul %452, %458, %cst_218 {dimension_numbers = #tpu.dot_dimension_numbers<[1], [0], [0], [1], [0, 0, 1, 1], [], []>} : vector<2x32xf32>, vector<32x16xf32>, vector<2x16xf32> -> vector<2x16xf32>
    %c1632 = arith.constant 1632 : index
    %c0_219 = arith.constant 0 : index
    %460 = vector.load %arg2[%c1632, %c0_219] : memref<1640x128xf32, #tpu.memory_space<vmem>>, vector<1x16xf32>
    %461 = vector.broadcast %460 : vector<1x16xf32> to vector<2x16xf32>
    %462 = arith.addf %459, %461 : vector<2x16xf32>
    %463 = arith.mulf %457, %457 : vector<2x16xf32>
    %cst_220 = arith.constant dense<0.000000e+00> : vector<2xf32>
    %464 = vector.multi_reduction <add>, %463, %cst_220 [1] : vector<2x16xf32> to vector<2xf32>
    %465 = vector.shape_cast %464 : vector<2xf32> to vector<2x1xf32>
    %cst_221 = arith.constant 1.000000e-24 : f32
    %466 = vector.broadcast %cst_221 : f32 to vector<2x1xf32>
    %467 = arith.maximumf %465, %466 : vector<2x1xf32>
    %468 = math.rsqrt %467 : vector<2x1xf32>
    %469 = vector.broadcast %468 : vector<2x1xf32> to vector<2x16xf32>
    %470 = arith.mulf %457, %469 : vector<2x16xf32>
    %471 = arith.mulf %462, %462 : vector<2x16xf32>
    %cst_222 = arith.constant dense<0.000000e+00> : vector<2xf32>
    %472 = vector.multi_reduction <add>, %471, %cst_222 [1] : vector<2x16xf32> to vector<2xf32>
    %473 = vector.shape_cast %472 : vector<2xf32> to vector<2x1xf32>
    %cst_223 = arith.constant 1.000000e-24 : f32
    %474 = vector.broadcast %cst_223 : f32 to vector<2x1xf32>
    %475 = arith.maximumf %473, %474 : vector<2x1xf32>
    %476 = math.rsqrt %475 : vector<2x1xf32>
    %477 = vector.broadcast %476 : vector<2x1xf32> to vector<2x16xf32>
    %478 = arith.mulf %462, %477 : vector<2x16xf32>
    %479 = tpu.concatenate %470, %478 in 1 : vector<2x16xf32>, vector<2x16xf32> -> vector<2x32xf32>
    %c0_224 = arith.constant 0 : index
    %c0_225 = arith.constant 0 : index
    %480 = vector.load %arg3[%c0_224, %c0_225] : memref<2x32xf32, #tpu.memory_space<vmem>>, vector<2x32xf32>
    tpu.vector_store %arg3[%c0_224, %c0_225], %479 {strides = array<i32>} : memref<2x32xf32, #tpu.memory_space<vmem>>, vector<2x32xf32>,
    return
  }
  func.func @transform_0(%arg0: i32) -> (i32, i32) {
    %c0_i32 = arith.constant 0 : i32
    %c0_i32_0 = arith.constant 0 : i32
    %c0_i32_1 = arith.constant 0 : i32
    return %c0_i32, %c0_i32_0 : i32, i32
  }
  func.func @transform_1(%arg0: i32) -> (i32, i32) {
    %c0_i32 = arith.constant 0 : i32
    %c0_i32_0 = arith.constant 0 : i32
    %c0_i32_1 = arith.constant 0 : i32
    return %c0_i32, %c0_i32_0 : i32, i32
  }
  func.func @transform_2(%arg0: i32) -> (i32, i32) {
    %c0_i32 = arith.constant 0 : i32
    %c0_i32_0 = arith.constant 0 : i32
    %c0_i32_1 = arith.constant 0 : i32
    return %c0_i32, %c0_i32_0 : i32, i32
  }
}

</mosaic_0001>

<llo_original>
// kernel: fwd.1
$region0: #{fwd.1}
  #allocation0 [shape = 'u32[]', space=smem, size = 0x4, offset = 0x4, fixed_abs, tag = 'smem constant byte address 0x4 - core index']
  #allocation1 [shape = 'u32[72,128]{1,0:T(1,128)}', space=vmem, size = 0x9000, scoped, tag = 'internal scratch']
  #allocation2 [shape = 'f32[40,32]{1,0:T(8,128)}', space=vmem, size = 0x5000, scoped, tag = 'scratch operand']
  #allocation3 [shape = 'f32[40,64]{1,0:T(8,128)}', space=vmem, size = 0x5000, scoped, tag = 'scratch operand']
  %s0 = inlined_call_operand.vmem [shape: f32[40,32], index: 0, kind: input, shape index: {}]
  %s1 = inlined_call_operand.hbm [shape: f32[1640,128], index: 1, kind: input, shape index: {}]
  %s2 = inlined_call_operand.vmem [shape: f32[2,32], index: 2, kind: output, shape index: {}]
  %s3 = sld [smem:[#allocation0]]
  $region22: #{fwd.1} parent=0
    _
  %s5 = ssub.s32 1, %s3
  %s6 = scalar_select 0, %s5, %s3
  $region1: #{fwd.1} parent=0
    #allocation4 [shape = 'u8[839680]{0}', space=vmem, size = 0xcd000, scoped, tag = 'input window, operand 1, single buffered']
    #allocation5 [shape = 's32[1]{0}', space=sflag, size = 0x4, scoped, tag = 'scoped memory for fwd.1']
    %7 = vsyncpa [#allocation5], 0
    // Predicated region
    $region2: #{fwd.1} parent=1 // pred_check
      _
    $region3: #{fwd.1} parent=1 // pred_check_branch
      %9 = sbr.rel (0) target = $region5
    $region4: #{fwd.1} parent=1 // pred_region
      _
    $region5: #{fwd.1} parent=1 // pred_fallthru
      _
    // Predicated region
    $region6: #{fwd.1} parent=1 // pred_check
      _
    $region7: #{fwd.1} parent=1 // pred_check_branch
      %11 = sbr.rel (0) target = $region9
    $region8: #{fwd.1} parent=1 // pred_region
      %13 = vsyncadd [#allocation5], 0
      %s14 = sshll.u32 %s1, 4
      %s15 = int_to_ptr.hbm [resolvable:$true] %s14
      %s16 = sshll.u32 [#allocation4], 4
      %s17 = int_to_ptr.vmem [resolvable:$true] %s16
      %22 = dma.hbm_to_vmem [thread:$0]  %s15, 26240, %s17, [#allocation5], 128, 128, 8
    $region9: #{fwd.1} parent=1 // pred_fallthru
      _
    // Predicated region
    $region10: #{fwd.1} parent=1 // pred_check
      _
    $region11: #{fwd.1} parent=1 // pred_check_branch
      %24 = sbr.rel (0) target = $region13
    $region12: #{fwd.1} parent=1 // pred_region
      %26 = dma.done [#allocation5], 26240
    $region13: #{fwd.1} parent=1 // pred_fallthru
      _
    %v27 = vld [vmem:[%s0] sm:$0xff]
    %v28 = vld [vmem:[%s0 + $0x8] sm:$0xff]
    %v29 = vld [vmem:[%s0 + $0x10] sm:$0xff]
    %v30 = vld [vmem:[%s0 + $0x18] sm:$0xff]
    %v31 = vld [vmem:[%s0 + $0x20] sm:$0xff]
    %v32 = vld [vmem:[#allocation4] sm:$0xff]
    %v33 = vld [vmem:[#allocation4 + $0x8] sm:$0xff]
    %v34 = vld [vmem:[#allocation4 + $0x10] sm:$0xff]
    %v35 = vld [vmem:[#allocation4 + $0x18] sm:$0xff]
    %v36 = vld [vmem:[#allocation4 + $0x20] sm:$0xff]
    %v37 = vadd.f32 %v27, %v32
    %v38 = vadd.f32 %v28, %v33
    %v39 = vadd.f32 %v29, %v34
    %v40 = vadd.f32 %v30, %v35
    %v41 = vadd.f32 %v31, %v36
    %vm42 = vcmask 261120
    %43 = vst.msk [vmem:[#allocation2] sm:$0xff] %vm42, %v37
    %44 = vst.msk [vmem:[#allocation2 + $0x8] sm:$0xff] %vm42, %v38
    %45 = vst.msk [vmem:[#allocation2 + $0x10] sm:$0xff] %vm42, %v39
    %46 = vst.msk [vmem:[#allocation2 + $0x18] sm:$0xff] %vm42, %v40
    %47 = vst.msk [vmem:[#allocation2 + $0x20] sm:$0xff] %vm42, %v41
    %v48 = vld [vmem:[#allocation4 + $0x28] sm:$0xff]
    %v49 = vld [vmem:[#allocation4 + $0x30] sm:$0xff]
    %v50 = vld [vmem:[#allocation4 + $0x38] sm:$0xff]
    %v51 = vld [vmem:[#allocation4 + $0x40] sm:$0xff]
    %v52 = vld [vmem:[#allocation4 + $0x48] sm:$0xff]
    %v53 = vld [vmem:[#allocation4 + $0x50] sm:$0xff]
    %v54 = vld [vmem:[#allocation4 + $0x58] sm:$0xff]
    %v55 = vld [vmem:[#allocation4 + $0x60] sm:$0xff]
    %v56 = vld [vmem:[#allocation4 + $0x68] sm:$0xff]
    %v57 = vld [vmem:[#allocation4 + $0x70] sm:$0xff]
    %v58 = vld [vmem:[#allocation4 + $0x78] sm:$0xff]
    %v59 = vld [vmem:[#allocation4 + $0x80] sm:$0xff]
    %v60 = vld [vmem:[#allocation4 + $0x88] sm:$0xff]
    %v61 = vld [vmem:[#allocation4 + $0x90] sm:$0xff]
    %v62 = vld [vmem:[#allocation4 + $0x98] sm:$0xff]
    %v63 = vld [vmem:[#allocation4 + $0xa0] sm:$0xff]
    %v64 = vld [vmem:[#allocation4 + $0xa8] sm:$0xff]
    %v65 = vld [vmem:[#allocation4 + $0xb0] sm:$0xff]
    %v66 = vld [vmem:[#allocation4 + $0xb8] sm:$0xff]
    %v67 = vld [vmem:[#allocation4 + $0xc0] sm:$0xff]
    %v68 = vld [vmem:[#allocation4 + $0xc8] sm:$0xff]
    %v69 = vld [vmem:[#allocation4 + $0xd0] sm:$0xff]
    %v70 = vld [vmem:[#allocation4 + $0xd8] sm:$0xff]
    %v71 = vld [vmem:[#allocation4 + $0xe0] sm:$0xff]
    %v72 = vld [vmem:[#allocation4 + $0xe8] sm:$0xff]
    %v73 = vld [vmem:[#allocation4 + $0xf0] sm:$0xff]
    %v74 = vld [vmem:[#allocation4 + $0xf8] sm:$0xff]
    %v75 = vld [vmem:[#allocation4 + $0x100] sm:$0xff]
    %v76 = vld [vmem:[#allocation4 + $0x108] sm:$0xff]
    %v77 = vld [vmem:[#allocation4 + $0x110] sm:$0xff]
    %v78 = vld [vmem:[#allocation4 + $0x118] sm:$0xff]
    %v79 = vld [vmem:[#allocation4 + $0x120] sm:$0xff]
    %v80 = vld [vmem:[#allocation4 + $0x128] sm:$0xff]
    %v81 = vld [vmem:[#allocation4 + $0x130] sm:$0xff]
    %v82 = vld [vmem:[#allocation4 + $0x138] sm:$0xff]
    %v83 = vld [vmem:[#allocation4 + $0x140] sm:$0xff]
    %v84 = vld [vmem:[#allocation4 + $0x148] sm:$0xff]
    %v85 = vld [vmem:[#allocation4 + $0x150] sm:$0xff]
    %v86 = vld [vmem:[#allocation4 + $0x158] sm:$0xff]
    %v87 = vld [vmem:[#allocation4 + $0x160] sm:$0xff]
    %v88 = vld [vmem:[#allocation4 + $0x168] sm:$0xff]
    %v89 = vld [vmem:[#allocation4 + $0x170] sm:$0xff]
    %v90 = vld [vmem:[#allocation4 + $0x178] sm:$0xff]
    %v91 = vld [vmem:[#allocation4 + $0x180] sm:$0xff]
    %v92 = vld [vmem:[#allocation4 + $0x188] sm:$0xff]
    %v93 = vld [vmem:[#allocation4 + $0x190] sm:$0xff]
    %v94 = vld [vmem:[#allocation4 + $0x198] sm:$0xff]
    %v95 = vld [vmem:[#allocation4 + $0x1a0] sm:$0xff]
    %v96 = vld [vmem:[#allocation4 + $0x1a8] sm:$0xff]
    %v97 = vld [vmem:[#allocation4 + $0x1b0] sm:$0xff]
    %v98 = vld [vmem:[#allocation4 + $0x1b8] sm:$0xff]
    %v99 = vld [vmem:[#allocation4 + $0x1c0] sm:$0xff]
    %v100 = vld [vmem:[#allocation4 + $0x1c8] sm:$0xff]
    %v101 = vld [vmem:[#allocation4 + $0x1d0] sm:$0xff]
    %v102 = vld [vmem:[#allocation4 + $0x1d8] sm:$0xff]
    %v103 = vld [vmem:[#allocation4 + $0x1e0] sm:$0xff]
    %v104 = vld [vmem:[#allocation4 + $0x1e8] sm:$0xff]
    %v105 = vld [vmem:[#allocation4 + $0x1f0] sm:$0xff]
    %v106 = vld [vmem:[#allocation4 + $0x1f8] sm:$0xff]
    %v107 = vld [vmem:[#allocation4 + $0x200] sm:$0xff]
    %v108 = vld [vmem:[#allocation4 + $0x208] sm:$0xff]
    %v109 = vld [vmem:[#allocation4 + $0x210] sm:$0xff]
    %v110 = vld [vmem:[#allocation4 + $0x218] sm:$0xff]
    %v111 = vld [vmem:[#allocation4 + $0x220] sm:$0xff]
    %v112 = vld [vmem:[#allocation4 + $0x228] sm:$0xff]
    %v113 = vld [vmem:[#allocation2] sm:$0xff]
    %v114 = vld [vmem:[#allocation2 + $0x8] sm:$0xff]
    %v115 = vld [vmem:[#allocation2 + $0x10] sm:$0xff]
    %v116 = vld [vmem:[#allocation2 + $0x18] sm:$0xff]
    %v117 = vld [vmem:[#allocation2 + $0x20] sm:$0xff]
    %v118 = vld [vmem:[#allocation4 + $0x238] sm:$0x1]
    %v119 = vld [vmem:[#allocation4 + $0x240] sm:$0x1]
    %v120 = vld [vmem:[#allocation4 + $0x328] sm:$0x1]
    %v121 = vld [vmem:[#allocation4 + $0x330] sm:$0x1]
    %v122 = vsel %vm42, %v113, 0.0
    %123 = vadd.xlane.f32.xlu0 %v122
    %v124 = vpop.xlane.xlu0 %123
    %v125 = vsel %vm42, %v114, 0.0
    %126 = vadd.xlane.f32.xlu0 %v125
    %v127 = vpop.xlane.xlu0 %126
    %v128 = vsel %vm42, %v115, 0.0
    %129 = vadd.xlane.f32.xlu0 %v128
    %v130 = vpop.xlane.xlu0 %129
    %v131 = vsel %vm42, %v116, 0.0
    %132 = vadd.xlane.f32.xlu0 %v131
    %v133 = vpop.xlane.xlu0 %132
    %v134 = vsel %vm42, %v117, 0.0
    %135 = vadd.xlane.f32.xlu0 %v134
    %v136 = vpop.xlane.xlu0 %135
    %v137 = vrcp.pop 32.0
    %v138 = vmul.f32 32.0, %v137
    %v139 = vsub.f32 1.0, %v138
    %v140 = vmul.f32 %v137, %v139
    %v141 = vadd.f32 %v137, %v140
    %vm142 = vweird.f32 %v137
    %v143 = vsel %vm142, %v137, %v141
    %v144 = vmul.f32 %v124, %v143
    %v145 = vmul.f32 %v127, %v143
    %v146 = vmul.f32 %v130, %v143
    %v147 = vmul.f32 %v133, %v143
    %v148 = vmul.f32 %v136, %v143
    %v149 = vsub.f32 %v113, %v144
    %v150 = vsub.f32 %v114, %v145
    %v151 = vsub.f32 %v115, %v146
    %v152 = vsub.f32 %v116, %v147
    %v153 = vsub.f32 %v117, %v148
    %v154 = vmul.f32 %v149, %v149
    %v155 = vmul.f32 %v150, %v150
    %v156 = vmul.f32 %v151, %v151
    %v157 = vmul.f32 %v152, %v152
    %v158 = vmul.f32 %v153, %v153
    %v159 = vsel %vm42, %v154, 0.0
    %160 = vadd.xlane.f32.xlu0 %v159
    %v161 = vpop.xlane.xlu0 %160
    %v162 = vsel %vm42, %v155, 0.0
    %163 = vadd.xlane.f32.xlu0 %v162
    %v164 = vpop.xlane.xlu0 %163
    %v165 = vsel %vm42, %v156, 0.0
    %166 = vadd.xlane.f32.xlu0 %v165
    %v167 = vpop.xlane.xlu0 %166
    %v168 = vsel %vm42, %v157, 0.0
    %169 = vadd.xlane.f32.xlu0 %v168
    %v170 = vpop.xlane.xlu0 %169
    %v171 = vsel %vm42, %v158, 0.0
    %172 = vadd.xlane.f32.xlu0 %v171
    %v173 = vpop.xlane.xlu0 %172
    %v174 = vmul.f32 %v161, %v143
    %v175 = vmul.f32 %v164, %v143
    %v176 = vmul.f32 %v167, %v143
    %v177 = vmul.f32 %v170, %v143
    %v178 = vmul.f32 %v173, %v143
    %v179 = vadd.f32 %v174, 1e-05
    %v180 = vadd.f32 %v175, 1e-05
    %v181 = vadd.f32 %v176, 1e-05
    %v182 = vadd.f32 %v177, 1e-05
    %v183 = vadd.f32 %v178, 1e-05
    %v184 = vrsqrt.pop %v179
    %v185 = vmul.f32 %v184, %v179
    %v186 = vmul.f32 %v185, %v184
    %v187 = vmul.f32 0.5, %v186
    %v188 = vsub.f32 1.5, %v187
    %v189 = vmul.f32 %v184, %v188
    %vm190 = vweird.f32 %v179
    %vm191 = vweird.f32 %v184
    %vm192 = vmor %vm190, %vm191
    %v193 = vsel %vm192, %v184, %v189
    %v194 = vrsqrt.pop %v180
    %v195 = vmul.f32 %v194, %v180
    %v196 = vmul.f32 %v195, %v194
    %v197 = vmul.f32 0.5, %v196
    %v198 = vsub.f32 1.5, %v197
    %v199 = vmul.f32 %v194, %v198
    %vm200 = vweird.f32 %v180
    %vm201 = vweird.f32 %v194
    %vm202 = vmor %vm200, %vm201
    %v203 = vsel %vm202, %v194, %v199
    %v204 = vrsqrt.pop %v181
    %v205 = vmul.f32 %v204, %v181
    %v206 = vmul.f32 %v205, %v204
    %v207 = vmul.f32 0.5, %v206
    %v208 = vsub.f32 1.5, %v207
    %v209 = vmul.f32 %v204, %v208
    %vm210 = vweird.f32 %v181
    %vm211 = vweird.f32 %v204
    %vm212 = vmor %vm210, %vm211
    %v213 = vsel %vm212, %v204, %v209
    %v214 = vrsqrt.pop %v182
    %v215 = vmul.f32 %v214, %v182
    %v216 = vmul.f32 %v215, %v214
    %v217 = vmul.f32 0.5, %v216
    %v218 = vsub.f32 1.5, %v217
    %v219 = vmul.f32 %v214, %v218
    %vm220 = vweird.f32 %v182
    %vm221 = vweird.f32 %v214
    %vm222 = vmor %vm220, %vm221
    %v223 = vsel %vm222, %v214, %v219
    %v224 = vrsqrt.pop %v183
    %v225 = vmul.f32 %v224, %v183
    %v226 = vmul.f32 %v225, %v224
    %v227 = vmul.f32 0.5, %v226
    %v228 = vsub.f32 1.5, %v227
    %v229 = vmul.f32 %v224, %v228
    %vm230 = vweird.f32 %v183
    %vm231 = vweird.f32 %v224
    %vm232 = vmor %vm230, %vm231
    %v233 = vsel %vm232, %v224, %v229
    %v234 = vmul.f32 %v149, %v193
    %v235 = vmul.f32 %v150, %v203
    %v236 = vmul.f32 %v151, %v213
    %v237 = vmul.f32 %v152, %v223
    %v238 = vmul.f32 %v153, %v233
    %v239 = vperm.slane %v118, 0
    %v240 = vmul.f32 %v234, %v239
    %v241 = vmul.f32 %v235, %v239
    %v242 = vperm.slane %v119, 0
    %v243 = vadd.f32 %v240, %v242
    %v244 = vadd.f32 %v241, %v242
    %v245 = vperm.slane %v120, 0
    %v246 = vmul.f32 %v236, %v245
    %v247 = vmul.f32 %v237, %v245
    %v248 = vmul.f32 %v238, %v245
    %v249 = vperm.slane %v121, 0
    %v250 = vadd.f32 %v246, %v249
    %v251 = vadd.f32 %v247, %v249
    %v252 = vadd.f32 %v248, %v249
    %v253 = vld [vmem:[#allocation4 + $0x248] sm:$0xff]
    %v254 = vld [vmem:[#allocation4 + $0x250] sm:$0xff]
    %v255 = vld [vmem:[#allocation4 + $0x258] sm:$0xff]
    %v256 = vld [vmem:[#allocation4 + $0x260] sm:$0xff]
    %v257 = vld [vmem:[#allocation4 + $0x268] sm:$0x1]
    %v258 = vperm.slane %v257, 0
    %v260 = vsel %vm42, %v243, 0
    %v263 = vsel %vm42, %v244, 0
    %265 = vmatpush.msra.mxu0 0.0
    %266 = vmatpush.msra.mxu0 0.0
    %267 = vmatpush.msra.mxu0 0.0
    %268 = vmatpush.msra.mxu0 0.0
    %269 = vmatpush.msra.mxu0 0.0
    %270 = vmatpush.msra.mxu0 0.0
    %271 = vmatpush.msra.mxu0 0.0
    %272 = vmatpush.msra.mxu0 0.0
    %273 = vmatpush.msra.mxu0 0.0
    %274 = vmatpush.msra.mxu0 0.0
    %275 = vmatpush.msra.mxu0 0.0
    %276 = vmatpush.msra.mxu0 0.0
    %277 = vmatpush.msra.mxu0 %v256
    %278 = vmatpush.msra.mxu0 %v255
    %279 = vmatpush.msra.mxu0 %v254
    %280 = vmatpush.msra.mxu0 %v253
    %281 = vmatmul.f32.gmra.mxu0 %v260
    %v282 = vpop.f32.mrf.mxu0
    %v283 = vadd.f32 %v258, %v282
    %284 = vmatmul.f32.gmra.mxu0 %v263
    %v285 = vpop.f32.mrf.mxu0
    %v286 = vadd.f32 %v258, %v285
    %287 = vdwg.mxu0
    %v288 = vld [vmem:[#allocation4 + $0x338] sm:$0xff]
    %v289 = vld [vmem:[#allocation4 + $0x340] sm:$0xff]
    %v290 = vld [vmem:[#allocation4 + $0x348] sm:$0xff]
    %v291 = vld [vmem:[#allocation4 + $0x350] sm:$0xff]
    %v292 = vld [vmem:[#allocation4 + $0x358] sm:$0x1]
    %v293 = vperm.slane %v292, 0
    %v295 = vsel %vm42, %v250, 0
    %v298 = vsel %vm42, %v251, 0
    %v301 = vsel %vm42, %v252, 0
    %303 = vmatpush.msra.mxu0 0.0
    %304 = vmatpush.msra.mxu0 0.0
    %305 = vmatpush.msra.mxu0 0.0
    %306 = vmatpush.msra.mxu0 0.0
    %307 = vmatpush.msra.mxu0 0.0
    %308 = vmatpush.msra.mxu0 0.0
    %309 = vmatpush.msra.mxu0 0.0
    %310 = vmatpush.msra.mxu0 0.0
    %311 = vmatpush.msra.mxu0 0.0
    %312 = vmatpush.msra.mxu0 0.0
    %313 = vmatpush.msra.mxu0 0.0
    %314 = vmatpush.msra.mxu0 0.0
    %315 = vmatpush.msra.mxu0 %v291
    %316 = vmatpush.msra.mxu0 %v290
    %317 = vmatpush.msra.mxu0 %v289
    %318 = vmatpush.msra.mxu0 %v288
    %319 = vmatmul.f32.gmra.mxu0 %v295
    %v320 = vpop.f32.mrf.mxu0
    %v321 = vadd.f32 %v293, %v320
    %322 = vmatmul.f32.gmra.mxu0 %v298
    %v323 = vpop.f32.mrf.mxu0
    %v324 = vadd.f32 %v293, %v323
    %325 = vmatmul.f32.gmra.mxu0 %v301
    %v326 = vpop.f32.mrf.mxu0
    %v327 = vadd.f32 %v293, %v326
    %328 = vdwg.mxu0
    %v329 = vld [vmem:[#allocation4 + $0x270] sm:$0xff]
    %v330 = vld [vmem:[#allocation4 + $0x278] sm:$0xff]
    %v331 = vld [vmem:[#allocation4 + $0x280] sm:$0xff]
    %v332 = vld [vmem:[#allocation4 + $0x288] sm:$0xff]
    %v333 = vld [vmem:[#allocation4 + $0x290] sm:$0x1]
    %vm334 = vcmask 130048
    %v336 = vsel %vm334, %v68, 0
    %v339 = vsel %vm334, %v69, 0
    %v342 = vsel %vm334, %v70, 0
    %v345 = vsel %vm334, %v71, 0
    %v348 = vsel %vm334, %v72, 0
    %v351 = vsel %vm334, %v73, 0
    %v354 = vsel %vm334, %v74, 0
    %v357 = vsel %vm334, %v75, 0
    %359 = vmatpush.msra.mxu0 0.0
    %360 = vmatpush.msra.mxu0 0.0
    %361 = vmatpush.msra.mxu0 0.0
    %362 = vmatpush.msra.mxu0 0.0
    %363 = vmatpush.msra.mxu0 0.0
    %364 = vmatpush.msra.mxu0 0.0
    %365 = vmatpush.msra.mxu0 0.0
    %366 = vmatpush.msra.mxu0 0.0
    %367 = vmatpush.msra.mxu0 0.0
    %368 = vmatpush.msra.mxu0 0.0
    %369 = vmatpush.msra.mxu0 0.0
    %370 = vmatpush.msra.mxu0 0.0
    %371 = vmatpush.msra.mxu0 0.0
    %372 = vmatpush.msra.mxu0 0.0
    %373 = vmatpush.msra.mxu0 %v286
    %374 = vmatpush.msra.mxu0 %v283
    %375 = vmatmul.f32.gmra.mxu0 %v336
    %v376 = vpop.f32.mrf.mxu0
    %v377 = vadd.f32 0.0, %v376
    %378 = vmatmul.f32.gmra.mxu0 %v339
    %v379 = vpop.f32.mrf.mxu0
    %v380 = vadd.f32 0.0, %v379
    %381 = vmatmul.f32.gmra.mxu0 %v342
    %v382 = vpop.f32.mrf.mxu0
    %v383 = vadd.f32 0.0, %v382
    %384 = vmatmul.f32.gmra.mxu0 %v345
    %v385 = vpop.f32.mrf.mxu0
    %v386 = vadd.f32 0.0, %v385
    %387 = vmatmul.f32.gmra.mxu0 %v348
    %v388 = vpop.f32.mrf.mxu0
    %v389 = vadd.f32 0.0, %v388
    %390 = vmatmul.f32.gmra.mxu0 %v351
    %v391 = vpop.f32.mrf.mxu0
    %v392 = vadd.f32 0.0, %v391
    %393 = vmatmul.f32.gmra.mxu0 %v354
    %v394 = vpop.f32.mrf.mxu0
    %v395 = vadd.f32 0.0, %v394
    %396 = vmatmul.f32.gmra.mxu0 %v357
    %v397 = vpop.f32.mrf.mxu0
    %v398 = vadd.f32 0.0, %v397
    %399 = vdwg.mxu0
    %v400 = vmul.f32 %v377, %v48
    %v401 = vmul.f32 %v380, %v49
    %v402 = vmul.f32 %v383, %v50
    %v403 = vmul.f32 %v386, %v51
    %v404 = vmul.f32 %v389, %v52
    %v405 = vmul.f32 %v392, %v53
    %v406 = vmul.f32 %v395, %v54
    %v407 = vmul.f32 %v398, %v55
    %411 = vrot.lane.b32.xlu0 %v321, 96
    %v412 = vpop.permute.xlu0 %411
    %413 = vrot.lane.b32.xlu0 %v324, 96
    %v414 = vpop.permute.xlu0 %413
    %415 = vrot.lane.b32.xlu0 %v327, 96
    %v416 = vpop.permute.xlu0 %415
    %v418 = vsel %vm42, %v400, 0
    %v421 = vsel %vm42, %v401, 0
    %v424 = vsel %vm42, %v402, 0
    %v427 = vsel %vm42, %v403, 0
    %v430 = vsel %vm42, %v404, 0
    %v433 = vsel %vm42, %v405, 0
    %v436 = vsel %vm42, %v406, 0
    %v439 = vsel %vm42, %v407, 0
    %v441 = vsel %vm42, %v412, 0
    %v443 = vsel %vm42, %v414, 0
    %v445 = vsel %vm42, %v416, 0
    %447 = vmatpush.xpose.msra.mxu0 0.0
    %448 = vmatpush.xpose.msra.mxu0 0.0
    %449 = vmatpush.xpose.msra.mxu0 0.0
    %450 = vmatpush.xpose.msra.mxu0 0.0
    %451 = vmatpush.xpose.msra.mxu0 0.0
    %452 = vmatpush.xpose.msra.mxu0 0.0
    %453 = vmatpush.xpose.msra.mxu0 0.0
    %454 = vmatpush.xpose.msra.mxu0 0.0
    %455 = vmatpush.xpose.msra.mxu0 0.0
    %456 = vmatpush.xpose.msra.mxu0 0.0
    %457 = vmatpush.xpose.msra.mxu0 0.0
    %458 = vmatpush.xpose.msra.mxu0 0.0
    %459 = vmatpush.xpose.msra.mxu0 0.0
    %460 = vmatpush.xpose.msra.mxu0 %v445
    %461 = vmatpush.xpose.msra.mxu0 %v443
    %462 = vmatpush.xpose.msra.mxu0 %v441
    %463 = vmatmul.f32.gmra.mxu0 %v418
    %v464 = vpop.f32.mrf.mxu0
    %v465 = vadd.f32 0.0, %v464
    %466 = vmatmul.f32.gmra.mxu0 %v421
    %v467 = vpop.f32.mrf.mxu0
    %v468 = vadd.f32 0.0, %v467
    %469 = vmatmul.f32.gmra.mxu0 %v424
    %v470 = vpop.f32.mrf.mxu0
    %v471 = vadd.f32 0.0, %v470
    %472 = vmatmul.f32.gmra.mxu0 %v427
    %v473 = vpop.f32.mrf.mxu0
    %v474 = vadd.f32 0.0, %v473
    %475 = vmatmul.f32.gmra.mxu0 %v430
    %v476 = vpop.f32.mrf.mxu0
    %v477 = vadd.f32 0.0, %v476
    %478 = vmatmul.f32.gmra.mxu0 %v433
    %v479 = vpop.f32.mrf.mxu0
    %v480 = vadd.f32 0.0, %v479
    %481 = vmatmul.f32.gmra.mxu0 %v436
    %v482 = vpop.f32.mrf.mxu0
    %v483 = vadd.f32 0.0, %v482
    %484 = vmatmul.f32.gmra.mxu0 %v439
    %v485 = vpop.f32.mrf.mxu0
    %v486 = vadd.f32 0.0, %v485
    %487 = vdwg.mxu0
    %v488 = vmul.f32 %v465, 0.35355338
    %v489 = vmul.f32 %v468, 0.35355338
    %v490 = vmul.f32 %v471, 0.35355338
    %v491 = vmul.f32 %v474, 0.35355338
    %v492 = vmul.f32 %v477, 0.35355338
    %v493 = vmul.f32 %v480, 0.35355338
    %v494 = vmul.f32 %v483, 0.35355338
    %v495 = vmul.f32 %v486, 0.35355338
    %v496 = vadd.f32 %v488, %v93
    %v497 = vadd.f32 %v489, %v94
    %v498 = vadd.f32 %v490, %v95
    %v499 = vadd.f32 %v491, %v96
    %v500 = vadd.f32 %v492, %v97
    %v501 = vadd.f32 %v493, %v98
    %v502 = vadd.f32 %v494, %v99
    %v503 = vadd.f32 %v495, %v100
    %vm504 = vcmask 195584
    %v505 = vsel %vm504, %v496, -inf
    %506 = vmax.xlane.f32.xlu0 %v505
    %v507 = vpop.xlane.xlu0 %506
    %v508 = vsel %vm504, %v497, -inf
    %509 = vmax.xlane.f32.xlu0 %v508
    %v510 = vpop.xlane.xlu0 %509
    %v511 = vsel %vm504, %v498, -inf
    %512 = vmax.xlane.f32.xlu0 %v511
    %v513 = vpop.xlane.xlu0 %512
    %v514 = vsel %vm504, %v499, -inf
    %515 = vmax.xlane.f32.xlu0 %v514
    %v516 = vpop.xlane.xlu0 %515
    %v517 = vsel %vm504, %v500, -inf
    %518 = vmax.xlane.f32.xlu0 %v517
    %v519 = vpop.xlane.xlu0 %518
    %v520 = vsel %vm504, %v501, -inf
    %521 = vmax.xlane.f32.xlu0 %v520
    %v522 = vpop.xlane.xlu0 %521
    %v523 = vsel %vm504, %v502, -inf
    %524 = vmax.xlane.f32.xlu0 %v523
    %v525 = vpop.xlane.xlu0 %524
    %v526 = vsel %vm504, %v503, -inf
    %527 = vmax.xlane.f32.xlu0 %v526
    %v528 = vpop.xlane.xlu0 %527
    %v529 = vsub.f32 %v496, %v507
    %v530 = vsub.f32 %v497, %v510
    %v531 = vsub.f32 %v498, %v513
    %v532 = vsub.f32 %v499, %v516
    %v533 = vsub.f32 %v500, %v519
    %v534 = vsub.f32 %v501, %v522
    %v535 = vsub.f32 %v502, %v525
    %v536 = vsub.f32 %v503, %v528
    %v537 = vmul.f32 %v529, 1.442695
    %v538 = vpow.pop %v537
    %v539 = vmul.f32 %v530, 1.442695
    %v540 = vpow.pop %v539
    %v541 = vmul.f32 %v531, 1.442695
    %v542 = vpow.pop %v541
    %v543 = vmul.f32 %v532, 1.442695
    %v544 = vpow.pop %v543
    %v545 = vmul.f32 %v533, 1.442695
    %v546 = vpow.pop %v545
    %v547 = vmul.f32 %v534, 1.442695
    %v548 = vpow.pop %v547
    %v549 = vmul.f32 %v535, 1.442695
    %v550 = vpow.pop %v549
    %v551 = vmul.f32 %v536, 1.442695
    %v552 = vpow.pop %v551
    %v553 = vsel %vm504, %v538, 0.0
    %554 = vadd.xlane.f32.xlu0 %v553
    %v555 = vpop.xlane.xlu0 %554
    %v556 = vsel %vm504, %v540, 0.0
    %557 = vadd.xlane.f32.xlu0 %v556
    %v558 = vpop.xlane.xlu0 %557
    %v559 = vsel %vm504, %v542, 0.0
    %560 = vadd.xlane.f32.xlu0 %v559
    %v561 = vpop.xlane.xlu0 %560
    %v562 = vsel %vm504, %v544, 0.0
    %563 = vadd.xlane.f32.xlu0 %v562
    %v564 = vpop.xlane.xlu0 %563
    %v565 = vsel %vm504, %v546, 0.0
    %566 = vadd.xlane.f32.xlu0 %v565
    %v567 = vpop.xlane.xlu0 %566
    %v568 = vsel %vm504, %v548, 0.0
    %569 = vadd.xlane.f32.xlu0 %v568
    %v570 = vpop.xlane.xlu0 %569
    %v571 = vsel %vm504, %v550, 0.0
    %572 = vadd.xlane.f32.xlu0 %v571
    %v573 = vpop.xlane.xlu0 %572
    %v574 = vsel %vm504, %v552, 0.0
    %575 = vadd.xlane.f32.xlu0 %v574
    %v576 = vpop.xlane.xlu0 %575
    %v577 = vrcp.pop %v555
    %v578 = vrcp.pop %v558
    %v579 = vrcp.pop %v561
    %v580 = vrcp.pop %v564
    %v581 = vrcp.pop %v567
    %v582 = vrcp.pop %v570
    %v583 = vrcp.pop %v573
    %v584 = vrcp.pop %v576
    %v585 = vmul.f32 %v538, %v577
    %v586 = vmul.f32 %v540, %v578
    %v587 = vmul.f32 %v542, %v579
    %v588 = vmul.f32 %v544, %v580
    %v589 = vmul.f32 %v546, %v581
    %v590 = vmul.f32 %v548, %v582
    %v591 = vmul.f32 %v550, %v583
    %v592 = vmul.f32 %v552, %v584
    %593 = vrot.lane.b32.xlu0 %v321, 64
    %v594 = vpop.permute.xlu0 %593
    %595 = vrot.lane.b32.xlu0 %v324, 64
    %v596 = vpop.permute.xlu0 %595
    %597 = vrot.lane.b32.xlu0 %v327, 64
    %v598 = vpop.permute.xlu0 %597
    %v603 = vsel %vm504, %v585, 0
    %v606 = vsel %vm504, %v586, 0
    %v609 = vsel %vm504, %v587, 0
    %v612 = vsel %vm504, %v588, 0
    %v615 = vsel %vm504, %v589, 0
    %v618 = vsel %vm504, %v590, 0
    %v621 = vsel %vm504, %v591, 0
    %v624 = vsel %vm504, %v592, 0
    %626 = vmatpush.msra.mxu0 0.0
    %627 = vmatpush.msra.mxu0 0.0
    %628 = vmatpush.msra.mxu0 0.0
    %629 = vmatpush.msra.mxu0 0.0
    %630 = vmatpush.msra.mxu0 0.0
    %631 = vmatpush.msra.mxu0 0.0
    %632 = vmatpush.msra.mxu0 0.0
    %633 = vmatpush.msra.mxu0 0.0
    %634 = vmatpush.msra.mxu0 0.0
    %635 = vmatpush.msra.mxu0 0.0
    %636 = vmatpush.msra.mxu0 0.0
    %637 = vmatpush.msra.mxu0 0.0
    %638 = vmatpush.msra.mxu0 0.0
    %639 = vmatpush.msra.mxu0 %v598
    %640 = vmatpush.msra.mxu0 %v596
    %641 = vmatpush.msra.mxu0 %v594
    %642 = vmatmul.f32.gmra.mxu0 %v603
    %v643 = vpop.f32.mrf.mxu0
    %v644 = vadd.f32 0.0, %v643
    %645 = vmatmul.f32.gmra.mxu0 %v606
    %v646 = vpop.f32.mrf.mxu0
    %v647 = vadd.f32 0.0, %v646
    %648 = vmatmul.f32.gmra.mxu0 %v609
    %v649 = vpop.f32.mrf.mxu0
    %v650 = vadd.f32 0.0, %v649
    %651 = vmatmul.f32.gmra.mxu0 %v612
    %v652 = vpop.f32.mrf.mxu0
    %v653 = vadd.f32 0.0, %v652
    %654 = vmatmul.f32.gmra.mxu0 %v615
    %v655 = vpop.f32.mrf.mxu0
    %v656 = vadd.f32 0.0, %v655
    %657 = vmatmul.f32.gmra.mxu0 %v618
    %v658 = vpop.f32.mrf.mxu0
    %v659 = vadd.f32 0.0, %v658
    %660 = vmatmul.f32.gmra.mxu0 %v621
    %v661 = vpop.f32.mrf.mxu0
    %v662 = vadd.f32 0.0, %v661
    %663 = vmatmul.f32.gmra.mxu0 %v624
    %v664 = vpop.f32.mrf.mxu0
    %v665 = vadd.f32 0.0, %v664
    %666 = vdwg.mxu0
    %v667 = vmul.f32 %v644, %v48
    %v668 = vmul.f32 %v647, %v49
    %v669 = vmul.f32 %v650, %v50
    %v670 = vmul.f32 %v653, %v51
    %v671 = vmul.f32 %v656, %v52
    %v672 = vmul.f32 %v659, %v53
    %v673 = vmul.f32 %v662, %v54
    %v674 = vmul.f32 %v665, %v55
    %vm675 = vcmask 523264
    %v677 = vsel %vm675, %v76, 0
    %v680 = vsel %vm675, %v77, 0
    %682 = vmatpush.msra.mxu0 0.0
    %683 = vmatpush.msra.mxu0 0.0
    %684 = vmatpush.msra.mxu0 0.0
    %685 = vmatpush.msra.mxu0 0.0
    %686 = vmatpush.msra.mxu0 0.0
    %687 = vmatpush.msra.mxu0 0.0
    %688 = vmatpush.msra.mxu0 0.0
    %689 = vmatpush.msra.mxu0 0.0
    %690 = vmatpush.msra.mxu0 %v674
    %691 = vmatpush.msra.mxu0 %v673
    %692 = vmatpush.msra.mxu0 %v672
    %693 = vmatpush.msra.mxu0 %v671
    %694 = vmatpush.msra.mxu0 %v670
    %695 = vmatpush.msra.mxu0 %v669
    %696 = vmatpush.msra.mxu0 %v668
    %697 = vmatpush.msra.mxu0 %v667
    %698 = vmatmul.f32.gmra.mxu0 %v677
    %v699 = vpop.f32.mrf.mxu0
    %v700 = vadd.f32 0.0, %v699
    %701 = vmatmul.f32.gmra.mxu0 %v680
    %v702 = vpop.f32.mrf.mxu0
    %v703 = vadd.f32 0.0, %v702
    %704 = vdwg.mxu0
    %v705 = vperm.slane %v333, 0
    %v707 = vsel %vm42, %v700, 0
    %v710 = vsel %vm42, %v703, 0
    %712 = vmatpush.msra.mxu0 0.0
    %713 = vmatpush.msra.mxu0 0.0
    %714 = vmatpush.msra.mxu0 0.0
    %715 = vmatpush.msra.mxu0 0.0
    %716 = vmatpush.msra.mxu0 0.0
    %717 = vmatpush.msra.mxu0 0.0
    %718 = vmatpush.msra.mxu0 0.0
    %719 = vmatpush.msra.mxu0 0.0
    %720 = vmatpush.msra.mxu0 0.0
    %721 = vmatpush.msra.mxu0 0.0
    %722 = vmatpush.msra.mxu0 0.0
    %723 = vmatpush.msra.mxu0 0.0
    %724 = vmatpush.msra.mxu0 %v332
    %725 = vmatpush.msra.mxu0 %v331
    %726 = vmatpush.msra.mxu0 %v330
    %727 = vmatpush.msra.mxu0 %v329
    %728 = vmatmul.f32.gmra.mxu0 %v707
    %v729 = vpop.f32.mrf.mxu0
    %v730 = vadd.f32 %v705, %v729
    %731 = vmatmul.f32.gmra.mxu0 %v710
    %v732 = vpop.f32.mrf.mxu0
    %v733 = vadd.f32 %v705, %v732
    %734 = vdwg.mxu0
    %v735 = vld [vmem:[#allocation4 + $0x360] sm:$0xff]
    %v736 = vld [vmem:[#allocation4 + $0x368] sm:$0xff]
    %v737 = vld [vmem:[#allocation4 + $0x370] sm:$0xff]
    %v738 = vld [vmem:[#allocation4 + $0x378] sm:$0xff]
    %v739 = vld [vmem:[#allocation4 + $0x380] sm:$0x1]
    %v741 = vsel %vm504, %v78, 0
    %v744 = vsel %vm504, %v79, 0
    %v747 = vsel %vm504, %v80, 0
    %v750 = vsel %vm504, %v81, 0
    %v753 = vsel %vm504, %v82, 0
    %v756 = vsel %vm504, %v83, 0
    %v759 = vsel %vm504, %v84, 0
    %v762 = vsel %vm504, %v85, 0
    %v765 = vsel %vm504, %v86, 0
    %v768 = vsel %vm504, %v87, 0
    %v771 = vsel %vm504, %v88, 0
    %v774 = vsel %vm504, %v89, 0
    %776 = vmatpush.msra.mxu0 0.0
    %777 = vmatpush.msra.mxu0 0.0
    %778 = vmatpush.msra.mxu0 0.0
    %779 = vmatpush.msra.mxu0 0.0
    %780 = vmatpush.msra.mxu0 0.0
    %781 = vmatpush.msra.mxu0 0.0
    %782 = vmatpush.msra.mxu0 0.0
    %783 = vmatpush.msra.mxu0 0.0
    %784 = vmatpush.msra.mxu0 0.0
    %785 = vmatpush.msra.mxu0 0.0
    %786 = vmatpush.msra.mxu0 0.0
    %787 = vmatpush.msra.mxu0 0.0
    %788 = vmatpush.msra.mxu0 0.0
    %789 = vmatpush.msra.mxu0 %v327
    %790 = vmatpush.msra.mxu0 %v324
    %791 = vmatpush.msra.mxu0 %v321
    %792 = vmatmul.f32.gmra.mxu0 %v741
    %v793 = vpop.f32.mrf.mxu0
    %v794 = vadd.f32 0.0, %v793
    %795 = vmatmul.f32.gmra.mxu0 %v744
    %v796 = vpop.f32.mrf.mxu0
    %v797 = vadd.f32 0.0, %v796
    %798 = vmatmul.f32.gmra.mxu0 %v747
    %v799 = vpop.f32.mrf.mxu0
    %v800 = vadd.f32 0.0, %v799
    %801 = vmatmul.f32.gmra.mxu0 %v750
    %v802 = vpop.f32.mrf.mxu0
    %v803 = vadd.f32 0.0, %v802
    %804 = vmatmul.f32.gmra.mxu0 %v753
    %v805 = vpop.f32.mrf.mxu0
    %v806 = vadd.f32 0.0, %v805
    %807 = vmatmul.f32.gmra.mxu0 %v756
    %v808 = vpop.f32.mrf.mxu0
    %v809 = vadd.f32 0.0, %v808
    %810 = vmatmul.f32.gmra.mxu0 %v759
    %v811 = vpop.f32.mrf.mxu0
    %v812 = vadd.f32 0.0, %v811
    %813 = vmatmul.f32.gmra.mxu0 %v762
    %v814 = vpop.f32.mrf.mxu0
    %v815 = vadd.f32 0.0, %v814
    %816 = vmatmul.f32.gmra.mxu0 %v765
    %v817 = vpop.f32.mrf.mxu0
    %v818 = vadd.f32 0.0, %v817
    %819 = vmatmul.f32.gmra.mxu0 %v768
    %v820 = vpop.f32.mrf.mxu0
    %v821 = vadd.f32 0.0, %v820
    %822 = vmatmul.f32.gmra.mxu0 %v771
    %v823 = vpop.f32.mrf.mxu0
    %v824 = vadd.f32 0.0, %v823
    %825 = vmatmul.f32.gmra.mxu0 %v774
    %v826 = vpop.f32.mrf.mxu0
    %v827 = vadd.f32 0.0, %v826
    %828 = vdwg.mxu0
    %v829 = vmul.f32 %v794, %v56
    %v830 = vmul.f32 %v797, %v57
    %v831 = vmul.f32 %v800, %v58
    %v832 = vmul.f32 %v803, %v59
    %v833 = vmul.f32 %v806, %v60
    %v834 = vmul.f32 %v809, %v61
    %v835 = vmul.f32 %v812, %v62
    %v836 = vmul.f32 %v815, %v63
    %v837 = vmul.f32 %v818, %v64
    %v838 = vmul.f32 %v821, %v65
    %v839 = vmul.f32 %v824, %v66
    %v840 = vmul.f32 %v827, %v67
    %843 = vrot.lane.b32.xlu0 %v283, 96
    %v844 = vpop.permute.xlu0 %843
    %845 = vrot.lane.b32.xlu0 %v286, 96
    %v846 = vpop.permute.xlu0 %845
    %v848 = vsel %vm42, %v829, 0
    %v851 = vsel %vm42, %v830, 0
    %v854 = vsel %vm42, %v831, 0
    %v857 = vsel %vm42, %v832, 0
    %v860 = vsel %vm42, %v833, 0
    %v863 = vsel %vm42, %v834, 0
    %v866 = vsel %vm42, %v835, 0
    %v869 = vsel %vm42, %v836, 0
    %v872 = vsel %vm42, %v837, 0
    %v875 = vsel %vm42, %v838, 0
    %v878 = vsel %vm42, %v839, 0
    %v881 = vsel %vm42, %v840, 0
    %v883 = vsel %vm42, %v844, 0
    %v885 = vsel %vm42, %v846, 0
    %887 = vmatpush.xpose.msra.mxu0 0.0
    %888 = vmatpush.xpose.msra.mxu0 0.0
    %889 = vmatpush.xpose.msra.mxu0 0.0
    %890 = vmatpush.xpose.msra.mxu0 0.0
    %891 = vmatpush.xpose.msra.mxu0 0.0
    %892 = vmatpush.xpose.msra.mxu0 0.0
    %893 = vmatpush.xpose.msra.mxu0 0.0
    %894 = vmatpush.xpose.msra.mxu0 0.0
    %895 = vmatpush.xpose.msra.mxu0 0.0
    %896 = vmatpush.xpose.msra.mxu0 0.0
    %897 = vmatpush.xpose.msra.mxu0 0.0
    %898 = vmatpush.xpose.msra.mxu0 0.0
    %899 = vmatpush.xpose.msra.mxu0 0.0
    %900 = vmatpush.xpose.msra.mxu0 0.0
    %901 = vmatpush.xpose.msra.mxu0 %v885
    %902 = vmatpush.xpose.msra.mxu0 %v883
    %903 = vmatmul.f32.gmra.mxu0 %v848
    %v904 = vpop.f32.mrf.mxu0
    %v905 = vadd.f32 0.0, %v904
    %906 = vmatmul.f32.gmra.mxu0 %v851
    %v907 = vpop.f32.mrf.mxu0
    %v908 = vadd.f32 0.0, %v907
    %909 = vmatmul.f32.gmra.mxu0 %v854
    %v910 = vpop.f32.mrf.mxu0
    %v911 = vadd.f32 0.0, %v910
    %912 = vmatmul.f32.gmra.mxu0 %v857
    %v913 = vpop.f32.mrf.mxu0
    %v914 = vadd.f32 0.0, %v913
    %915 = vmatmul.f32.gmra.mxu0 %v860
    %v916 = vpop.f32.mrf.mxu0
    %v917 = vadd.f32 0.0, %v916
    %918 = vmatmul.f32.gmra.mxu0 %v863
    %v919 = vpop.f32.mrf.mxu0
    %v920 = vadd.f32 0.0, %v919
    %921 = vmatmul.f32.gmra.mxu0 %v866
    %v922 = vpop.f32.mrf.mxu0
    %v923 = vadd.f32 0.0, %v922
    %924 = vmatmul.f32.gmra.mxu0 %v869
    %v925 = vpop.f32.mrf.mxu0
    %v926 = vadd.f32 0.0, %v925
    %927 = vmatmul.f32.gmra.mxu0 %v872
    %v928 = vpop.f32.mrf.mxu0
    %v929 = vadd.f32 0.0, %v928
    %930 = vmatmul.f32.gmra.mxu0 %v875
    %v931 = vpop.f32.mrf.mxu0
    %v932 = vadd.f32 0.0, %v931
    %933 = vmatmul.f32.gmra.mxu0 %v878
    %v934 = vpop.f32.mrf.mxu0
    %v935 = vadd.f32 0.0, %v934
    %936 = vmatmul.f32.gmra.mxu0 %v881
    %v937 = vpop.f32.mrf.mxu0
    %v938 = vadd.f32 0.0, %v937
    %939 = vdwg.mxu0
    %v940 = vmul.f32 %v905, 0.35355338
    %v941 = vmul.f32 %v908, 0.35355338
    %v942 = vmul.f32 %v911, 0.35355338
    %v943 = vmul.f32 %v914, 0.35355338
    %v944 = vmul.f32 %v917, 0.35355338
    %v945 = vmul.f32 %v920, 0.35355338
    %v946 = vmul.f32 %v923, 0.35355338
    %v947 = vmul.f32 %v926, 0.35355338
    %v948 = vmul.f32 %v929, 0.35355338
    %v949 = vmul.f32 %v932, 0.35355338
    %v950 = vmul.f32 %v935, 0.35355338
    %v951 = vmul.f32 %v938, 0.35355338
    %v952 = vadd.f32 %v940, %v101
    %v953 = vadd.f32 %v941, %v102
    %v954 = vadd.f32 %v942, %v103
    %v955 = vadd.f32 %v943, %v104
    %v956 = vadd.f32 %v944, %v105
    %v957 = vadd.f32 %v945, %v106
    %v958 = vadd.f32 %v946, %v107
    %v959 = vadd.f32 %v947, %v108
    %v960 = vadd.f32 %v948, %v109
    %v961 = vadd.f32 %v949, %v110
    %v962 = vadd.f32 %v950, %v111
    %v963 = vadd.f32 %v951, %v112
    %v964 = vsel %vm334, %v952, -inf
    %965 = vmax.xlane.f32.xlu0 %v964
    %v966 = vpop.xlane.xlu0 %965
    %v967 = vsel %vm334, %v953, -inf
    %968 = vmax.xlane.f32.xlu0 %v967
    %v969 = vpop.xlane.xlu0 %968
    %v970 = vsel %vm334, %v954, -inf
    %971 = vmax.xlane.f32.xlu0 %v970
    %v972 = vpop.xlane.xlu0 %971
    %v973 = vsel %vm334, %v955, -inf
    %974 = vmax.xlane.f32.xlu0 %v973
    %v975 = vpop.xlane.xlu0 %974
    %v976 = vsel %vm334, %v956, -inf
    %977 = vmax.xlane.f32.xlu0 %v976
    %v978 = vpop.xlane.xlu0 %977
    %v979 = vsel %vm334, %v957, -inf
    %980 = vmax.xlane.f32.xlu0 %v979
    %v981 = vpop.xlane.xlu0 %980
    %v982 = vsel %vm334, %v958, -inf
    %983 = vmax.xlane.f32.xlu0 %v982
    %v984 = vpop.xlane.xlu0 %983
    %v985 = vsel %vm334, %v959, -inf
    %986 = vmax.xlane.f32.xlu0 %v985
    %v987 = vpop.xlane.xlu0 %986
    %v988 = vsel %vm334, %v960, -inf
    %989 = vmax.xlane.f32.xlu0 %v988
    %v990 = vpop.xlane.xlu0 %989
    %v991 = vsel %vm334, %v961, -inf
    %992 = vmax.xlane.f32.xlu0 %v991
    %v993 = vpop.xlane.xlu0 %992
    %v994 = vsel %vm334, %v962, -inf
    %995 = vmax.xlane.f32.xlu0 %v994
    %v996 = vpop.xlane.xlu0 %995
    %v997 = vsel %vm334, %v963, -inf
    %998 = vmax.xlane.f32.xlu0 %v997
    %v999 = vpop.xlane.xlu0 %998
    %v1000 = vsub.f32 %v952, %v966
    %v1001 = vsub.f32 %v953, %v969
    %v1002 = vsub.f32 %v954, %v972
    %v1003 = vsub.f32 %v955, %v975
    %v1004 = vsub.f32 %v956, %v978
    %v1005 = vsub.f32 %v957, %v981
    %v1006 = vsub.f32 %v958, %v984
    %v1007 = vsub.f32 %v959, %v987
    %v1008 = vsub.f32 %v960, %v990
    %v1009 = vsub.f32 %v961, %v993
    %v1010 = vsub.f32 %v962, %v996
    %v1011 = vsub.f32 %v963, %v999
    %v1012 = vmul.f32 %v1000, 1.442695
    %v1013 = vpow.pop %v1012
    %v1014 = vmul.f32 %v1001, 1.442695
    %v1015 = vpow.pop %v1014
    %v1016 = vmul.f32 %v1002, 1.442695
    %v1017 = vpow.pop %v1016
    %v1018 = vmul.f32 %v1003, 1.442695
    %v1019 = vpow.pop %v1018
    %v1020 = vmul.f32 %v1004, 1.442695
    %v1021 = vpow.pop %v1020
    %v1022 = vmul.f32 %v1005, 1.442695
    %v1023 = vpow.pop %v1022
    %v1024 = vmul.f32 %v1006, 1.442695
    %v1025 = vpow.pop %v1024
    %v1026 = vmul.f32 %v1007, 1.442695
    %v1027 = vpow.pop %v1026
    %v1028 = vmul.f32 %v1008, 1.442695
    %v1029 = vpow.pop %v1028
    %v1030 = vmul.f32 %v1009, 1.442695
    %v1031 = vpow.pop %v1030
    %v1032 = vmul.f32 %v1010, 1.442695
    %v1033 = vpow.pop %v1032
    %v1034 = vmul.f32 %v1011, 1.442695
    %v1035 = vpow.pop %v1034
    %v1036 = vsel %vm334, %v1013, 0.0
    %1037 = vadd.xlane.f32.xlu0 %v1036
    %v1038 = vpop.xlane.xlu0 %1037
    %v1039 = vsel %vm334, %v1015, 0.0
    %1040 = vadd.xlane.f32.xlu0 %v1039
    %v1041 = vpop.xlane.xlu0 %1040
    %v1042 = vsel %vm334, %v1017, 0.0
    %1043 = vadd.xlane.f32.xlu0 %v1042
    %v1044 = vpop.xlane.xlu0 %1043
    %v1045 = vsel %vm334, %v1019, 0.0
    %1046 = vadd.xlane.f32.xlu0 %v1045
    %v1047 = vpop.xlane.xlu0 %1046
    %v1048 = vsel %vm334, %v1021, 0.0
    %1049 = vadd.xlane.f32.xlu0 %v1048
    %v1050 = vpop.xlane.xlu0 %1049
    %v1051 = vsel %vm334, %v1023, 0.0
    %1052 = vadd.xlane.f32.xlu0 %v1051
    %v1053 = vpop.xlane.xlu0 %1052
    %v1054 = vsel %vm334, %v1025, 0.0
    %1055 = vadd.xlane.f32.xlu0 %v1054
    %v1056 = vpop.xlane.xlu0 %1055
    %v1057 = vsel %vm334, %v1027, 0.0
    %1058 = vadd.xlane.f32.xlu0 %v1057
    %v1059 = vpop.xlane.xlu0 %1058
    %v1060 = vsel %vm334, %v1029, 0.0
    %1061 = vadd.xlane.f32.xlu0 %v1060
    %v1062 = vpop.xlane.xlu0 %1061
    %v1063 = vsel %vm334, %v1031, 0.0
    %1064 = vadd.xlane.f32.xlu0 %v1063
    %v1065 = vpop.xlane.xlu0 %1064
    %v1066 = vsel %vm334, %v1033, 0.0
    %1067 = vadd.xlane.f32.xlu0 %v1066
    %v1068 = vpop.xlane.xlu0 %1067
    %v1069 = vsel %vm334, %v1035, 0.0
    %1070 = vadd.xlane.f32.xlu0 %v1069
    %v1071 = vpop.xlane.xlu0 %1070
    %v1072 = vrcp.pop %v1038
    %v1073 = vrcp.pop %v1041
    %v1074 = vrcp.pop %v1044
    %v1075 = vrcp.pop %v1047
    %v1076 = vrcp.pop %v1050
    %v1077 = vrcp.pop %v1053
    %v1078 = vrcp.pop %v1056
    %v1079 = vrcp.pop %v1059
    %v1080 = vrcp.pop %v1062
    %v1081 = vrcp.pop %v1065
    %v1082 = vrcp.pop %v1068
    %v1083 = vrcp.pop %v1071
    %v1084 = vmul.f32 %v1013, %v1072
    %v1085 = vmul.f32 %v1015, %v1073
    %v1086 = vmul.f32 %v1017, %v1074
    %v1087 = vmul.f32 %v1019, %v1075
    %v1088 = vmul.f32 %v1021, %v1076
    %v1089 = vmul.f32 %v1023, %v1077
    %v1090 = vmul.f32 %v1025, %v1078
    %v1091 = vmul.f32 %v1027, %v1079
    %v1092 = vmul.f32 %v1029, %v1080
    %v1093 = vmul.f32 %v1031, %v1081
    %v1094 = vmul.f32 %v1033, %v1082
    %v1095 = vmul.f32 %v1035, %v1083
    %1096 = vrot.lane.b32.xlu0 %v283, 64
    %v1097 = vpop.permute.xlu0 %1096
    %1098 = vrot.lane.b32.xlu0 %v286, 64
    %v1099 = vpop.permute.xlu0 %1098
    %v1103 = vsel %vm334, %v1084, 0
    %v1106 = vsel %vm334, %v1085, 0
    %v1109 = vsel %vm334, %v1086, 0
    %v1112 = vsel %vm334, %v1087, 0
    %v1115 = vsel %vm334, %v1088, 0
    %v1118 = vsel %vm334, %v1089, 0
    %v1121 = vsel %vm334, %v1090, 0
    %v1124 = vsel %vm334, %v1091, 0
    %v1127 = vsel %vm334, %v1092, 0
    %v1130 = vsel %vm334, %v1093, 0
    %v1133 = vsel %vm334, %v1094, 0
    %v1136 = vsel %vm334, %v1095, 0
    %1138 = vmatpush.msra.mxu0 0.0
    %1139 = vmatpush.msra.mxu0 0.0
    %1140 = vmatpush.msra.mxu0 0.0
    %1141 = vmatpush.msra.mxu0 0.0
    %1142 = vmatpush.msra.mxu0 0.0
    %1143 = vmatpush.msra.mxu0 0.0
    %1144 = vmatpush.msra.mxu0 0.0
    %1145 = vmatpush.msra.mxu0 0.0
    %1146 = vmatpush.msra.mxu0 0.0
    %1147 = vmatpush.msra.mxu0 0.0
    %1148 = vmatpush.msra.mxu0 0.0
    %1149 = vmatpush.msra.mxu0 0.0
    %1150 = vmatpush.msra.mxu0 0.0
    %1151 = vmatpush.msra.mxu0 0.0
    %1152 = vmatpush.msra.mxu0 %v1099
    %1153 = vmatpush.msra.mxu0 %v1097
    %1154 = vmatmul.f32.gmra.mxu0 %v1103
    %v1155 = vpop.f32.mrf.mxu0
    %v1156 = vadd.f32 0.0, %v1155
    %1157 = vmatmul.f32.gmra.mxu0 %v1106
    %v1158 = vpop.f32.mrf.mxu0
    %v1159 = vadd.f32 0.0, %v1158
    %1160 = vmatmul.f32.gmra.mxu0 %v1109
    %v1161 = vpop.f32.mrf.mxu0
    %v1162 = vadd.f32 0.0, %v1161
    %1163 = vmatmul.f32.gmra.mxu0 %v1112
    %v1164 = vpop.f32.mrf.mxu0
    %v1165 = vadd.f32 0.0, %v1164
    %1166 = vmatmul.f32.gmra.mxu0 %v1115
    %v1167 = vpop.f32.mrf.mxu0
    %v1168 = vadd.f32 0.0, %v1167
    %1169 = vmatmul.f32.gmra.mxu0 %v1118
    %v1170 = vpop.f32.mrf.mxu0
    %v1171 = vadd.f32 0.0, %v1170
    %1172 = vmatmul.f32.gmra.mxu0 %v1121
    %v1173 = vpop.f32.mrf.mxu0
    %v1174 = vadd.f32 0.0, %v1173
    %1175 = vmatmul.f32.gmra.mxu0 %v1124
    %v1176 = vpop.f32.mrf.mxu0
    %v1177 = vadd.f32 0.0, %v1176
    %1178 = vmatmul.f32.gmra.mxu0 %v1127
    %v1179 = vpop.f32.mrf.mxu0
    %v1180 = vadd.f32 0.0, %v1179
    %1181 = vmatmul.f32.gmra.mxu0 %v1130
    %v1182 = vpop.f32.mrf.mxu0
    %v1183 = vadd.f32 0.0, %v1182
    %1184 = vmatmul.f32.gmra.mxu0 %v1133
    %v1185 = vpop.f32.mrf.mxu0
    %v1186 = vadd.f32 0.0, %v1185
    %1187 = vmatmul.f32.gmra.mxu0 %v1136
    %v1188 = vpop.f32.mrf.mxu0
    %v1189 = vadd.f32 0.0, %v1188
    %1190 = vdwg.mxu0
    %v1191 = vmul.f32 %v1156, %v56
    %v1192 = vmul.f32 %v1159, %v57
    %v1193 = vmul.f32 %v1162, %v58
    %v1194 = vmul.f32 %v1165, %v59
    %v1195 = vmul.f32 %v1168, %v60
    %v1196 = vmul.f32 %v1171, %v61
    %v1197 = vmul.f32 %v1174, %v62
    %v1198 = vmul.f32 %v1177, %v63
    %v1199 = vmul.f32 %v1180, %v64
    %v1200 = vmul.f32 %v1183, %v65
    %v1201 = vmul.f32 %v1186, %v66
    %v1202 = vmul.f32 %v1189, %v67
    %vm1203 = vcmask 785408
    %v1205 = vsel %vm1203, %v90, 0
    %v1208 = vsel %vm1203, %v91, 0
    %v1211 = vsel %vm1203, %v92, 0
    %1213 = vmatpush.msra.mxu0 0.0
    %1214 = vmatpush.msra.mxu0 0.0
    %1215 = vmatpush.msra.mxu0 0.0
    %1216 = vmatpush.msra.mxu0 0.0
    %1217 = vmatpush.msra.mxu0 %v1202
    %1218 = vmatpush.msra.mxu0 %v1201
    %1219 = vmatpush.msra.mxu0 %v1200
    %1220 = vmatpush.msra.mxu0 %v1199
    %1221 = vmatpush.msra.mxu0 %v1198
    %1222 = vmatpush.msra.mxu0 %v1197
    %1223 = vmatpush.msra.mxu0 %v1196
    %1224 = vmatpush.msra.mxu0 %v1195
    %1225 = vmatpush.msra.mxu0 %v1194
    %1226 = vmatpush.msra.mxu0 %v1193
    %1227 = vmatpush.msra.mxu0 %v1192
    %1228 = vmatpush.msra.mxu0 %v1191
    %1229 = vmatmul.f32.gmra.mxu0 %v1205
    %v1230 = vpop.f32.mrf.mxu0
    %v1231 = vadd.f32 0.0, %v1230
    %1232 = vmatmul.f32.gmra.mxu0 %v1208
    %v1233 = vpop.f32.mrf.mxu0
    %v1234 = vadd.f32 0.0, %v1233
    %1235 = vmatmul.f32.gmra.mxu0 %v1211
    %v1236 = vpop.f32.mrf.mxu0
    %v1237 = vadd.f32 0.0, %v1236
    %1238 = vdwg.mxu0
    %v1239 = vperm.slane %v739, 0
    %v1241 = vsel %vm42, %v1231, 0
    %v1244 = vsel %vm42, %v1234, 0
    %v1247 = vsel %vm42, %v1237, 0
    %1249 = vmatpush.msra.mxu0 0.0
    %1250 = vmatpush.msra.mxu0 0.0
    %1251 = vmatpush.msra.mxu0 0.0
    %1252 = vmatpush.msra.mxu0 0.0
    %1253 = vmatpush.msra.mxu0 0.0
    %1254 = vmatpush.msra.mxu0 0.0
    %1255 = vmatpush.msra.mxu0 0.0
    %1256 = vmatpush.msra.mxu0 0.0
    %1257 = vmatpush.msra.mxu0 0.0
    %1258 = vmatpush.msra.mxu0 0.0
    %1259 = vmatpush.msra.mxu0 0.0
    %1260 = vmatpush.msra.mxu0 0.0
    %1261 = vmatpush.msra.mxu0 %v738
    %1262 = vmatpush.msra.mxu0 %v737
    %1263 = vmatpush.msra.mxu0 %v736
    %1264 = vmatpush.msra.mxu0 %v735
    %1265 = vmatmul.f32.gmra.mxu0 %v1241
    %v1266 = vpop.f32.mrf.mxu0
    %v1267 = vadd.f32 %v1239, %v1266
    %1268 = vmatmul.f32.gmra.mxu0 %v1244
    %v1269 = vpop.f32.mrf.mxu0
    %v1270 = vadd.f32 %v1239, %v1269
    %1271 = vmatmul.f32.gmra.mxu0 %v1247
    %v1272 = vpop.f32.mrf.mxu0
    %v1273 = vadd.f32 %v1239, %v1272
    %1274 = vdwg.mxu0
    %v1275 = vld [vmem:[#allocation2] sm:$0xff]
    %v1276 = vld [vmem:[#allocation2 + $0x8] sm:$0xff]
    %v1277 = vadd.f32 %v1275, %v730
    %v1278 = vadd.f32 %v1276, %v733
    %1279 = vst.msk [vmem:[#allocation2] sm:$0xff] %vm42, %v1277
    %1280 = vst.msk [vmem:[#allocation2 + $0x8] sm:$0xff] %vm42, %v1278
    %v1281 = vld [vmem:[#allocation2 + $0x10] sm:$0xff]
    %v1282 = vld [vmem:[#allocation2 + $0x18] sm:$0xff]
    %v1283 = vld [vmem:[#allocation2 + $0x20] sm:$0xff]
    %v1284 = vadd.f32 %v1281, %v1267
    %v1285 = vadd.f32 %v1282, %v1270
    %v1286 = vadd.f32 %v1283, %v1273
    %1287 = vst.msk [vmem:[#allocation2 + $0x10] sm:$0xff] %vm42, %v1284
    %1288 = vst.msk [vmem:[#allocation2 + $0x18] sm:$0xff] %vm42, %v1285
    %1289 = vst.msk [vmem:[#allocation2 + $0x20] sm:$0xff] %vm42, %v1286
    %v1290 = vld [vmem:[#allocation2] sm:$0xff]
    %v1291 = vld [vmem:[#allocation2 + $0x8] sm:$0xff]
    %v1292 = vld [vmem:[#allocation2 + $0x10] sm:$0xff]
    %v1293 = vld [vmem:[#allocation2 + $0x18] sm:$0xff]
    %v1294 = vld [vmem:[#allocation2 + $0x20] sm:$0xff]
    %v1295 = vld [vmem:[#allocation4 + $0x298] sm:$0x1]
    %v1296 = vld [vmem:[#allocation4 + $0x2a0] sm:$0x1]
    %v1297 = vld [vmem:[#allocation4 + $0x388] sm:$0x1]
    %v1298 = vld [vmem:[#allocation4 + $0x390] sm:$0x1]
    %v1299 = vsel %vm42, %v1290, 0.0
    %1300 = vadd.xlane.f32.xlu0 %v1299
    %v1301 = vpop.xlane.xlu0 %1300
    %v1302 = vsel %vm42, %v1291, 0.0
    %1303 = vadd.xlane.f32.xlu0 %v1302
    %v1304 = vpop.xlane.xlu0 %1303
    %v1305 = vsel %vm42, %v1292, 0.0
    %1306 = vadd.xlane.f32.xlu0 %v1305
    %v1307 = vpop.xlane.xlu0 %1306
    %v1308 = vsel %vm42, %v1293, 0.0
    %1309 = vadd.xlane.f32.xlu0 %v1308
    %v1310 = vpop.xlane.xlu0 %1309
    %v1311 = vsel %vm42, %v1294, 0.0
    %1312 = vadd.xlane.f32.xlu0 %v1311
    %v1313 = vpop.xlane.xlu0 %1312
    %v1314 = vmul.f32 %v1301, %v143
    %v1315 = vmul.f32 %v1304, %v143
    %v1316 = vmul.f32 %v1307, %v143
    %v1317 = vmul.f32 %v1310, %v143
    %v1318 = vmul.f32 %v1313, %v143
    %v1319 = vsub.f32 %v1290, %v1314
    %v1320 = vsub.f32 %v1291, %v1315
    %v1321 = vsub.f32 %v1292, %v1316
    %v1322 = vsub.f32 %v1293, %v1317
    %v1323 = vsub.f32 %v1294, %v1318
    %v1324 = vmul.f32 %v1319, %v1319
    %v1325 = vmul.f32 %v1320, %v1320
    %v1326 = vmul.f32 %v1321, %v1321
    %v1327 = vmul.f32 %v1322, %v1322
    %v1328 = vmul.f32 %v1323, %v1323
    %v1329 = vsel %vm42, %v1324, 0.0
    %1330 = vadd.xlane.f32.xlu0 %v1329
    %v1331 = vpop.xlane.xlu0 %1330
    %v1332 = vsel %vm42, %v1325, 0.0
    %1333 = vadd.xlane.f32.xlu0 %v1332
    %v1334 = vpop.xlane.xlu0 %1333
    %v1335 = vsel %vm42, %v1326, 0.0
    %1336 = vadd.xlane.f32.xlu0 %v1335
    %v1337 = vpop.xlane.xlu0 %1336
    %v1338 = vsel %vm42, %v1327, 0.0
    %1339 = vadd.xlane.f32.xlu0 %v1338
    %v1340 = vpop.xlane.xlu0 %1339
    %v1341 = vsel %vm42, %v1328, 0.0
    %1342 = vadd.xlane.f32.xlu0 %v1341
    %v1343 = vpop.xlane.xlu0 %1342
    %v1344 = vmul.f32 %v1331, %v143
    %v1345 = vmul.f32 %v1334, %v143
    %v1346 = vmul.f32 %v1337, %v143
    %v1347 = vmul.f32 %v1340, %v143
    %v1348 = vmul.f32 %v1343, %v143
    %v1349 = vadd.f32 %v1344, 1e-05
    %v1350 = vadd.f32 %v1345, 1e-05
    %v1351 = vadd.f32 %v1346, 1e-05
    %v1352 = vadd.f32 %v1347, 1e-05
    %v1353 = vadd.f32 %v1348, 1e-05
    %v1354 = vrsqrt.pop %v1349
    %v1355 = vmul.f32 %v1354, %v1349
    %v1356 = vmul.f32 %v1355, %v1354
    %v1357 = vmul.f32 0.5, %v1356
    %v1358 = vsub.f32 1.5, %v1357
    %v1359 = vmul.f32 %v1354, %v1358
    %vm1360 = vweird.f32 %v1349
    %vm1361 = vweird.f32 %v1354
    %vm1362 = vmor %vm1360, %vm1361
    %v1363 = vsel %vm1362, %v1354, %v1359
    %v1364 = vrsqrt.pop %v1350
    %v1365 = vmul.f32 %v1364, %v1350
    %v1366 = vmul.f32 %v1365, %v1364
    %v1367 = vmul.f32 0.5, %v1366
    %v1368 = vsub.f32 1.5, %v1367
    %v1369 = vmul.f32 %v1364, %v1368
    %vm1370 = vweird.f32 %v1350
    %vm1371 = vweird.f32 %v1364
    %vm1372 = vmor %vm1370, %vm1371
    %v1373 = vsel %vm1372, %v1364, %v1369
    %v1374 = vrsqrt.pop %v1351
    %v1375 = vmul.f32 %v1374, %v1351
    %v1376 = vmul.f32 %v1375, %v1374
    %v1377 = vmul.f32 0.5, %v1376
    %v1378 = vsub.f32 1.5, %v1377
    %v1379 = vmul.f32 %v1374, %v1378
    %vm1380 = vweird.f32 %v1351
    %vm1381 = vweird.f32 %v1374
    %vm1382 = vmor %vm1380, %vm1381
    %v1383 = vsel %vm1382, %v1374, %v1379
    %v1384 = vrsqrt.pop %v1352
    %v1385 = vmul.f32 %v1384, %v1352
    %v1386 = vmul.f32 %v1385, %v1384
    %v1387 = vmul.f32 0.5, %v1386
    %v1388 = vsub.f32 1.5, %v1387
    %v1389 = vmul.f32 %v1384, %v1388
    %vm1390 = vweird.f32 %v1352
    %vm1391 = vweird.f32 %v1384
    %vm1392 = vmor %vm1390, %vm1391
    %v1393 = vsel %vm1392, %v1384, %v1389
    %v1394 = vrsqrt.pop %v1353
    %v1395 = vmul.f32 %v1394, %v1353
    %v1396 = vmul.f32 %v1395, %v1394
    %v1397 = vmul.f32 0.5, %v1396
    %v1398 = vsub.f32 1.5, %v1397
    %v1399 = vmul.f32 %v1394, %v1398
    %vm1400 = vweird.f32 %v1353
    %vm1401 = vweird.f32 %v1394
    %vm1402 = vmor %vm1400, %vm1401
    %v1403 = vsel %vm1402, %v1394, %v1399
    %v1404 = vmul.f32 %v1319, %v1363
    %v1405 = vmul.f32 %v1320, %v1373
    %v1406 = vmul.f32 %v1321, %v1383
    %v1407 = vmul.f32 %v1322, %v1393
    %v1408 = vmul.f32 %v1323, %v1403
    %v1409 = vperm.slane %v1295, 0
    %v1410 = vmul.f32 %v1404, %v1409
    %v1411 = vmul.f32 %v1405, %v1409
    %v1412 = vperm.slane %v1296, 0
    %v1413 = vadd.f32 %v1410, %v1412
    %v1414 = vadd.f32 %v1411, %v1412
    %v1415 = vperm.slane %v1297, 0
    %v1416 = vmul.f32 %v1406, %v1415
    %v1417 = vmul.f32 %v1407, %v1415
    %v1418 = vmul.f32 %v1408, %v1415
    %v1419 = vperm.slane %v1298, 0
    %v1420 = vadd.f32 %v1416, %v1419
    %v1421 = vadd.f32 %v1417, %v1419
    %v1422 = vadd.f32 %v1418, %v1419
    %v1423 = vld [vmem:[#allocation4 + $0x2a8] sm:$0xff]
    %v1424 = vld [vmem:[#allocation4 + $0x2b0] sm:$0xff]
    %v1425 = vld [vmem:[#allocation4 + $0x2b8] sm:$0xff]
    %v1426 = vld [vmem:[#allocation4 + $0x2c0] sm:$0xff]
    %v1427 = vld [vmem:[#allocation4 + $0x2c8] sm:$0x1]
    %v1428 = vperm.slane %v1427, 0
    %v1430 = vsel %vm42, %v1413, 0
    %v1433 = vsel %vm42, %v1414, 0
    %1435 = vmatpush.msra.mxu0 0.0
    %1436 = vmatpush.msra.mxu0 0.0
    %1437 = vmatpush.msra.mxu0 0.0
    %1438 = vmatpush.msra.mxu0 0.0
    %1439 = vmatpush.msra.mxu0 0.0
    %1440 = vmatpush.msra.mxu0 0.0
    %1441 = vmatpush.msra.mxu0 0.0
    %1442 = vmatpush.msra.mxu0 0.0
    %1443 = vmatpush.msra.mxu0 0.0
    %1444 = vmatpush.msra.mxu0 0.0
    %1445 = vmatpush.msra.mxu0 0.0
    %1446 = vmatpush.msra.mxu0 0.0
    %1447 = vmatpush.msra.mxu0 %v1426
    %1448 = vmatpush.msra.mxu0 %v1425
    %1449 = vmatpush.msra.mxu0 %v1424
    %1450 = vmatpush.msra.mxu0 %v1423
    %1451 = vmatmul.f32.gmra.mxu0 %v1430
    %v1452 = vpop.f32.mrf.mxu0
    %v1453 = vadd.f32 %v1428, %v1452
    %1454 = vmatmul.f32.gmra.mxu0 %v1433
    %v1455 = vpop.f32.mrf.mxu0
    %v1456 = vadd.f32 %v1428, %v1455
    %1457 = vdwg.mxu0
    %1458 = vst.msk [vmem:[#allocation3] sm:$0xff] %vm675, %v1453
    %1459 = vst.msk [vmem:[#allocation3 + $0x8] sm:$0xff] %vm675, %v1456
    %v1460 = vld [vmem:[#allocation4 + $0x398] sm:$0xff]
    %v1461 = vld [vmem:[#allocation4 + $0x3a0] sm:$0xff]
    %v1462 = vld [vmem:[#allocation4 + $0x3a8] sm:$0xff]
    %v1463 = vld [vmem:[#allocation4 + $0x3b0] sm:$0xff]
    %v1464 = vld [vmem:[#allocation4 + $0x3b8] sm:$0x1]
    %v1465 = vperm.slane %v1464, 0
    %v1467 = vsel %vm42, %v1420, 0
    %v1470 = vsel %vm42, %v1421, 0
    %v1473 = vsel %vm42, %v1422, 0
    %1475 = vmatpush.msra.mxu0 0.0
    %1476 = vmatpush.msra.mxu0 0.0
    %1477 = vmatpush.msra.mxu0 0.0
    %1478 = vmatpush.msra.mxu0 0.0
    %1479 = vmatpush.msra.mxu0 0.0
    %1480 = vmatpush.msra.mxu0 0.0
    %1481 = vmatpush.msra.mxu0 0.0
    %1482 = vmatpush.msra.mxu0 0.0
    %1483 = vmatpush.msra.mxu0 0.0
    %1484 = vmatpush.msra.mxu0 0.0
    %1485 = vmatpush.msra.mxu0 0.0
    %1486 = vmatpush.msra.mxu0 0.0
    %1487 = vmatpush.msra.mxu0 %v1463
    %1488 = vmatpush.msra.mxu0 %v1462
    %1489 = vmatpush.msra.mxu0 %v1461
    %1490 = vmatpush.msra.mxu0 %v1460
    %1491 = vmatmul.f32.gmra.mxu0 %v1467
    %v1492 = vpop.f32.mrf.mxu0
    %v1493 = vadd.f32 %v1465, %v1492
    %1494 = vmatmul.f32.gmra.mxu0 %v1470
    %v1495 = vpop.f32.mrf.mxu0
    %v1496 = vadd.f32 %v1465, %v1495
    %1497 = vmatmul.f32.gmra.mxu0 %v1473
    %v1498 = vpop.f32.mrf.mxu0
    %v1499 = vadd.f32 %v1465, %v1498
    %1500 = vdwg.mxu0
    %1501 = vst.msk [vmem:[#allocation3 + $0x10] sm:$0xff] %vm675, %v1493
    %1502 = vst.msk [vmem:[#allocation3 + $0x18] sm:$0xff] %vm675, %v1496
    %1503 = vst.msk [vmem:[#allocation3 + $0x20] sm:$0xff] %vm675, %v1499
    %v1504 = vld [vmem:[#allocation3] sm:$0xff]
    %v1505 = vld [vmem:[#allocation3 + $0x8] sm:$0xff]
    %v1506 = vld [vmem:[#allocation3 + $0x10] sm:$0xff]
    %v1507 = vld [vmem:[#allocation3 + $0x18] sm:$0xff]
    %v1508 = vld [vmem:[#allocation3 + $0x20] sm:$0xff]
    %v1509 = vmul.f32 %v1504, 0.5
    %v1510 = vmul.f32 %v1505, 0.5
    %v1511 = vmul.f32 %v1506, 0.5
    %v1512 = vmul.f32 %v1507, 0.5
    %v1513 = vmul.f32 %v1508, 0.5
    %v1514 = vmul.f32 %v1504, 0.044715
    %v1515 = vmul.f32 %v1505, 0.044715
    %v1516 = vmul.f32 %v1506, 0.044715
    %v1517 = vmul.f32 %v1507, 0.044715
    %v1518 = vmul.f32 %v1508, 0.044715
    %v1519 = vmul.f32 %v1514, %v1504
    %v1520 = vmul.f32 %v1515, %v1505
    %v1521 = vmul.f32 %v1516, %v1506
    %v1522 = vmul.f32 %v1517, %v1507
    %v1523 = vmul.f32 %v1518, %v1508
    %v1524 = vmul.f32 %v1519, %v1504
    %v1525 = vmul.f32 %v1520, %v1505
    %v1526 = vmul.f32 %v1521, %v1506
    %v1527 = vmul.f32 %v1522, %v1507
    %v1528 = vmul.f32 %v1523, %v1508
    %v1529 = vadd.f32 %v1504, %v1524
    %v1530 = vadd.f32 %v1505, %v1525
    %v1531 = vadd.f32 %v1506, %v1526
    %v1532 = vadd.f32 %v1507, %v1527
    %v1533 = vadd.f32 %v1508, %v1528
    %v1534 = vmul.f32 %v1529, 0.7978846
    %v1535 = vmul.f32 %v1530, 0.7978846
    %v1536 = vmul.f32 %v1531, 0.7978846
    %v1537 = vmul.f32 %v1532, 0.7978846
    %v1538 = vmul.f32 %v1533, 0.7978846
    %v1539 = vtanh.pop %v1534
    %v1540 = vtanh.pop %v1535
    %v1541 = vtanh.pop %v1536
    %v1542 = vtanh.pop %v1537
    %v1543 = vtanh.pop %v1538
    %v1544 = vadd.f32 %v1539, 1.0
    %v1545 = vadd.f32 %v1540, 1.0
    %v1546 = vadd.f32 %v1541, 1.0
    %v1547 = vadd.f32 %v1542, 1.0
    %v1548 = vadd.f32 %v1543, 1.0
    %v1549 = vmul.f32 %v1509, %v1544
    %v1550 = vmul.f32 %v1510, %v1545
    %v1551 = vmul.f32 %v1511, %v1546
    %v1552 = vmul.f32 %v1512, %v1547
    %v1553 = vmul.f32 %v1513, %v1548
    %v1554 = vld [vmem:[#allocation4 + $0x2d0] sm:$0x1]
    %v1555 = vld [vmem:[#allocation4 + $0x2d8] sm:$0x1]
    %v1556 = vld [vmem:[#allocation4 + $0x3c0] sm:$0x1]
    %v1557 = vld [vmem:[#allocation4 + $0x3c8] sm:$0x1]
    %v1558 = vsel %vm675, %v1549, 0.0
    %1559 = vadd.xlane.f32.xlu0 %v1558
    %v1560 = vpop.xlane.xlu0 %1559
    %v1561 = vsel %vm675, %v1550, 0.0
    %1562 = vadd.xlane.f32.xlu0 %v1561
    %v1563 = vpop.xlane.xlu0 %1562
    %v1564 = vsel %vm675, %v1551, 0.0
    %1565 = vadd.xlane.f32.xlu0 %v1564
    %v1566 = vpop.xlane.xlu0 %1565
    %v1567 = vsel %vm675, %v1552, 0.0
    %1568 = vadd.xlane.f32.xlu0 %v1567
    %v1569 = vpop.xlane.xlu0 %1568
    %v1570 = vsel %vm675, %v1553, 0.0
    %1571 = vadd.xlane.f32.xlu0 %v1570
    %v1572 = vpop.xlane.xlu0 %1571
    %v1573 = vrcp.pop 64.0
    %v1574 = vmul.f32 64.0, %v1573
    %v1575 = vsub.f32 1.0, %v1574
    %v1576 = vmul.f32 %v1573, %v1575
    %v1577 = vadd.f32 %v1573, %v1576
    %vm1578 = vweird.f32 %v1573
    %v1579 = vsel %vm1578, %v1573, %v1577
    %v1580 = vmul.f32 %v1560, %v1579
    %v1581 = vmul.f32 %v1563, %v1579
    %v1582 = vmul.f32 %v1566, %v1579
    %v1583 = vmul.f32 %v1569, %v1579
    %v1584 = vmul.f32 %v1572, %v1579
    %v1585 = vsub.f32 %v1549, %v1580
    %v1586 = vsub.f32 %v1550, %v1581
    %v1587 = vsub.f32 %v1551, %v1582
    %v1588 = vsub.f32 %v1552, %v1583
    %v1589 = vsub.f32 %v1553, %v1584
    %v1590 = vmul.f32 %v1585, %v1585
    %v1591 = vmul.f32 %v1586, %v1586
    %v1592 = vmul.f32 %v1587, %v1587
    %v1593 = vmul.f32 %v1588, %v1588
    %v1594 = vmul.f32 %v1589, %v1589
    %v1595 = vsel %vm675, %v1590, 0.0
    %1596 = vadd.xlane.f32.xlu0 %v1595
    %v1597 = vpop.xlane.xlu0 %1596
    %v1598 = vsel %vm675, %v1591, 0.0
    %1599 = vadd.xlane.f32.xlu0 %v1598
    %v1600 = vpop.xlane.xlu0 %1599
    %v1601 = vsel %vm675, %v1592, 0.0
    %1602 = vadd.xlane.f32.xlu0 %v1601
    %v1603 = vpop.xlane.xlu0 %1602
    %v1604 = vsel %vm675, %v1593, 0.0
    %1605 = vadd.xlane.f32.xlu0 %v1604
    %v1606 = vpop.xlane.xlu0 %1605
    %v1607 = vsel %vm675, %v1594, 0.0
    %1608 = vadd.xlane.f32.xlu0 %v1607
    %v1609 = vpop.xlane.xlu0 %1608
    %v1610 = vmul.f32 %v1597, %v1579
    %v1611 = vmul.f32 %v1600, %v1579
    %v1612 = vmul.f32 %v1603, %v1579
    %v1613 = vmul.f32 %v1606, %v1579
    %v1614 = vmul.f32 %v1609, %v1579
    %v1615 = vadd.f32 %v1610, 1e-05
    %v1616 = vadd.f32 %v1611, 1e-05
    %v1617 = vadd.f32 %v1612, 1e-05
    %v1618 = vadd.f32 %v1613, 1e-05
    %v1619 = vadd.f32 %v1614, 1e-05
    %v1620 = vrsqrt.pop %v1615
    %v1621 = vmul.f32 %v1620, %v1615
    %v1622 = vmul.f32 %v1621, %v1620
    %v1623 = vmul.f32 0.5, %v1622
    %v1624 = vsub.f32 1.5, %v1623
    %v1625 = vmul.f32 %v1620, %v1624
    %vm1626 = vweird.f32 %v1615
    %vm1627 = vweird.f32 %v1620
    %vm1628 = vmor %vm1626, %vm1627
    %v1629 = vsel %vm1628, %v1620, %v1625
    %v1630 = vrsqrt.pop %v1616
    %v1631 = vmul.f32 %v1630, %v1616
    %v1632 = vmul.f32 %v1631, %v1630
    %v1633 = vmul.f32 0.5, %v1632
    %v1634 = vsub.f32 1.5, %v1633
    %v1635 = vmul.f32 %v1630, %v1634
    %vm1636 = vweird.f32 %v1616
    %vm1637 = vweird.f32 %v1630
    %vm1638 = vmor %vm1636, %vm1637
    %v1639 = vsel %vm1638, %v1630, %v1635
    %v1640 = vrsqrt.pop %v1617
    %v1641 = vmul.f32 %v1640, %v1617
    %v1642 = vmul.f32 %v1641, %v1640
    %v1643 = vmul.f32 0.5, %v1642
    %v1644 = vsub.f32 1.5, %v1643
    %v1645 = vmul.f32 %v1640, %v1644
    %vm1646 = vweird.f32 %v1617
    %vm1647 = vweird.f32 %v1640
    %vm1648 = vmor %vm1646, %vm1647
    %v1649 = vsel %vm1648, %v1640, %v1645
    %v1650 = vrsqrt.pop %v1618
    %v1651 = vmul.f32 %v1650, %v1618
    %v1652 = vmul.f32 %v1651, %v1650
    %v1653 = vmul.f32 0.5, %v1652
    %v1654 = vsub.f32 1.5, %v1653
    %v1655 = vmul.f32 %v1650, %v1654
    %vm1656 = vweird.f32 %v1618
    %vm1657 = vweird.f32 %v1650
    %vm1658 = vmor %vm1656, %vm1657
    %v1659 = vsel %vm1658, %v1650, %v1655
    %v1660 = vrsqrt.pop %v1619
    %v1661 = vmul.f32 %v1660, %v1619
    %v1662 = vmul.f32 %v1661, %v1660
    %v1663 = vmul.f32 0.5, %v1662
    %v1664 = vsub.f32 1.5, %v1663
    %v1665 = vmul.f32 %v1660, %v1664
    %vm1666 = vweird.f32 %v1619
    %vm1667 = vweird.f32 %v1660
    %vm1668 = vmor %vm1666, %vm1667
    %v1669 = vsel %vm1668, %v1660, %v1665
    %v1670 = vmul.f32 %v1585, %v1629
    %v1671 = vmul.f32 %v1586, %v1639
    %v1672 = vmul.f32 %v1587, %v1649
    %v1673 = vmul.f32 %v1588, %v1659
    %v1674 = vmul.f32 %v1589, %v1669
    %v1675 = vperm.slane %v1554, 0
    %v1676 = vmul.f32 %v1670, %v1675
    %v1677 = vmul.f32 %v1671, %v1675
    %v1678 = vperm.slane %v1555, 0
    %v1679 = vadd.f32 %v1676, %v1678
    %v1680 = vadd.f32 %v1677, %v1678
    %v1681 = vperm.slane %v1556, 0
    %v1682 = vmul.f32 %v1672, %v1681
    %v1683 = vmul.f32 %v1673, %v1681
    %v1684 = vmul.f32 %v1674, %v1681
    %v1685 = vperm.slane %v1557, 0
    %v1686 = vadd.f32 %v1682, %v1685
    %v1687 = vadd.f32 %v1683, %v1685
    %v1688 = vadd.f32 %v1684, %v1685
    %v1689 = vld [vmem:[#allocation4 + $0x2e0] sm:$0xff]
    %v1690 = vld [vmem:[#allocation4 + $0x2e8] sm:$0xff]
    %v1691 = vld [vmem:[#allocation4 + $0x2f0] sm:$0xff]
    %v1692 = vld [vmem:[#allocation4 + $0x2f8] sm:$0xff]
    %v1693 = vld [vmem:[#allocation4 + $0x300] sm:$0xff]
    %v1694 = vld [vmem:[#allocation4 + $0x308] sm:$0xff]
    %v1695 = vld [vmem:[#allocation4 + $0x310] sm:$0xff]
    %v1696 = vld [vmem:[#allocation4 + $0x318] sm:$0xff]
    %v1697 = vld [vmem:[#allocation4 + $0x320] sm:$0x1]
    %v1698 = vperm.slane %v1697, 0
    %v1700 = vsel %vm675, %v1679, 0
    %v1703 = vsel %vm675, %v1680, 0
    %1705 = vmatpush.msra.mxu0 0.0
    %1706 = vmatpush.msra.mxu0 0.0
    %1707 = vmatpush.msra.mxu0 0.0
    %1708 = vmatpush.msra.mxu0 0.0
    %1709 = vmatpush.msra.mxu0 0.0
    %1710 = vmatpush.msra.mxu0 0.0
    %1711 = vmatpush.msra.mxu0 0.0
    %1712 = vmatpush.msra.mxu0 0.0
    %1713 = vmatpush.msra.mxu0 %v1696
    %1714 = vmatpush.msra.mxu0 %v1695
    %1715 = vmatpush.msra.mxu0 %v1694
    %1716 = vmatpush.msra.mxu0 %v1693
    %1717 = vmatpush.msra.mxu0 %v1692
    %1718 = vmatpush.msra.mxu0 %v1691
    %1719 = vmatpush.msra.mxu0 %v1690
    %1720 = vmatpush.msra.mxu0 %v1689
    %1721 = vmatmul.f32.gmra.mxu0 %v1700
    %v1722 = vpop.f32.mrf.mxu0
    %v1723 = vadd.f32 %v1698, %v1722
    %1724 = vmatmul.f32.gmra.mxu0 %v1703
    %v1725 = vpop.f32.mrf.mxu0
    %v1726 = vadd.f32 %v1698, %v1725
    %1727 = vdwg.mxu0
    %v1728 = vld [vmem:[#allocation4 + $0x3d0] sm:$0xff]
    %v1729 = vld [vmem:[#allocation4 + $0x3d8] sm:$0xff]
    %v1730 = vld [vmem:[#allocation4 + $0x3e0] sm:$0xff]
    %v1731 = vld [vmem:[#allocation4 + $0x3e8] sm:$0xff]
    %v1732 = vld [vmem:[#allocation4 + $0x3f0] sm:$0xff]
    %v1733 = vld [vmem:[#allocation4 + $0x3f8] sm:$0xff]
    %v1734 = vld [vmem:[#allocation4 + $0x400] sm:$0xff]
    %v1735 = vld [vmem:[#allocation4 + $0x408] sm:$0xff]
    %v1736 = vld [vmem:[#allocation4 + $0x410] sm:$0x1]
    %v1737 = vperm.slane %v1736, 0
    %v1739 = vsel %vm675, %v1686, 0
    %v1742 = vsel %vm675, %v1687, 0
    %v1745 = vsel %vm675, %v1688, 0
    %1747 = vmatpush.msra.mxu0 0.0
    %1748 = vmatpush.msra.mxu0 0.0
    %1749 = vmatpush.msra.mxu0 0.0
    %1750 = vmatpush.msra.mxu0 0.0
    %1751 = vmatpush.msra.mxu0 0.0
    %1752 = vmatpush.msra.mxu0 0.0
    %1753 = vmatpush.msra.mxu0 0.0
    %1754 = vmatpush.msra.mxu0 0.0
    %1755 = vmatpush.msra.mxu0 %v1735
    %1756 = vmatpush.msra.mxu0 %v1734
    %1757 = vmatpush.msra.mxu0 %v1733
    %1758 = vmatpush.msra.mxu0 %v1732
    %1759 = vmatpush.msra.mxu0 %v1731
    %1760 = vmatpush.msra.mxu0 %v1730
    %1761 = vmatpush.msra.mxu0 %v1729
    %1762 = vmatpush.msra.mxu0 %v1728
    %1763 = vmatmul.f32.gmra.mxu0 %v1739
    %v1764 = vpop.f32.mrf.mxu0
    %v1765 = vadd.f32 %v1737, %v1764
    %1766 = vmatmul.f32.gmra.mxu0 %v1742
    %v1767 = vpop.f32.mrf.mxu0
    %v1768 = vadd.f32 %v1737, %v1767
    %1769 = vmatmul.f32.gmra.mxu0 %v1745
    %v1770 = vpop.f32.mrf.mxu0
    %v1771 = vadd.f32 %v1737, %v1770
    %1772 = vdwg.mxu0
    %v1773 = vld [vmem:[#allocation2] sm:$0xff]
    %v1774 = vld [vmem:[#allocation2 + $0x8] sm:$0xff]
    %v1775 = vadd.f32 %v1773, %v1723
    %v1776 = vadd.f32 %v1774, %v1726
    %1777 = vst.msk [vmem:[#allocation2] sm:$0xff] %vm42, %v1775
    %1778 = vst.msk [vmem:[#allocation2 + $0x8] sm:$0xff] %vm42, %v1776
    %v1779 = vld [vmem:[#allocation2 + $0x10] sm:$0xff]
    %v1780 = vld [vmem:[#allocation2 + $0x18] sm:$0xff]
    %v1781 = vld [vmem:[#allocation2 + $0x20] sm:$0xff]
    %v1782 = vadd.f32 %v1779, %v1765
    %v1783 = vadd.f32 %v1780, %v1768
    %v1784 = vadd.f32 %v1781, %v1771
    %1785 = vst.msk [vmem:[#allocation2 + $0x10] sm:$0xff] %vm42, %v1782
    %1786 = vst.msk [vmem:[#allocation2 + $0x18] sm:$0xff] %vm42, %v1783
    %1787 = vst.msk [vmem:[#allocation2 + $0x20] sm:$0xff] %vm42, %v1784
    %v1788 = vld [vmem:[#allocation2] sm:$0xff]
    %v1789 = vld [vmem:[#allocation2 + $0x8] sm:$0xff]
    %v1790 = vld [vmem:[#allocation2 + $0x10] sm:$0xff]
    %v1791 = vld [vmem:[#allocation2 + $0x18] sm:$0xff]
    %v1792 = vld [vmem:[#allocation2 + $0x20] sm:$0xff]
    %v1793 = vld [vmem:[#allocation4 + $0x418] sm:$0x1]
    %v1794 = vld [vmem:[#allocation4 + $0x420] sm:$0x1]
    %v1795 = vld [vmem:[#allocation4 + $0x508] sm:$0x1]
    %v1796 = vld [vmem:[#allocation4 + $0x510] sm:$0x1]
    %v1797 = vsel %vm42, %v1788, 0.0
    %1798 = vadd.xlane.f32.xlu0 %v1797
    %v1799 = vpop.xlane.xlu0 %1798
    %v1800 = vsel %vm42, %v1789, 0.0
    %1801 = vadd.xlane.f32.xlu0 %v1800
    %v1802 = vpop.xlane.xlu0 %1801
    %v1803 = vsel %vm42, %v1790, 0.0
    %1804 = vadd.xlane.f32.xlu0 %v1803
    %v1805 = vpop.xlane.xlu0 %1804
    %v1806 = vsel %vm42, %v1791, 0.0
    %1807 = vadd.xlane.f32.xlu0 %v1806
    %v1808 = vpop.xlane.xlu0 %1807
    %v1809 = vsel %vm42, %v1792, 0.0
    %1810 = vadd.xlane.f32.xlu0 %v1809
    %v1811 = vpop.xlane.xlu0 %1810
    %v1812 = vmul.f32 %v1799, %v143
    %v1813 = vmul.f32 %v1802, %v143
    %v1814 = vmul.f32 %v1805, %v143
    %v1815 = vmul.f32 %v1808, %v143
    %v1816 = vmul.f32 %v1811, %v143
    %v1817 = vsub.f32 %v1788, %v1812
    %v1818 = vsub.f32 %v1789, %v1813
    %v1819 = vsub.f32 %v1790, %v1814
    %v1820 = vsub.f32 %v1791, %v1815
    %v1821 = vsub.f32 %v1792, %v1816
    %v1822 = vmul.f32 %v1817, %v1817
    %v1823 = vmul.f32 %v1818, %v1818
    %v1824 = vmul.f32 %v1819, %v1819
    %v1825 = vmul.f32 %v1820, %v1820
    %v1826 = vmul.f32 %v1821, %v1821
    %v1827 = vsel %vm42, %v1822, 0.0
    %1828 = vadd.xlane.f32.xlu0 %v1827
    %v1829 = vpop.xlane.xlu0 %1828
    %v1830 = vsel %vm42, %v1823, 0.0
    %1831 = vadd.xlane.f32.xlu0 %v1830
    %v1832 = vpop.xlane.xlu0 %1831
    %v1833 = vsel %vm42, %v1824, 0.0
    %1834 = vadd.xlane.f32.xlu0 %v1833
    %v1835 = vpop.xlane.xlu0 %1834
    %v1836 = vsel %vm42, %v1825, 0.0
    %1837 = vadd.xlane.f32.xlu0 %v1836
    %v1838 = vpop.xlane.xlu0 %1837
    %v1839 = vsel %vm42, %v1826, 0.0
    %1840 = vadd.xlane.f32.xlu0 %v1839
    %v1841 = vpop.xlane.xlu0 %1840
    %v1842 = vmul.f32 %v1829, %v143
    %v1843 = vmul.f32 %v1832, %v143
    %v1844 = vmul.f32 %v1835, %v143
    %v1845 = vmul.f32 %v1838, %v143
    %v1846 = vmul.f32 %v1841, %v143
    %v1847 = vadd.f32 %v1842, 1e-05
    %v1848 = vadd.f32 %v1843, 1e-05
    %v1849 = vadd.f32 %v1844, 1e-05
    %v1850 = vadd.f32 %v1845, 1e-05
    %v1851 = vadd.f32 %v1846, 1e-05
    %v1852 = vrsqrt.pop %v1847
    %v1853 = vmul.f32 %v1852, %v1847
    %v1854 = vmul.f32 %v1853, %v1852
    %v1855 = vmul.f32 0.5, %v1854
    %v1856 = vsub.f32 1.5, %v1855
    %v1857 = vmul.f32 %v1852, %v1856
    %vm1858 = vweird.f32 %v1847
    %vm1859 = vweird.f32 %v1852
    %vm1860 = vmor %vm1858, %vm1859
    %v1861 = vsel %vm1860, %v1852, %v1857
    %v1862 = vrsqrt.pop %v1848
    %v1863 = vmul.f32 %v1862, %v1848
    %v1864 = vmul.f32 %v1863, %v1862
    %v1865 = vmul.f32 0.5, %v1864
    %v1866 = vsub.f32 1.5, %v1865
    %v1867 = vmul.f32 %v1862, %v1866
    %vm1868 = vweird.f32 %v1848
    %vm1869 = vweird.f32 %v1862
    %vm1870 = vmor %vm1868, %vm1869
    %v1871 = vsel %vm1870, %v1862, %v1867
    %v1872 = vrsqrt.pop %v1849
    %v1873 = vmul.f32 %v1872, %v1849
    %v1874 = vmul.f32 %v1873, %v1872
    %v1875 = vmul.f32 0.5, %v1874
    %v1876 = vsub.f32 1.5, %v1875
    %v1877 = vmul.f32 %v1872, %v1876
    %vm1878 = vweird.f32 %v1849
    %vm1879 = vweird.f32 %v1872
    %vm1880 = vmor %vm1878, %vm1879
    %v1881 = vsel %vm1880, %v1872, %v1877
    %v1882 = vrsqrt.pop %v1850
    %v1883 = vmul.f32 %v1882, %v1850
    %v1884 = vmul.f32 %v1883, %v1882
    %v1885 = vmul.f32 0.5, %v1884
    %v1886 = vsub.f32 1.5, %v1885
    %v1887 = vmul.f32 %v1882, %v1886
    %vm1888 = vweird.f32 %v1850
    %vm1889 = vweird.f32 %v1882
    %vm1890 = vmor %vm1888, %vm1889
    %v1891 = vsel %vm1890, %v1882, %v1887
    %v1892 = vrsqrt.pop %v1851
    %v1893 = vmul.f32 %v1892, %v1851
    %v1894 = vmul.f32 %v1893, %v1892
    %v1895 = vmul.f32 0.5, %v1894
    %v1896 = vsub.f32 1.5, %v1895
    %v1897 = vmul.f32 %v1892, %v1896
    %vm1898 = vweird.f32 %v1851
    %vm1899 = vweird.f32 %v1892
    %vm1900 = vmor %vm1898, %vm1899
    %v1901 = vsel %vm1900, %v1892, %v1897
    %v1902 = vmul.f32 %v1817, %v1861
    %v1903 = vmul.f32 %v1818, %v1871
    %v1904 = vmul.f32 %v1819, %v1881
    %v1905 = vmul.f32 %v1820, %v1891
    %v1906 = vmul.f32 %v1821, %v1901
    %v1907 = vperm.slane %v1793, 0
    %v1908 = vmul.f32 %v1902, %v1907
    %v1909 = vmul.f32 %v1903, %v1907
    %v1910 = vperm.slane %v1794, 0
    %v1911 = vadd.f32 %v1908, %v1910
    %v1912 = vadd.f32 %v1909, %v1910
    %v1913 = vperm.slane %v1795, 0
    %v1914 = vmul.f32 %v1904, %v1913
    %v1915 = vmul.f32 %v1905, %v1913
    %v1916 = vmul.f32 %v1906, %v1913
    %v1917 = vperm.slane %v1796, 0
    %v1918 = vadd.f32 %v1914, %v1917
    %v1919 = vadd.f32 %v1915, %v1917
    %v1920 = vadd.f32 %v1916, %v1917
    %v1921 = vld [vmem:[#allocation4 + $0x428] sm:$0xff]
    %v1922 = vld [vmem:[#allocation4 + $0x430] sm:$0xff]
    %v1923 = vld [vmem:[#allocation4 + $0x438] sm:$0xff]
    %v1924 = vld [vmem:[#allocation4 + $0x440] sm:$0xff]
    %v1925 = vld [vmem:[#allocation4 + $0x448] sm:$0x1]
    %v1926 = vperm.slane %v1925, 0
    %v1928 = vsel %vm42, %v1911, 0
    %v1931 = vsel %vm42, %v1912, 0
    %1933 = vmatpush.msra.mxu0 0.0
    %1934 = vmatpush.msra.mxu0 0.0
    %1935 = vmatpush.msra.mxu0 0.0
    %1936 = vmatpush.msra.mxu0 0.0
    %1937 = vmatpush.msra.mxu0 0.0
    %1938 = vmatpush.msra.mxu0 0.0
    %1939 = vmatpush.msra.mxu0 0.0
    %1940 = vmatpush.msra.mxu0 0.0
    %1941 = vmatpush.msra.mxu0 0.0
    %1942 = vmatpush.msra.mxu0 0.0
    %1943 = vmatpush.msra.mxu0 0.0
    %1944 = vmatpush.msra.mxu0 0.0
    %1945 = vmatpush.msra.mxu0 %v1924
    %1946 = vmatpush.msra.mxu0 %v1923
    %1947 = vmatpush.msra.mxu0 %v1922
    %1948 = vmatpush.msra.mxu0 %v1921
    %1949 = vmatmul.f32.gmra.mxu0 %v1928
    %v1950 = vpop.f32.mrf.mxu0
    %v1951 = vadd.f32 %v1926, %v1950
    %1952 = vmatmul.f32.gmra.mxu0 %v1931
    %v1953 = vpop.f32.mrf.mxu0
    %v1954 = vadd.f32 %v1926, %v1953
    %1955 = vdwg.mxu0
    %v1956 = vld [vmem:[#allocation4 + $0x518] sm:$0xff]
    %v1957 = vld [vmem:[#allocation4 + $0x520] sm:$0xff]
    %v1958 = vld [vmem:[#allocation4 + $0x528] sm:$0xff]
    %v1959 = vld [vmem:[#allocation4 + $0x530] sm:$0xff]
    %v1960 = vld [vmem:[#allocation4 + $0x538] sm:$0x1]
    %v1961 = vperm.slane %v1960, 0
    %v1963 = vsel %vm42, %v1918, 0
    %v1966 = vsel %vm42, %v1919, 0
    %v1969 = vsel %vm42, %v1920, 0
    %1971 = vmatpush.msra.mxu0 0.0
    %1972 = vmatpush.msra.mxu0 0.0
    %1973 = vmatpush.msra.mxu0 0.0
    %1974 = vmatpush.msra.mxu0 0.0
    %1975 = vmatpush.msra.mxu0 0.0
    %1976 = vmatpush.msra.mxu0 0.0
    %1977 = vmatpush.msra.mxu0 0.0
    %1978 = vmatpush.msra.mxu0 0.0
    %1979 = vmatpush.msra.mxu0 0.0
    %1980 = vmatpush.msra.mxu0 0.0
    %1981 = vmatpush.msra.mxu0 0.0
    %1982 = vmatpush.msra.mxu0 0.0
    %1983 = vmatpush.msra.mxu0 %v1959
    %1984 = vmatpush.msra.mxu0 %v1958
    %1985 = vmatpush.msra.mxu0 %v1957
    %1986 = vmatpush.msra.mxu0 %v1956
    %1987 = vmatmul.f32.gmra.mxu0 %v1963
    %v1988 = vpop.f32.mrf.mxu0
    %v1989 = vadd.f32 %v1961, %v1988
    %1990 = vmatmul.f32.gmra.mxu0 %v1966
    %v1991 = vpop.f32.mrf.mxu0
    %v1992 = vadd.f32 %v1961, %v1991
    %1993 = vmatmul.f32.gmra.mxu0 %v1969
    %v1994 = vpop.f32.mrf.mxu0
    %v1995 = vadd.f32 %v1961, %v1994
    %1996 = vdwg.mxu0
    %v1997 = vld [vmem:[#allocation4 + $0x450] sm:$0xff]
    %v1998 = vld [vmem:[#allocation4 + $0x458] sm:$0xff]
    %v1999 = vld [vmem:[#allocation4 + $0x460] sm:$0xff]
    %v2000 = vld [vmem:[#allocation4 + $0x468] sm:$0xff]
    %v2001 = vld [vmem:[#allocation4 + $0x470] sm:$0x1]
    %2002 = vmatpush.msra.mxu0 0.0
    %2003 = vmatpush.msra.mxu0 0.0
    %2004 = vmatpush.msra.mxu0 0.0
    %2005 = vmatpush.msra.mxu0 0.0
    %2006 = vmatpush.msra.mxu0 0.0
    %2007 = vmatpush.msra.mxu0 0.0
    %2008 = vmatpush.msra.mxu0 0.0
    %2009 = vmatpush.msra.mxu0 0.0
    %2010 = vmatpush.msra.mxu0 0.0
    %2011 = vmatpush.msra.mxu0 0.0
    %2012 = vmatpush.msra.mxu0 0.0
    %2013 = vmatpush.msra.mxu0 0.0
    %2014 = vmatpush.msra.mxu0 0.0
    %2015 = vmatpush.msra.mxu0 0.0
    %2016 = vmatpush.msra.mxu0 %v1954
    %2017 = vmatpush.msra.mxu0 %v1951
    %2018 = vmatmul.f32.gmra.mxu0 %v336
    %v2019 = vpop.f32.mrf.mxu0
    %v2020 = vadd.f32 0.0, %v2019
    %2021 = vmatmul.f32.gmra.mxu0 %v339
    %v2022 = vpop.f32.mrf.mxu0
    %v2023 = vadd.f32 0.0, %v2022
    %2024 = vmatmul.f32.gmra.mxu0 %v342
    %v2025 = vpop.f32.mrf.mxu0
    %v2026 = vadd.f32 0.0, %v2025
    %2027 = vmatmul.f32.gmra.mxu0 %v345
    %v2028 = vpop.f32.mrf.mxu0
    %v2029 = vadd.f32 0.0, %v2028
    %2030 = vmatmul.f32.gmra.mxu0 %v348
    %v2031 = vpop.f32.mrf.mxu0
    %v2032 = vadd.f32 0.0, %v2031
    %2033 = vmatmul.f32.gmra.mxu0 %v351
    %v2034 = vpop.f32.mrf.mxu0
    %v2035 = vadd.f32 0.0, %v2034
    %2036 = vmatmul.f32.gmra.mxu0 %v354
    %v2037 = vpop.f32.mrf.mxu0
    %v2038 = vadd.f32 0.0, %v2037
    %2039 = vmatmul.f32.gmra.mxu0 %v357
    %v2040 = vpop.f32.mrf.mxu0
    %v2041 = vadd.f32 0.0, %v2040
    %2042 = vdwg.mxu0
    %v2043 = vmul.f32 %v2020, %v48
    %v2044 = vmul.f32 %v2023, %v49
    %v2045 = vmul.f32 %v2026, %v50
    %v2046 = vmul.f32 %v2029, %v51
    %v2047 = vmul.f32 %v2032, %v52
    %v2048 = vmul.f32 %v2035, %v53
    %v2049 = vmul.f32 %v2038, %v54
    %v2050 = vmul.f32 %v2041, %v55
    %2054 = vrot.lane.b32.xlu0 %v1989, 96
    %v2055 = vpop.permute.xlu0 %2054
    %2056 = vrot.lane.b32.xlu0 %v1992, 96
    %v2057 = vpop.permute.xlu0 %2056
    %2058 = vrot.lane.b32.xlu0 %v1995, 96
    %v2059 = vpop.permute.xlu0 %2058
    %v2061 = vsel %vm42, %v2043, 0
    %v2064 = vsel %vm42, %v2044, 0
    %v2067 = vsel %vm42, %v2045, 0
    %v2070 = vsel %vm42, %v2046, 0
    %v2073 = vsel %vm42, %v2047, 0
    %v2076 = vsel %vm42, %v2048, 0
    %v2079 = vsel %vm42, %v2049, 0
    %v2082 = vsel %vm42, %v2050, 0
    %v2084 = vsel %vm42, %v2055, 0
    %v2086 = vsel %vm42, %v2057, 0
    %v2088 = vsel %vm42, %v2059, 0
    %2090 = vmatpush.xpose.msra.mxu0 0.0
    %2091 = vmatpush.xpose.msra.mxu0 0.0
    %2092 = vmatpush.xpose.msra.mxu0 0.0
    %2093 = vmatpush.xpose.msra.mxu0 0.0
    %2094 = vmatpush.xpose.msra.mxu0 0.0
    %2095 = vmatpush.xpose.msra.mxu0 0.0
    %2096 = vmatpush.xpose.msra.mxu0 0.0
    %2097 = vmatpush.xpose.msra.mxu0 0.0
    %2098 = vmatpush.xpose.msra.mxu0 0.0
    %2099 = vmatpush.xpose.msra.mxu0 0.0
    %2100 = vmatpush.xpose.msra.mxu0 0.0
    %2101 = vmatpush.xpose.msra.mxu0 0.0
    %2102 = vmatpush.xpose.msra.mxu0 0.0
    %2103 = vmatpush.xpose.msra.mxu0 %v2088
    %2104 = vmatpush.xpose.msra.mxu0 %v2086
    %2105 = vmatpush.xpose.msra.mxu0 %v2084
    %2106 = vmatmul.f32.gmra.mxu0 %v2061
    %v2107 = vpop.f32.mrf.mxu0
    %v2108 = vadd.f32 0.0, %v2107
    %2109 = vmatmul.f32.gmra.mxu0 %v2064
    %v2110 = vpop.f32.mrf.mxu0
    %v2111 = vadd.f32 0.0, %v2110
    %2112 = vmatmul.f32.gmra.mxu0 %v2067
    %v2113 = vpop.f32.mrf.mxu0
    %v2114 = vadd.f32 0.0, %v2113
    %2115 = vmatmul.f32.gmra.mxu0 %v2070
    %v2116 = vpop.f32.mrf.mxu0
    %v2117 = vadd.f32 0.0, %v2116
    %2118 = vmatmul.f32.gmra.mxu0 %v2073
    %v2119 = vpop.f32.mrf.mxu0
    %v2120 = vadd.f32 0.0, %v2119
    %2121 = vmatmul.f32.gmra.mxu0 %v2076
    %v2122 = vpop.f32.mrf.mxu0
    %v2123 = vadd.f32 0.0, %v2122
    %2124 = vmatmul.f32.gmra.mxu0 %v2079
    %v2125 = vpop.f32.mrf.mxu0
    %v2126 = vadd.f32 0.0, %v2125
    %2127 = vmatmul.f32.gmra.mxu0 %v2082
    %v2128 = vpop.f32.mrf.mxu0
    %v2129 = vadd.f32 0.0, %v2128
    %2130 = vdwg.mxu0
    %v2131 = vmul.f32 %v2108, 0.35355338
    %v2132 = vmul.f32 %v2111, 0.35355338
    %v2133 = vmul.f32 %v2114, 0.35355338
    %v2134 = vmul.f32 %v2117, 0.35355338
    %v2135 = vmul.f32 %v2120, 0.35355338
    %v2136 = vmul.f32 %v2123, 0.35355338
    %v2137 = vmul.f32 %v2126, 0.35355338
    %v2138 = vmul.f32 %v2129, 0.35355338
    %v2139 = vadd.f32 %v2131, %v93
    %v2140 = vadd.f32 %v2132, %v94
    %v2141 = vadd.f32 %v2133, %v95
    %v2142 = vadd.f32 %v2134, %v96
    %v2143 = vadd.f32 %v2135, %v97
    %v2144 = vadd.f32 %v2136, %v98
    %v2145 = vadd.f32 %v2137, %v99
    %v2146 = vadd.f32 %v2138, %v100
    %v2147 = vsel %vm504, %v2139, -inf
    %2148 = vmax.xlane.f32.xlu0 %v2147
    %v2149 = vpop.xlane.xlu0 %2148
    %v2150 = vsel %vm504, %v2140, -inf
    %2151 = vmax.xlane.f32.xlu0 %v2150
    %v2152 = vpop.xlane.xlu0 %2151
    %v2153 = vsel %vm504, %v2141, -inf
    %2154 = vmax.xlane.f32.xlu0 %v2153
    %v2155 = vpop.xlane.xlu0 %2154
    %v2156 = vsel %vm504, %v2142, -inf
    %2157 = vmax.xlane.f32.xlu0 %v2156
    %v2158 = vpop.xlane.xlu0 %2157
    %v2159 = vsel %vm504, %v2143, -inf
    %2160 = vmax.xlane.f32.xlu0 %v2159
    %v2161 = vpop.xlane.xlu0 %2160
    %v2162 = vsel %vm504, %v2144, -inf
    %2163 = vmax.xlane.f32.xlu0 %v2162
    %v2164 = vpop.xlane.xlu0 %2163
    %v2165 = vsel %vm504, %v2145, -inf
    %2166 = vmax.xlane.f32.xlu0 %v2165
    %v2167 = vpop.xlane.xlu0 %2166
    %v2168 = vsel %vm504, %v2146, -inf
    %2169 = vmax.xlane.f32.xlu0 %v2168
    %v2170 = vpop.xlane.xlu0 %2169
    %v2171 = vsub.f32 %v2139, %v2149
    %v2172 = vsub.f32 %v2140, %v2152
    %v2173 = vsub.f32 %v2141, %v2155
    %v2174 = vsub.f32 %v2142, %v2158
    %v2175 = vsub.f32 %v2143, %v2161
    %v2176 = vsub.f32 %v2144, %v2164
    %v2177 = vsub.f32 %v2145, %v2167
    %v2178 = vsub.f32 %v2146, %v2170
    %v2179 = vmul.f32 %v2171, 1.442695
    %v2180 = vpow.pop %v2179
    %v2181 = vmul.f32 %v2172, 1.442695
    %v2182 = vpow.pop %v2181
    %v2183 = vmul.f32 %v2173, 1.442695
    %v2184 = vpow.pop %v2183
    %v2185 = vmul.f32 %v2174, 1.442695
    %v2186 = vpow.pop %v2185
    %v2187 = vmul.f32 %v2175, 1.442695
    %v2188 = vpow.pop %v2187
    %v2189 = vmul.f32 %v2176, 1.442695
    %v2190 = vpow.pop %v2189
    %v2191 = vmul.f32 %v2177, 1.442695
    %v2192 = vpow.pop %v2191
    %v2193 = vmul.f32 %v2178, 1.442695
    %v2194 = vpow.pop %v2193
    %v2195 = vsel %vm504, %v2180, 0.0
    %2196 = vadd.xlane.f32.xlu0 %v2195
    %v2197 = vpop.xlane.xlu0 %2196
    %v2198 = vsel %vm504, %v2182, 0.0
    %2199 = vadd.xlane.f32.xlu0 %v2198
    %v2200 = vpop.xlane.xlu0 %2199
    %v2201 = vsel %vm504, %v2184, 0.0
    %2202 = vadd.xlane.f32.xlu0 %v2201
    %v2203 = vpop.xlane.xlu0 %2202
    %v2204 = vsel %vm504, %v2186, 0.0
    %2205 = vadd.xlane.f32.xlu0 %v2204
    %v2206 = vpop.xlane.xlu0 %2205
    %v2207 = vsel %vm504, %v2188, 0.0
    %2208 = vadd.xlane.f32.xlu0 %v2207
    %v2209 = vpop.xlane.xlu0 %2208
    %v2210 = vsel %vm504, %v2190, 0.0
    %2211 = vadd.xlane.f32.xlu0 %v2210
    %v2212 = vpop.xlane.xlu0 %2211
    %v2213 = vsel %vm504, %v2192, 0.0
    %2214 = vadd.xlane.f32.xlu0 %v2213
    %v2215 = vpop.xlane.xlu0 %2214
    %v2216 = vsel %vm504, %v2194, 0.0
    %2217 = vadd.xlane.f32.xlu0 %v2216
    %v2218 = vpop.xlane.xlu0 %2217
    %v2219 = vrcp.pop %v2197
    %v2220 = vrcp.pop %v2200
    %v2221 = vrcp.pop %v2203
    %v2222 = vrcp.pop %v2206
    %v2223 = vrcp.pop %v2209
    %v2224 = vrcp.pop %v2212
    %v2225 = vrcp.pop %v2215
    %v2226 = vrcp.pop %v2218
    %v2227 = vmul.f32 %v2180, %v2219
    %v2228 = vmul.f32 %v2182, %v2220
    %v2229 = vmul.f32 %v2184, %v2221
    %v2230 = vmul.f32 %v2186, %v2222
    %v2231 = vmul.f32 %v2188, %v2223
    %v2232 = vmul.f32 %v2190, %v2224
    %v2233 = vmul.f32 %v2192, %v2225
    %v2234 = vmul.f32 %v2194, %v2226
    %2235 = vrot.lane.b32.xlu0 %v1989, 64
    %v2236 = vpop.permute.xlu0 %2235
    %2237 = vrot.lane.b32.xlu0 %v1992, 64
    %v2238 = vpop.permute.xlu0 %2237
    %2239 = vrot.lane.b32.xlu0 %v1995, 64
    %v2240 = vpop.permute.xlu0 %2239
    %v2245 = vsel %vm504, %v2227, 0
    %v2248 = vsel %vm504, %v2228, 0
    %v2251 = vsel %vm504, %v2229, 0
    %v2254 = vsel %vm504, %v2230, 0
    %v2257 = vsel %vm504, %v2231, 0
    %v2260 = vsel %vm504, %v2232, 0
    %v2263 = vsel %vm504, %v2233, 0
    %v2266 = vsel %vm504, %v2234, 0
    %2268 = vmatpush.msra.mxu0 0.0
    %2269 = vmatpush.msra.mxu0 0.0
    %2270 = vmatpush.msra.mxu0 0.0
    %2271 = vmatpush.msra.mxu0 0.0
    %2272 = vmatpush.msra.mxu0 0.0
    %2273 = vmatpush.msra.mxu0 0.0
    %2274 = vmatpush.msra.mxu0 0.0
    %2275 = vmatpush.msra.mxu0 0.0
    %2276 = vmatpush.msra.mxu0 0.0
    %2277 = vmatpush.msra.mxu0 0.0
    %2278 = vmatpush.msra.mxu0 0.0
    %2279 = vmatpush.msra.mxu0 0.0
    %2280 = vmatpush.msra.mxu0 0.0
    %2281 = vmatpush.msra.mxu0 %v2240
    %2282 = vmatpush.msra.mxu0 %v2238
    %2283 = vmatpush.msra.mxu0 %v2236
    %2284 = vmatmul.f32.gmra.mxu0 %v2245
    %v2285 = vpop.f32.mrf.mxu0
    %v2286 = vadd.f32 0.0, %v2285
    %2287 = vmatmul.f32.gmra.mxu0 %v2248
    %v2288 = vpop.f32.mrf.mxu0
    %v2289 = vadd.f32 0.0, %v2288
    %2290 = vmatmul.f32.gmra.mxu0 %v2251
    %v2291 = vpop.f32.mrf.mxu0
    %v2292 = vadd.f32 0.0, %v2291
    %2293 = vmatmul.f32.gmra.mxu0 %v2254
    %v2294 = vpop.f32.mrf.mxu0
    %v2295 = vadd.f32 0.0, %v2294
    %2296 = vmatmul.f32.gmra.mxu0 %v2257
    %v2297 = vpop.f32.mrf.mxu0
    %v2298 = vadd.f32 0.0, %v2297
    %2299 = vmatmul.f32.gmra.mxu0 %v2260
    %v2300 = vpop.f32.mrf.mxu0
    %v2301 = vadd.f32 0.0, %v2300
    %2302 = vmatmul.f32.gmra.mxu0 %v2263
    %v2303 = vpop.f32.mrf.mxu0
    %v2304 = vadd.f32 0.0, %v2303
    %2305 = vmatmul.f32.gmra.mxu0 %v2266
    %v2306 = vpop.f32.mrf.mxu0
    %v2307 = vadd.f32 0.0, %v2306
    %2308 = vdwg.mxu0
    %v2309 = vmul.f32 %v2286, %v48
    %v2310 = vmul.f32 %v2289, %v49
    %v2311 = vmul.f32 %v2292, %v50
    %v2312 = vmul.f32 %v2295, %v51
    %v2313 = vmul.f32 %v2298, %v52
    %v2314 = vmul.f32 %v2301, %v53
    %v2315 = vmul.f32 %v2304, %v54
    %v2316 = vmul.f32 %v2307, %v55
    %2317 = vmatpush.msra.mxu0 0.0
    %2318 = vmatpush.msra.mxu0 0.0
    %2319 = vmatpush.msra.mxu0 0.0
    %2320 = vmatpush.msra.mxu0 0.0
    %2321 = vmatpush.msra.mxu0 0.0
    %2322 = vmatpush.msra.mxu0 0.0
    %2323 = vmatpush.msra.mxu0 0.0
    %2324 = vmatpush.msra.mxu0 0.0
    %2325 = vmatpush.msra.mxu0 %v2316
    %2326 = vmatpush.msra.mxu0 %v2315
    %2327 = vmatpush.msra.mxu0 %v2314
    %2328 = vmatpush.msra.mxu0 %v2313
    %2329 = vmatpush.msra.mxu0 %v2312
    %2330 = vmatpush.msra.mxu0 %v2311
    %2331 = vmatpush.msra.mxu0 %v2310
    %2332 = vmatpush.msra.mxu0 %v2309
    %2333 = vmatmul.f32.gmra.mxu0 %v677
    %v2334 = vpop.f32.mrf.mxu0
    %v2335 = vadd.f32 0.0, %v2334
    %2336 = vmatmul.f32.gmra.mxu0 %v680
    %v2337 = vpop.f32.mrf.mxu0
    %v2338 = vadd.f32 0.0, %v2337
    %2339 = vdwg.mxu0
    %v2340 = vperm.slane %v2001, 0
    %v2342 = vsel %vm42, %v2335, 0
    %v2345 = vsel %vm42, %v2338, 0
    %2347 = vmatpush.msra.mxu0 0.0
    %2348 = vmatpush.msra.mxu0 0.0
    %2349 = vmatpush.msra.mxu0 0.0
    %2350 = vmatpush.msra.mxu0 0.0
    %2351 = vmatpush.msra.mxu0 0.0
    %2352 = vmatpush.msra.mxu0 0.0
    %2353 = vmatpush.msra.mxu0 0.0
    %2354 = vmatpush.msra.mxu0 0.0
    %2355 = vmatpush.msra.mxu0 0.0
    %2356 = vmatpush.msra.mxu0 0.0
    %2357 = vmatpush.msra.mxu0 0.0
    %2358 = vmatpush.msra.mxu0 0.0
    %2359 = vmatpush.msra.mxu0 %v2000
    %2360 = vmatpush.msra.mxu0 %v1999
    %2361 = vmatpush.msra.mxu0 %v1998
    %2362 = vmatpush.msra.mxu0 %v1997
    %2363 = vmatmul.f32.gmra.mxu0 %v2342
    %v2364 = vpop.f32.mrf.mxu0
    %v2365 = vadd.f32 %v2340, %v2364
    %2366 = vmatmul.f32.gmra.mxu0 %v2345
    %v2367 = vpop.f32.mrf.mxu0
    %v2368 = vadd.f32 %v2340, %v2367
    %2369 = vdwg.mxu0
    %v2370 = vld [vmem:[#allocation4 + $0x540] sm:$0xff]
    %v2371 = vld [vmem:[#allocation4 + $0x548] sm:$0xff]
    %v2372 = vld [vmem:[#allocation4 + $0x550] sm:$0xff]
    %v2373 = vld [vmem:[#allocation4 + $0x558] sm:$0xff]
    %v2374 = vld [vmem:[#allocation4 + $0x560] sm:$0x1]
    %2375 = vmatpush.msra.mxu0 0.0
    %2376 = vmatpush.msra.mxu0 0.0
    %2377 = vmatpush.msra.mxu0 0.0
    %2378 = vmatpush.msra.mxu0 0.0
    %2379 = vmatpush.msra.mxu0 0.0
    %2380 = vmatpush.msra.mxu0 0.0
    %2381 = vmatpush.msra.mxu0 0.0
    %2382 = vmatpush.msra.mxu0 0.0
    %2383 = vmatpush.msra.mxu0 0.0
    %2384 = vmatpush.msra.mxu0 0.0
    %2385 = vmatpush.msra.mxu0 0.0
    %2386 = vmatpush.msra.mxu0 0.0
    %2387 = vmatpush.msra.mxu0 0.0
    %2388 = vmatpush.msra.mxu0 %v1995
    %2389 = vmatpush.msra.mxu0 %v1992
    %2390 = vmatpush.msra.mxu0 %v1989
    %2391 = vmatmul.f32.gmra.mxu0 %v741
    %v2392 = vpop.f32.mrf.mxu0
    %v2393 = vadd.f32 0.0, %v2392
    %2394 = vmatmul.f32.gmra.mxu0 %v744
    %v2395 = vpop.f32.mrf.mxu0
    %v2396 = vadd.f32 0.0, %v2395
    %2397 = vmatmul.f32.gmra.mxu0 %v747
    %v2398 = vpop.f32.mrf.mxu0
    %v2399 = vadd.f32 0.0, %v2398
    %2400 = vmatmul.f32.gmra.mxu0 %v750
    %v2401 = vpop.f32.mrf.mxu0
    %v2402 = vadd.f32 0.0, %v2401
    %2403 = vmatmul.f32.gmra.mxu0 %v753
    %v2404 = vpop.f32.mrf.mxu0
    %v2405 = vadd.f32 0.0, %v2404
    %2406 = vmatmul.f32.gmra.mxu0 %v756
    %v2407 = vpop.f32.mrf.mxu0
    %v2408 = vadd.f32 0.0, %v2407
    %2409 = vmatmul.f32.gmra.mxu0 %v759
    %v2410 = vpop.f32.mrf.mxu0
    %v2411 = vadd.f32 0.0, %v2410
    %2412 = vmatmul.f32.gmra.mxu0 %v762
    %v2413 = vpop.f32.mrf.mxu0
    %v2414 = vadd.f32 0.0, %v2413
    %2415 = vmatmul.f32.gmra.mxu0 %v765
    %v2416 = vpop.f32.mrf.mxu0
    %v2417 = vadd.f32 0.0, %v2416
    %2418 = vmatmul.f32.gmra.mxu0 %v768
    %v2419 = vpop.f32.mrf.mxu0
    %v2420 = vadd.f32 0.0, %v2419
    %2421 = vmatmul.f32.gmra.mxu0 %v771
    %v2422 = vpop.f32.mrf.mxu0
    %v2423 = vadd.f32 0.0, %v2422
    %2424 = vmatmul.f32.gmra.mxu0 %v774
    %v2425 = vpop.f32.mrf.mxu0
    %v2426 = vadd.f32 0.0, %v2425
    %2427 = vdwg.mxu0
    %v2428 = vmul.f32 %v2393, %v56
    %v2429 = vmul.f32 %v2396, %v57
    %v2430 = vmul.f32 %v2399, %v58
    %v2431 = vmul.f32 %v2402, %v59
    %v2432 = vmul.f32 %v2405, %v60
    %v2433 = vmul.f32 %v2408, %v61
    %v2434 = vmul.f32 %v2411, %v62
    %v2435 = vmul.f32 %v2414, %v63
    %v2436 = vmul.f32 %v2417, %v64
    %v2437 = vmul.f32 %v2420, %v65
    %v2438 = vmul.f32 %v2423, %v66
    %v2439 = vmul.f32 %v2426, %v67
    %2442 = vrot.lane.b32.xlu0 %v1951, 96
    %v2443 = vpop.permute.xlu0 %2442
    %2444 = vrot.lane.b32.xlu0 %v1954, 96
    %v2445 = vpop.permute.xlu0 %2444
    %v2447 = vsel %vm42, %v2428, 0
    %v2450 = vsel %vm42, %v2429, 0
    %v2453 = vsel %vm42, %v2430, 0
    %v2456 = vsel %vm42, %v2431, 0
    %v2459 = vsel %vm42, %v2432, 0
    %v2462 = vsel %vm42, %v2433, 0
    %v2465 = vsel %vm42, %v2434, 0
    %v2468 = vsel %vm42, %v2435, 0
    %v2471 = vsel %vm42, %v2436, 0
    %v2474 = vsel %vm42, %v2437, 0
    %v2477 = vsel %vm42, %v2438, 0
    %v2480 = vsel %vm42, %v2439, 0
    %v2482 = vsel %vm42, %v2443, 0
    %v2484 = vsel %vm42, %v2445, 0
    %2486 = vmatpush.xpose.msra.mxu0 0.0
    %2487 = vmatpush.xpose.msra.mxu0 0.0
    %2488 = vmatpush.xpose.msra.mxu0 0.0
    %2489 = vmatpush.xpose.msra.mxu0 0.0
    %2490 = vmatpush.xpose.msra.mxu0 0.0
    %2491 = vmatpush.xpose.msra.mxu0 0.0
    %2492 = vmatpush.xpose.msra.mxu0 0.0
    %2493 = vmatpush.xpose.msra.mxu0 0.0
    %2494 = vmatpush.xpose.msra.mxu0 0.0
    %2495 = vmatpush.xpose.msra.mxu0 0.0
    %2496 = vmatpush.xpose.msra.mxu0 0.0
    %2497 = vmatpush.xpose.msra.mxu0 0.0
    %2498 = vmatpush.xpose.msra.mxu0 0.0
    %2499 = vmatpush.xpose.msra.mxu0 0.0
    %2500 = vmatpush.xpose.msra.mxu0 %v2484
    %2501 = vmatpush.xpose.msra.mxu0 %v2482
    %2502 = vmatmul.f32.gmra.mxu0 %v2447
    %v2503 = vpop.f32.mrf.mxu0
    %v2504 = vadd.f32 0.0, %v2503
    %2505 = vmatmul.f32.gmra.mxu0 %v2450
    %v2506 = vpop.f32.mrf.mxu0
    %v2507 = vadd.f32 0.0, %v2506
    %2508 = vmatmul.f32.gmra.mxu0 %v2453
    %v2509 = vpop.f32.mrf.mxu0
    %v2510 = vadd.f32 0.0, %v2509
    %2511 = vmatmul.f32.gmra.mxu0 %v2456
    %v2512 = vpop.f32.mrf.mxu0
    %v2513 = vadd.f32 0.0, %v2512
    %2514 = vmatmul.f32.gmra.mxu0 %v2459
    %v2515 = vpop.f32.mrf.mxu0
    %v2516 = vadd.f32 0.0, %v2515
    %2517 = vmatmul.f32.gmra.mxu0 %v2462
    %v2518 = vpop.f32.mrf.mxu0
    %v2519 = vadd.f32 0.0, %v2518
    %2520 = vmatmul.f32.gmra.mxu0 %v2465
    %v2521 = vpop.f32.mrf.mxu0
    %v2522 = vadd.f32 0.0, %v2521
    %2523 = vmatmul.f32.gmra.mxu0 %v2468
    %v2524 = vpop.f32.mrf.mxu0
    %v2525 = vadd.f32 0.0, %v2524
    %2526 = vmatmul.f32.gmra.mxu0 %v2471
    %v2527 = vpop.f32.mrf.mxu0
    %v2528 = vadd.f32 0.0, %v2527
    %2529 = vmatmul.f32.gmra.mxu0 %v2474
    %v2530 = vpop.f32.mrf.mxu0
    %v2531 = vadd.f32 0.0, %v2530
    %2532 = vmatmul.f32.gmra.mxu0 %v2477
    %v2533 = vpop.f32.mrf.mxu0
    %v2534 = vadd.f32 0.0, %v2533
    %2535 = vmatmul.f32.gmra.mxu0 %v2480
    %v2536 = vpop.f32.mrf.mxu0
    %v2537 = vadd.f32 0.0, %v2536
    %2538 = vdwg.mxu0
    %v2539 = vmul.f32 %v2504, 0.35355338
    %v2540 = vmul.f32 %v2507, 0.35355338
    %v2541 = vmul.f32 %v2510, 0.35355338
    %v2542 = vmul.f32 %v2513, 0.35355338
    %v2543 = vmul.f32 %v2516, 0.35355338
    %v2544 = vmul.f32 %v2519, 0.35355338
    %v2545 = vmul.f32 %v2522, 0.35355338
    %v2546 = vmul.f32 %v2525, 0.35355338
    %v2547 = vmul.f32 %v2528, 0.35355338
    %v2548 = vmul.f32 %v2531, 0.35355338
    %v2549 = vmul.f32 %v2534, 0.35355338
    %v2550 = vmul.f32 %v2537, 0.35355338
    %v2551 = vadd.f32 %v2539, %v101
    %v2552 = vadd.f32 %v2540, %v102
    %v2553 = vadd.f32 %v2541, %v103
    %v2554 = vadd.f32 %v2542, %v104
    %v2555 = vadd.f32 %v2543, %v105
    %v2556 = vadd.f32 %v2544, %v106
    %v2557 = vadd.f32 %v2545, %v107
    %v2558 = vadd.f32 %v2546, %v108
    %v2559 = vadd.f32 %v2547, %v109
    %v2560 = vadd.f32 %v2548, %v110
    %v2561 = vadd.f32 %v2549, %v111
    %v2562 = vadd.f32 %v2550, %v112
    %v2563 = vsel %vm334, %v2551, -inf
    %2564 = vmax.xlane.f32.xlu0 %v2563
    %v2565 = vpop.xlane.xlu0 %2564
    %v2566 = vsel %vm334, %v2552, -inf
    %2567 = vmax.xlane.f32.xlu0 %v2566
    %v2568 = vpop.xlane.xlu0 %2567
    %v2569 = vsel %vm334, %v2553, -inf
    %2570 = vmax.xlane.f32.xlu0 %v2569
    %v2571 = vpop.xlane.xlu0 %2570
    %v2572 = vsel %vm334, %v2554, -inf
    %2573 = vmax.xlane.f32.xlu0 %v2572
    %v2574 = vpop.xlane.xlu0 %2573
    %v2575 = vsel %vm334, %v2555, -inf
    %2576 = vmax.xlane.f32.xlu0 %v2575
    %v2577 = vpop.xlane.xlu0 %2576
    %v2578 = vsel %vm334, %v2556, -inf
    %2579 = vmax.xlane.f32.xlu0 %v2578
    %v2580 = vpop.xlane.xlu0 %2579
    %v2581 = vsel %vm334, %v2557, -inf
    %2582 = vmax.xlane.f32.xlu0 %v2581
    %v2583 = vpop.xlane.xlu0 %2582
    %v2584 = vsel %vm334, %v2558, -inf
    %2585 = vmax.xlane.f32.xlu0 %v2584
    %v2586 = vpop.xlane.xlu0 %2585
    %v2587 = vsel %vm334, %v2559, -inf
    %2588 = vmax.xlane.f32.xlu0 %v2587
    %v2589 = vpop.xlane.xlu0 %2588
    %v2590 = vsel %vm334, %v2560, -inf
    %2591 = vmax.xlane.f32.xlu0 %v2590
    %v2592 = vpop.xlane.xlu0 %2591
    %v2593 = vsel %vm334, %v2561, -inf
    %2594 = vmax.xlane.f32.xlu0 %v2593
    %v2595 = vpop.xlane.xlu0 %2594
    %v2596 = vsel %vm334, %v2562, -inf
    %2597 = vmax.xlane.f32.xlu0 %v2596
    %v2598 = vpop.xlane.xlu0 %2597
    %v2599 = vsub.f32 %v2551, %v2565
    %v2600 = vsub.f32 %v2552, %v2568
    %v2601 = vsub.f32 %v2553, %v2571
    %v2602 = vsub.f32 %v2554, %v2574
    %v2603 = vsub.f32 %v2555, %v2577
    %v2604 = vsub.f32 %v2556, %v2580
    %v2605 = vsub.f32 %v2557, %v2583
    %v2606 = vsub.f32 %v2558, %v2586
    %v2607 = vsub.f32 %v2559, %v2589
    %v2608 = vsub.f32 %v2560, %v2592
    %v2609 = vsub.f32 %v2561, %v2595
    %v2610 = vsub.f32 %v2562, %v2598
    %v2611 = vmul.f32 %v2599, 1.442695
    %v2612 = vpow.pop %v2611
    %v2613 = vmul.f32 %v2600, 1.442695
    %v2614 = vpow.pop %v2613
    %v2615 = vmul.f32 %v2601, 1.442695
    %v2616 = vpow.pop %v2615
    %v2617 = vmul.f32 %v2602, 1.442695
    %v2618 = vpow.pop %v2617
    %v2619 = vmul.f32 %v2603, 1.442695
    %v2620 = vpow.pop %v2619
    %v2621 = vmul.f32 %v2604, 1.442695
    %v2622 = vpow.pop %v2621
    %v2623 = vmul.f32 %v2605, 1.442695
    %v2624 = vpow.pop %v2623
    %v2625 = vmul.f32 %v2606, 1.442695
    %v2626 = vpow.pop %v2625
    %v2627 = vmul.f32 %v2607, 1.442695
    %v2628 = vpow.pop %v2627
    %v2629 = vmul.f32 %v2608, 1.442695
    %v2630 = vpow.pop %v2629
    %v2631 = vmul.f32 %v2609, 1.442695
    %v2632 = vpow.pop %v2631
    %v2633 = vmul.f32 %v2610, 1.442695
    %v2634 = vpow.pop %v2633
    %v2635 = vsel %vm334, %v2612, 0.0
    %2636 = vadd.xlane.f32.xlu0 %v2635
    %v2637 = vpop.xlane.xlu0 %2636
    %v2638 = vsel %vm334, %v2614, 0.0
    %2639 = vadd.xlane.f32.xlu0 %v2638
    %v2640 = vpop.xlane.xlu0 %2639
    %v2641 = vsel %vm334, %v2616, 0.0
    %2642 = vadd.xlane.f32.xlu0 %v2641
    %v2643 = vpop.xlane.xlu0 %2642
    %v2644 = vsel %vm334, %v2618, 0.0
    %2645 = vadd.xlane.f32.xlu0 %v2644
    %v2646 = vpop.xlane.xlu0 %2645
    %v2647 = vsel %vm334, %v2620, 0.0
    %2648 = vadd.xlane.f32.xlu0 %v2647
    %v2649 = vpop.xlane.xlu0 %2648
    %v2650 = vsel %vm334, %v2622, 0.0
    %2651 = vadd.xlane.f32.xlu0 %v2650
    %v2652 = vpop.xlane.xlu0 %2651
    %v2653 = vsel %vm334, %v2624, 0.0
    %2654 = vadd.xlane.f32.xlu0 %v2653
    %v2655 = vpop.xlane.xlu0 %2654
    %v2656 = vsel %vm334, %v2626, 0.0
    %2657 = vadd.xlane.f32.xlu0 %v2656
    %v2658 = vpop.xlane.xlu0 %2657
    %v2659 = vsel %vm334, %v2628, 0.0
    %2660 = vadd.xlane.f32.xlu0 %v2659
    %v2661 = vpop.xlane.xlu0 %2660
    %v2662 = vsel %vm334, %v2630, 0.0
    %2663 = vadd.xlane.f32.xlu0 %v2662
    %v2664 = vpop.xlane.xlu0 %2663
    %v2665 = vsel %vm334, %v2632, 0.0
    %2666 = vadd.xlane.f32.xlu0 %v2665
    %v2667 = vpop.xlane.xlu0 %2666
    %v2668 = vsel %vm334, %v2634, 0.0
    %2669 = vadd.xlane.f32.xlu0 %v2668
    %v2670 = vpop.xlane.xlu0 %2669
    %v2671 = vrcp.pop %v2637
    %v2672 = vrcp.pop %v2640
    %v2673 = vrcp.pop %v2643
    %v2674 = vrcp.pop %v2646
    %v2675 = vrcp.pop %v2649
    %v2676 = vrcp.pop %v2652
    %v2677 = vrcp.pop %v2655
    %v2678 = vrcp.pop %v2658
    %v2679 = vrcp.pop %v2661
    %v2680 = vrcp.pop %v2664
    %v2681 = vrcp.pop %v2667
    %v2682 = vrcp.pop %v2670
    %v2683 = vmul.f32 %v2612, %v2671
    %v2684 = vmul.f32 %v2614, %v2672
    %v2685 = vmul.f32 %v2616, %v2673
    %v2686 = vmul.f32 %v2618, %v2674
    %v2687 = vmul.f32 %v2620, %v2675
    %v2688 = vmul.f32 %v2622, %v2676
    %v2689 = vmul.f32 %v2624, %v2677
    %v2690 = vmul.f32 %v2626, %v2678
    %v2691 = vmul.f32 %v2628, %v2679
    %v2692 = vmul.f32 %v2630, %v2680
    %v2693 = vmul.f32 %v2632, %v2681
    %v2694 = vmul.f32 %v2634, %v2682
    %2695 = vrot.lane.b32.xlu0 %v1951, 64
    %v2696 = vpop.permute.xlu0 %2695
    %2697 = vrot.lane.b32.xlu0 %v1954, 64
    %v2698 = vpop.permute.xlu0 %2697
    %v2702 = vsel %vm334, %v2683, 0
    %v2705 = vsel %vm334, %v2684, 0
    %v2708 = vsel %vm334, %v2685, 0
    %v2711 = vsel %vm334, %v2686, 0
    %v2714 = vsel %vm334, %v2687, 0
    %v2717 = vsel %vm334, %v2688, 0
    %v2720 = vsel %vm334, %v2689, 0
    %v2723 = vsel %vm334, %v2690, 0
    %v2726 = vsel %vm334, %v2691, 0
    %v2729 = vsel %vm334, %v2692, 0
    %v2732 = vsel %vm334, %v2693, 0
    %v2735 = vsel %vm334, %v2694, 0
    %2737 = vmatpush.msra.mxu0 0.0
    %2738 = vmatpush.msra.mxu0 0.0
    %2739 = vmatpush.msra.mxu0 0.0
    %2740 = vmatpush.msra.mxu0 0.0
    %2741 = vmatpush.msra.mxu0 0.0
    %2742 = vmatpush.msra.mxu0 0.0
    %2743 = vmatpush.msra.mxu0 0.0
    %2744 = vmatpush.msra.mxu0 0.0
    %2745 = vmatpush.msra.mxu0 0.0
    %2746 = vmatpush.msra.mxu0 0.0
    %2747 = vmatpush.msra.mxu0 0.0
    %2748 = vmatpush.msra.mxu0 0.0
    %2749 = vmatpush.msra.mxu0 0.0
    %2750 = vmatpush.msra.mxu0 0.0
    %2751 = vmatpush.msra.mxu0 %v2698
    %2752 = vmatpush.msra.mxu0 %v2696
    %2753 = vmatmul.f32.gmra.mxu0 %v2702
    %v2754 = vpop.f32.mrf.mxu0
    %v2755 = vadd.f32 0.0, %v2754
    %2756 = vmatmul.f32.gmra.mxu0 %v2705
    %v2757 = vpop.f32.mrf.mxu0
    %v2758 = vadd.f32 0.0, %v2757
    %2759 = vmatmul.f32.gmra.mxu0 %v2708
    %v2760 = vpop.f32.mrf.mxu0
    %v2761 = vadd.f32 0.0, %v2760
    %2762 = vmatmul.f32.gmra.mxu0 %v2711
    %v2763 = vpop.f32.mrf.mxu0
    %v2764 = vadd.f32 0.0, %v2763
    %2765 = vmatmul.f32.gmra.mxu0 %v2714
    %v2766 = vpop.f32.mrf.mxu0
    %v2767 = vadd.f32 0.0, %v2766
    %2768 = vmatmul.f32.gmra.mxu0 %v2717
    %v2769 = vpop.f32.mrf.mxu0
    %v2770 = vadd.f32 0.0, %v2769
    %2771 = vmatmul.f32.gmra.mxu0 %v2720
    %v2772 = vpop.f32.mrf.mxu0
    %v2773 = vadd.f32 0.0, %v2772
    %2774 = vmatmul.f32.gmra.mxu0 %v2723
    %v2775 = vpop.f32.mrf.mxu0
    %v2776 = vadd.f32 0.0, %v2775
    %2777 = vmatmul.f32.gmra.mxu0 %v2726
    %v2778 = vpop.f32.mrf.mxu0
    %v2779 = vadd.f32 0.0, %v2778
    %2780 = vmatmul.f32.gmra.mxu0 %v2729
    %v2781 = vpop.f32.mrf.mxu0
    %v2782 = vadd.f32 0.0, %v2781
    %2783 = vmatmul.f32.gmra.mxu0 %v2732
    %v2784 = vpop.f32.mrf.mxu0
    %v2785 = vadd.f32 0.0, %v2784
    %2786 = vmatmul.f32.gmra.mxu0 %v2735
    %v2787 = vpop.f32.mrf.mxu0
    %v2788 = vadd.f32 0.0, %v2787
    %2789 = vdwg.mxu0
    %v2790 = vmul.f32 %v2755, %v56
    %v2791 = vmul.f32 %v2758, %v57
    %v2792 = vmul.f32 %v2761, %v58
    %v2793 = vmul.f32 %v2764, %v59
    %v2794 = vmul.f32 %v2767, %v60
    %v2795 = vmul.f32 %v2770, %v61
    %v2796 = vmul.f32 %v2773, %v62
    %v2797 = vmul.f32 %v2776, %v63
    %v2798 = vmul.f32 %v2779, %v64
    %v2799 = vmul.f32 %v2782, %v65
    %v2800 = vmul.f32 %v2785, %v66
    %v2801 = vmul.f32 %v2788, %v67
    %2802 = vmatpush.msra.mxu0 0.0
    %2803 = vmatpush.msra.mxu0 0.0
    %2804 = vmatpush.msra.mxu0 0.0
    %2805 = vmatpush.msra.mxu0 0.0
    %2806 = vmatpush.msra.mxu0 %v2801
    %2807 = vmatpush.msra.mxu0 %v2800
    %2808 = vmatpush.msra.mxu0 %v2799
    %2809 = vmatpush.msra.mxu0 %v2798
    %2810 = vmatpush.msra.mxu0 %v2797
    %2811 = vmatpush.msra.mxu0 %v2796
    %2812 = vmatpush.msra.mxu0 %v2795
    %2813 = vmatpush.msra.mxu0 %v2794
    %2814 = vmatpush.msra.mxu0 %v2793
    %2815 = vmatpush.msra.mxu0 %v2792
    %2816 = vmatpush.msra.mxu0 %v2791
    %2817 = vmatpush.msra.mxu0 %v2790
    %2818 = vmatmul.f32.gmra.mxu0 %v1205
    %v2819 = vpop.f32.mrf.mxu0
    %v2820 = vadd.f32 0.0, %v2819
    %2821 = vmatmul.f32.gmra.mxu0 %v1208
    %v2822 = vpop.f32.mrf.mxu0
    %v2823 = vadd.f32 0.0, %v2822
    %2824 = vmatmul.f32.gmra.mxu0 %v1211
    %v2825 = vpop.f32.mrf.mxu0
    %v2826 = vadd.f32 0.0, %v2825
    %2827 = vdwg.mxu0
    %v2828 = vperm.slane %v2374, 0
    %v2830 = vsel %vm42, %v2820, 0
    %v2833 = vsel %vm42, %v2823, 0
    %v2836 = vsel %vm42, %v2826, 0
    %2838 = vmatpush.msra.mxu0 0.0
    %2839 = vmatpush.msra.mxu0 0.0
    %2840 = vmatpush.msra.mxu0 0.0
    %2841 = vmatpush.msra.mxu0 0.0
    %2842 = vmatpush.msra.mxu0 0.0
    %2843 = vmatpush.msra.mxu0 0.0
    %2844 = vmatpush.msra.mxu0 0.0
    %2845 = vmatpush.msra.mxu0 0.0
    %2846 = vmatpush.msra.mxu0 0.0
    %2847 = vmatpush.msra.mxu0 0.0
    %2848 = vmatpush.msra.mxu0 0.0
    %2849 = vmatpush.msra.mxu0 0.0
    %2850 = vmatpush.msra.mxu0 %v2373
    %2851 = vmatpush.msra.mxu0 %v2372
    %2852 = vmatpush.msra.mxu0 %v2371
    %2853 = vmatpush.msra.mxu0 %v2370
    %2854 = vmatmul.f32.gmra.mxu0 %v2830
    %v2855 = vpop.f32.mrf.mxu0
    %v2856 = vadd.f32 %v2828, %v2855
    %2857 = vmatmul.f32.gmra.mxu0 %v2833
    %v2858 = vpop.f32.mrf.mxu0
    %v2859 = vadd.f32 %v2828, %v2858
    %2860 = vmatmul.f32.gmra.mxu0 %v2836
    %v2861 = vpop.f32.mrf.mxu0
    %v2862 = vadd.f32 %v2828, %v2861
    %2863 = vdwg.mxu0
    %v2864 = vld [vmem:[#allocation2] sm:$0xff]
    %v2865 = vld [vmem:[#allocation2 + $0x8] sm:$0xff]
    %v2866 = vadd.f32 %v2864, %v2365
    %v2867 = vadd.f32 %v2865, %v2368
    %2868 = vst.msk [vmem:[#allocation2] sm:$0xff] %vm42, %v2866
    %2869 = vst.msk [vmem:[#allocation2 + $0x8] sm:$0xff] %vm42, %v2867
    %v2870 = vld [vmem:[#allocation2 + $0x10] sm:$0xff]
    %v2871 = vld [vmem:[#allocation2 + $0x18] sm:$0xff]
    %v2872 = vld [vmem:[#allocation2 + $0x20] sm:$0xff]
    %v2873 = vadd.f32 %v2870, %v2856
    %v2874 = vadd.f32 %v2871, %v2859
    %v2875 = vadd.f32 %v2872, %v2862
    %2876 = vst.msk [vmem:[#allocation2 + $0x10] sm:$0xff] %vm42, %v2873
    %2877 = vst.msk [vmem:[#allocation2 + $0x18] sm:$0xff] %vm42, %v2874
    %2878 = vst.msk [vmem:[#allocation2 + $0x20] sm:$0xff] %vm42, %v2875
    %v2879 = vld [vmem:[#allocation2] sm:$0xff]
    %v2880 = vld [vmem:[#allocation2 + $0x8] sm:$0xff]
    %v2881 = vld [vmem:[#allocation2 + $0x10] sm:$0xff]
    %v2882 = vld [vmem:[#allocation2 + $0x18] sm:$0xff]
    %v2883 = vld [vmem:[#allocation2 + $0x20] sm:$0xff]
    %v2884 = vld [vmem:[#allocation4 + $0x478] sm:$0x1]
    %v2885 = vld [vmem:[#allocation4 + $0x480] sm:$0x1]
    %v2886 = vld [vmem:[#allocation4 + $0x568] sm:$0x1]
    %v2887 = vld [vmem:[#allocation4 + $0x570] sm:$0x1]
    %v2888 = vsel %vm42, %v2879, 0.0
    %2889 = vadd.xlane.f32.xlu0 %v2888
    %v2890 = vpop.xlane.xlu0 %2889
    %v2891 = vsel %vm42, %v2880, 0.0
    %2892 = vadd.xlane.f32.xlu0 %v2891
    %v2893 = vpop.xlane.xlu0 %2892
    %v2894 = vsel %vm42, %v2881, 0.0
    %2895 = vadd.xlane.f32.xlu0 %v2894
    %v2896 = vpop.xlane.xlu0 %2895
    %v2897 = vsel %vm42, %v2882, 0.0
    %2898 = vadd.xlane.f32.xlu0 %v2897
    %v2899 = vpop.xlane.xlu0 %2898
    %v2900 = vsel %vm42, %v2883, 0.0
    %2901 = vadd.xlane.f32.xlu0 %v2900
    %v2902 = vpop.xlane.xlu0 %2901
    %v2903 = vmul.f32 %v2890, %v143
    %v2904 = vmul.f32 %v2893, %v143
    %v2905 = vmul.f32 %v2896, %v143
    %v2906 = vmul.f32 %v2899, %v143
    %v2907 = vmul.f32 %v2902, %v143
    %v2908 = vsub.f32 %v2879, %v2903
    %v2909 = vsub.f32 %v2880, %v2904
    %v2910 = vsub.f32 %v2881, %v2905
    %v2911 = vsub.f32 %v2882, %v2906
    %v2912 = vsub.f32 %v2883, %v2907
    %v2913 = vmul.f32 %v2908, %v2908
    %v2914 = vmul.f32 %v2909, %v2909
    %v2915 = vmul.f32 %v2910, %v2910
    %v2916 = vmul.f32 %v2911, %v2911
    %v2917 = vmul.f32 %v2912, %v2912
    %v2918 = vsel %vm42, %v2913, 0.0
    %2919 = vadd.xlane.f32.xlu0 %v2918
    %v2920 = vpop.xlane.xlu0 %2919
    %v2921 = vsel %vm42, %v2914, 0.0
    %2922 = vadd.xlane.f32.xlu0 %v2921
    %v2923 = vpop.xlane.xlu0 %2922
    %v2924 = vsel %vm42, %v2915, 0.0
    %2925 = vadd.xlane.f32.xlu0 %v2924
    %v2926 = vpop.xlane.xlu0 %2925
    %v2927 = vsel %vm42, %v2916, 0.0
    %2928 = vadd.xlane.f32.xlu0 %v2927
    %v2929 = vpop.xlane.xlu0 %2928
    %v2930 = vsel %vm42, %v2917, 0.0
    %2931 = vadd.xlane.f32.xlu0 %v2930
    %v2932 = vpop.xlane.xlu0 %2931
    %v2933 = vmul.f32 %v2920, %v143
    %v2934 = vmul.f32 %v2923, %v143
    %v2935 = vmul.f32 %v2926, %v143
    %v2936 = vmul.f32 %v2929, %v143
    %v2937 = vmul.f32 %v2932, %v143
    %v2938 = vadd.f32 %v2933, 1e-05
    %v2939 = vadd.f32 %v2934, 1e-05
    %v2940 = vadd.f32 %v2935, 1e-05
    %v2941 = vadd.f32 %v2936, 1e-05
    %v2942 = vadd.f32 %v2937, 1e-05
    %v2943 = vrsqrt.pop %v2938
    %v2944 = vmul.f32 %v2943, %v2938
    %v2945 = vmul.f32 %v2944, %v2943
    %v2946 = vmul.f32 0.5, %v2945
    %v2947 = vsub.f32 1.5, %v2946
    %v2948 = vmul.f32 %v2943, %v2947
    %vm2949 = vweird.f32 %v2938
    %vm2950 = vweird.f32 %v2943
    %vm2951 = vmor %vm2949, %vm2950
    %v2952 = vsel %vm2951, %v2943, %v2948
    %v2953 = vrsqrt.pop %v2939
    %v2954 = vmul.f32 %v2953, %v2939
    %v2955 = vmul.f32 %v2954, %v2953
    %v2956 = vmul.f32 0.5, %v2955
    %v2957 = vsub.f32 1.5, %v2956
    %v2958 = vmul.f32 %v2953, %v2957
    %vm2959 = vweird.f32 %v2939
    %vm2960 = vweird.f32 %v2953
    %vm2961 = vmor %vm2959, %vm2960
    %v2962 = vsel %vm2961, %v2953, %v2958
    %v2963 = vrsqrt.pop %v2940
    %v2964 = vmul.f32 %v2963, %v2940
    %v2965 = vmul.f32 %v2964, %v2963
    %v2966 = vmul.f32 0.5, %v2965
    %v2967 = vsub.f32 1.5, %v2966
    %v2968 = vmul.f32 %v2963, %v2967
    %vm2969 = vweird.f32 %v2940
    %vm2970 = vweird.f32 %v2963
    %vm2971 = vmor %vm2969, %vm2970
    %v2972 = vsel %vm2971, %v2963, %v2968
    %v2973 = vrsqrt.pop %v2941
    %v2974 = vmul.f32 %v2973, %v2941
    %v2975 = vmul.f32 %v2974, %v2973
    %v2976 = vmul.f32 0.5, %v2975
    %v2977 = vsub.f32 1.5, %v2976
    %v2978 = vmul.f32 %v2973, %v2977
    %vm2979 = vweird.f32 %v2941
    %vm2980 = vweird.f32 %v2973
    %vm2981 = vmor %vm2979, %vm2980
    %v2982 = vsel %vm2981, %v2973, %v2978
    %v2983 = vrsqrt.pop %v2942
    %v2984 = vmul.f32 %v2983, %v2942
    %v2985 = vmul.f32 %v2984, %v2983
    %v2986 = vmul.f32 0.5, %v2985
    %v2987 = vsub.f32 1.5, %v2986
    %v2988 = vmul.f32 %v2983, %v2987
    %vm2989 = vweird.f32 %v2942
    %vm2990 = vweird.f32 %v2983
    %vm2991 = vmor %vm2989, %vm2990
    %v2992 = vsel %vm2991, %v2983, %v2988
    %v2993 = vmul.f32 %v2908, %v2952
    %v2994 = vmul.f32 %v2909, %v2962
    %v2995 = vmul.f32 %v2910, %v2972
    %v2996 = vmul.f32 %v2911, %v2982
    %v2997 = vmul.f32 %v2912, %v2992
    %v2998 = vperm.slane %v2884, 0
    %v2999 = vmul.f32 %v2993, %v2998
    %v3000 = vmul.f32 %v2994, %v2998
    %v3001 = vperm.slane %v2885, 0
    %v3002 = vadd.f32 %v2999, %v3001
    %v3003 = vadd.f32 %v3000, %v3001
    %v3004 = vperm.slane %v2886, 0
    %v3005 = vmul.f32 %v2995, %v3004
    %v3006 = vmul.f32 %v2996, %v3004
    %v3007 = vmul.f32 %v2997, %v3004
    %v3008 = vperm.slane %v2887, 0
    %v3009 = vadd.f32 %v3005, %v3008
    %v3010 = vadd.f32 %v3006, %v3008
    %v3011 = vadd.f32 %v3007, %v3008
    %v3012 = vld [vmem:[#allocation4 + $0x488] sm:$0xff]
    %v3013 = vld [vmem:[#allocation4 + $0x490] sm:$0xff]
    %v3014 = vld [vmem:[#allocation4 + $0x498] sm:$0xff]
    %v3015 = vld [vmem:[#allocation4 + $0x4a0] sm:$0xff]
    %v3016 = vld [vmem:[#allocation4 + $0x4a8] sm:$0x1]
    %v3017 = vperm.slane %v3016, 0
    %v3019 = vsel %vm42, %v3002, 0
    %v3022 = vsel %vm42, %v3003, 0
    %3024 = vmatpush.msra.mxu0 0.0
    %3025 = vmatpush.msra.mxu0 0.0
    %3026 = vmatpush.msra.mxu0 0.0
    %3027 = vmatpush.msra.mxu0 0.0
    %3028 = vmatpush.msra.mxu0 0.0
    %3029 = vmatpush.msra.mxu0 0.0
    %3030 = vmatpush.msra.mxu0 0.0
    %3031 = vmatpush.msra.mxu0 0.0
    %3032 = vmatpush.msra.mxu0 0.0
    %3033 = vmatpush.msra.mxu0 0.0
    %3034 = vmatpush.msra.mxu0 0.0
    %3035 = vmatpush.msra.mxu0 0.0
    %3036 = vmatpush.msra.mxu0 %v3015
    %3037 = vmatpush.msra.mxu0 %v3014
    %3038 = vmatpush.msra.mxu0 %v3013
    %3039 = vmatpush.msra.mxu0 %v3012
    %3040 = vmatmul.f32.gmra.mxu0 %v3019
    %v3041 = vpop.f32.mrf.mxu0
    %v3042 = vadd.f32 %v3017, %v3041
    %3043 = vmatmul.f32.gmra.mxu0 %v3022
    %v3044 = vpop.f32.mrf.mxu0
    %v3045 = vadd.f32 %v3017, %v3044
    %3046 = vdwg.mxu0
    %3047 = vst.msk [vmem:[#allocation3] sm:$0xff] %vm675, %v3042
    %3048 = vst.msk [vmem:[#allocation3 + $0x8] sm:$0xff] %vm675, %v3045
    %v3049 = vld [vmem:[#allocation4 + $0x578] sm:$0xff]
    %v3050 = vld [vmem:[#allocation4 + $0x580] sm:$0xff]
    %v3051 = vld [vmem:[#allocation4 + $0x588] sm:$0xff]
    %v3052 = vld [vmem:[#allocation4 + $0x590] sm:$0xff]
    %v3053 = vld [vmem:[#allocation4 + $0x598] sm:$0x1]
    %v3054 = vperm.slane %v3053, 0
    %v3056 = vsel %vm42, %v3009, 0
    %v3059 = vsel %vm42, %v3010, 0
    %v3062 = vsel %vm42, %v3011, 0
    %3064 = vmatpush.msra.mxu0 0.0
    %3065 = vmatpush.msra.mxu0 0.0
    %3066 = vmatpush.msra.mxu0 0.0
    %3067 = vmatpush.msra.mxu0 0.0
    %3068 = vmatpush.msra.mxu0 0.0
    %3069 = vmatpush.msra.mxu0 0.0
    %3070 = vmatpush.msra.mxu0 0.0
    %3071 = vmatpush.msra.mxu0 0.0
    %3072 = vmatpush.msra.mxu0 0.0
    %3073 = vmatpush.msra.mxu0 0.0
    %3074 = vmatpush.msra.mxu0 0.0
    %3075 = vmatpush.msra.mxu0 0.0
    %3076 = vmatpush.msra.mxu0 %v3052
    %3077 = vmatpush.msra.mxu0 %v3051
    %3078 = vmatpush.msra.mxu0 %v3050
    %3079 = vmatpush.msra.mxu0 %v3049
    %3080 = vmatmul.f32.gmra.mxu0 %v3056
    %v3081 = vpop.f32.mrf.mxu0
    %v3082 = vadd.f32 %v3054, %v3081
    %3083 = vmatmul.f32.gmra.mxu0 %v3059
    %v3084 = vpop.f32.mrf.mxu0
    %v3085 = vadd.f32 %v3054, %v3084
    %3086 = vmatmul.f32.gmra.mxu0 %v3062
    %v3087 = vpop.f32.mrf.mxu0
    %v3088 = vadd.f32 %v3054, %v3087
    %3089 = vdwg.mxu0
    %3090 = vst.msk [vmem:[#allocation3 + $0x10] sm:$0xff] %vm675, %v3082
    %3091 = vst.msk [vmem:[#allocation3 + $0x18] sm:$0xff] %vm675, %v3085
    %3092 = vst.msk [vmem:[#allocation3 + $0x20] sm:$0xff] %vm675, %v3088
    %v3093 = vld [vmem:[#allocation3] sm:$0xff]
    %v3094 = vld [vmem:[#allocation3 + $0x8] sm:$0xff]
    %v3095 = vld [vmem:[#allocation3 + $0x10] sm:$0xff]
    %v3096 = vld [vmem:[#allocation3 + $0x18] sm:$0xff]
    %v3097 = vld [vmem:[#allocation3 + $0x20] sm:$0xff]
    %v3098 = vmul.f32 %v3093, 0.5
    %v3099 = vmul.f32 %v3094, 0.5
    %v3100 = vmul.f32 %v3095, 0.5
    %v3101 = vmul.f32 %v3096, 0.5
    %v3102 = vmul.f32 %v3097, 0.5
    %v3103 = vmul.f32 %v3093, 0.044715
    %v3104 = vmul.f32 %v3094, 0.044715
    %v3105 = vmul.f32 %v3095, 0.044715
    %v3106 = vmul.f32 %v3096, 0.044715
    %v3107 = vmul.f32 %v3097, 0.044715
    %v3108 = vmul.f32 %v3103, %v3093
    %v3109 = vmul.f32 %v3104, %v3094
    %v3110 = vmul.f32 %v3105, %v3095
    %v3111 = vmul.f32 %v3106, %v3096
    %v3112 = vmul.f32 %v3107, %v3097
    %v3113 = vmul.f32 %v3108, %v3093
    %v3114 = vmul.f32 %v3109, %v3094
    %v3115 = vmul.f32 %v3110, %v3095
    %v3116 = vmul.f32 %v3111, %v3096
    %v3117 = vmul.f32 %v3112, %v3097
    %v3118 = vadd.f32 %v3093, %v3113
    %v3119 = vadd.f32 %v3094, %v3114
    %v3120 = vadd.f32 %v3095, %v3115
    %v3121 = vadd.f32 %v3096, %v3116
    %v3122 = vadd.f32 %v3097, %v3117
    %v3123 = vmul.f32 %v3118, 0.7978846
    %v3124 = vmul.f32 %v3119, 0.7978846
    %v3125 = vmul.f32 %v3120, 0.7978846
    %v3126 = vmul.f32 %v3121, 0.7978846
    %v3127 = vmul.f32 %v3122, 0.7978846
    %v3128 = vtanh.pop %v3123
    %v3129 = vtanh.pop %v3124
    %v3130 = vtanh.pop %v3125
    %v3131 = vtanh.pop %v3126
    %v3132 = vtanh.pop %v3127
    %v3133 = vadd.f32 %v3128, 1.0
    %v3134 = vadd.f32 %v3129, 1.0
    %v3135 = vadd.f32 %v3130, 1.0
    %v3136 = vadd.f32 %v3131, 1.0
    %v3137 = vadd.f32 %v3132, 1.0
    %v3138 = vmul.f32 %v3098, %v3133
    %v3139 = vmul.f32 %v3099, %v3134
    %v3140 = vmul.f32 %v3100, %v3135
    %v3141 = vmul.f32 %v3101, %v3136
    %v3142 = vmul.f32 %v3102, %v3137
    %v3143 = vld [vmem:[#allocation4 + $0x4b0] sm:$0x1]
    %v3144 = vld [vmem:[#allocation4 + $0x4b8] sm:$0x1]
    %v3145 = vld [vmem:[#allocation4 + $0x5a0] sm:$0x1]
    %v3146 = vld [vmem:[#allocation4 + $0x5a8] sm:$0x1]
    %v3147 = vsel %vm675, %v3138, 0.0
    %3148 = vadd.xlane.f32.xlu0 %v3147
    %v3149 = vpop.xlane.xlu0 %3148
    %v3150 = vsel %vm675, %v3139, 0.0
    %3151 = vadd.xlane.f32.xlu0 %v3150
    %v3152 = vpop.xlane.xlu0 %3151
    %v3153 = vsel %vm675, %v3140, 0.0
    %3154 = vadd.xlane.f32.xlu0 %v3153
    %v3155 = vpop.xlane.xlu0 %3154
    %v3156 = vsel %vm675, %v3141, 0.0
    %3157 = vadd.xlane.f32.xlu0 %v3156
    %v3158 = vpop.xlane.xlu0 %3157
    %v3159 = vsel %vm675, %v3142, 0.0
    %3160 = vadd.xlane.f32.xlu0 %v3159
    %v3161 = vpop.xlane.xlu0 %3160
    %v3162 = vmul.f32 %v3149, %v1579
    %v3163 = vmul.f32 %v3152, %v1579
    %v3164 = vmul.f32 %v3155, %v1579
    %v3165 = vmul.f32 %v3158, %v1579
    %v3166 = vmul.f32 %v3161, %v1579
    %v3167 = vsub.f32 %v3138, %v3162
    %v3168 = vsub.f32 %v3139, %v3163
    %v3169 = vsub.f32 %v3140, %v3164
    %v3170 = vsub.f32 %v3141, %v3165
    %v3171 = vsub.f32 %v3142, %v3166
    %v3172 = vmul.f32 %v3167, %v3167
    %v3173 = vmul.f32 %v3168, %v3168
    %v3174 = vmul.f32 %v3169, %v3169
    %v3175 = vmul.f32 %v3170, %v3170
    %v3176 = vmul.f32 %v3171, %v3171
    %v3177 = vsel %vm675, %v3172, 0.0
    %3178 = vadd.xlane.f32.xlu0 %v3177
    %v3179 = vpop.xlane.xlu0 %3178
    %v3180 = vsel %vm675, %v3173, 0.0
    %3181 = vadd.xlane.f32.xlu0 %v3180
    %v3182 = vpop.xlane.xlu0 %3181
    %v3183 = vsel %vm675, %v3174, 0.0
    %3184 = vadd.xlane.f32.xlu0 %v3183
    %v3185 = vpop.xlane.xlu0 %3184
    %v3186 = vsel %vm675, %v3175, 0.0
    %3187 = vadd.xlane.f32.xlu0 %v3186
    %v3188 = vpop.xlane.xlu0 %3187
    %v3189 = vsel %vm675, %v3176, 0.0
    %3190 = vadd.xlane.f32.xlu0 %v3189
    %v3191 = vpop.xlane.xlu0 %3190
    %v3192 = vmul.f32 %v3179, %v1579
    %v3193 = vmul.f32 %v3182, %v1579
    %v3194 = vmul.f32 %v3185, %v1579
    %v3195 = vmul.f32 %v3188, %v1579
    %v3196 = vmul.f32 %v3191, %v1579
    %v3197 = vadd.f32 %v3192, 1e-05
    %v3198 = vadd.f32 %v3193, 1e-05
    %v3199 = vadd.f32 %v3194, 1e-05
    %v3200 = vadd.f32 %v3195, 1e-05
    %v3201 = vadd.f32 %v3196, 1e-05
    %v3202 = vrsqrt.pop %v3197
    %v3203 = vmul.f32 %v3202, %v3197
    %v3204 = vmul.f32 %v3203, %v3202
    %v3205 = vmul.f32 0.5, %v3204
    %v3206 = vsub.f32 1.5, %v3205
    %v3207 = vmul.f32 %v3202, %v3206
    %vm3208 = vweird.f32 %v3197
    %vm3209 = vweird.f32 %v3202
    %vm3210 = vmor %vm3208, %vm3209
    %v3211 = vsel %vm3210, %v3202, %v3207
    %v3212 = vrsqrt.pop %v3198
    %v3213 = vmul.f32 %v3212, %v3198
    %v3214 = vmul.f32 %v3213, %v3212
    %v3215 = vmul.f32 0.5, %v3214
    %v3216 = vsub.f32 1.5, %v3215
    %v3217 = vmul.f32 %v3212, %v3216
    %vm3218 = vweird.f32 %v3198
    %vm3219 = vweird.f32 %v3212
    %vm3220 = vmor %vm3218, %vm3219
    %v3221 = vsel %vm3220, %v3212, %v3217
    %v3222 = vrsqrt.pop %v3199
    %v3223 = vmul.f32 %v3222, %v3199
    %v3224 = vmul.f32 %v3223, %v3222
    %v3225 = vmul.f32 0.5, %v3224
    %v3226 = vsub.f32 1.5, %v3225
    %v3227 = vmul.f32 %v3222, %v3226
    %vm3228 = vweird.f32 %v3199
    %vm3229 = vweird.f32 %v3222
    %vm3230 = vmor %vm3228, %vm3229
    %v3231 = vsel %vm3230, %v3222, %v3227
    %v3232 = vrsqrt.pop %v3200
    %v3233 = vmul.f32 %v3232, %v3200
    %v3234 = vmul.f32 %v3233, %v3232
    %v3235 = vmul.f32 0.5, %v3234
    %v3236 = vsub.f32 1.5, %v3235
    %v3237 = vmul.f32 %v3232, %v3236
    %vm3238 = vweird.f32 %v3200
    %vm3239 = vweird.f32 %v3232
    %vm3240 = vmor %vm3238, %vm3239
    %v3241 = vsel %vm3240, %v3232, %v3237
    %v3242 = vrsqrt.pop %v3201
    %v3243 = vmul.f32 %v3242, %v3201
    %v3244 = vmul.f32 %v3243, %v3242
    %v3245 = vmul.f32 0.5, %v3244
    %v3246 = vsub.f32 1.5, %v3245
    %v3247 = vmul.f32 %v3242, %v3246
    %vm3248 = vweird.f32 %v3201
    %vm3249 = vweird.f32 %v3242
    %vm3250 = vmor %vm3248, %vm3249
    %v3251 = vsel %vm3250, %v3242, %v3247
    %v3252 = vmul.f32 %v3167, %v3211
    %v3253 = vmul.f32 %v3168, %v3221
    %v3254 = vmul.f32 %v3169, %v3231
    %v3255 = vmul.f32 %v3170, %v3241
    %v3256 = vmul.f32 %v3171, %v3251
    %v3257 = vperm.slane %v3143, 0
    %v3258 = vmul.f32 %v3252, %v3257
    %v3259 = vmul.f32 %v3253, %v3257
    %v3260 = vperm.slane %v3144, 0
    %v3261 = vadd.f32 %v3258, %v3260
    %v3262 = vadd.f32 %v3259, %v3260
    %v3263 = vperm.slane %v3145, 0
    %v3264 = vmul.f32 %v3254, %v3263
    %v3265 = vmul.f32 %v3255, %v3263
    %v3266 = vmul.f32 %v3256, %v3263
    %v3267 = vperm.slane %v3146, 0
    %v3268 = vadd.f32 %v3264, %v3267
    %v3269 = vadd.f32 %v3265, %v3267
    %v3270 = vadd.f32 %v3266, %v3267
    %v3271 = vld [vmem:[#allocation4 + $0x4c0] sm:$0xff]
    %v3272 = vld [vmem:[#allocation4 + $0x4c8] sm:$0xff]
    %v3273 = vld [vmem:[#allocation4 + $0x4d0] sm:$0xff]
    %v3274 = vld [vmem:[#allocation4 + $0x4d8] sm:$0xff]
    %v3275 = vld [vmem:[#allocation4 + $0x4e0] sm:$0xff]
    %v3276 = vld [vmem:[#allocation4 + $0x4e8] sm:$0xff]
    %v3277 = vld [vmem:[#allocation4 + $0x4f0] sm:$0xff]
    %v3278 = vld [vmem:[#allocation4 + $0x4f8] sm:$0xff]
    %v3279 = vld [vmem:[#allocation4 + $0x500] sm:$0x1]
    %v3280 = vperm.slane %v3279, 0
    %v3282 = vsel %vm675, %v3261, 0
    %v3285 = vsel %vm675, %v3262, 0
    %3287 = vmatpush.msra.mxu0 0.0
    %3288 = vmatpush.msra.mxu0 0.0
    %3289 = vmatpush.msra.mxu0 0.0
    %3290 = vmatpush.msra.mxu0 0.0
    %3291 = vmatpush.msra.mxu0 0.0
    %3292 = vmatpush.msra.mxu0 0.0
    %3293 = vmatpush.msra.mxu0 0.0
    %3294 = vmatpush.msra.mxu0 0.0
    %3295 = vmatpush.msra.mxu0 %v3278
    %3296 = vmatpush.msra.mxu0 %v3277
    %3297 = vmatpush.msra.mxu0 %v3276
    %3298 = vmatpush.msra.mxu0 %v3275
    %3299 = vmatpush.msra.mxu0 %v3274
    %3300 = vmatpush.msra.mxu0 %v3273
    %3301 = vmatpush.msra.mxu0 %v3272
    %3302 = vmatpush.msra.mxu0 %v3271
    %3303 = vmatmul.f32.gmra.mxu0 %v3282
    %v3304 = vpop.f32.mrf.mxu0
    %v3305 = vadd.f32 %v3280, %v3304
    %3306 = vmatmul.f32.gmra.mxu0 %v3285
    %v3307 = vpop.f32.mrf.mxu0
    %v3308 = vadd.f32 %v3280, %v3307
    %3309 = vdwg.mxu0
    %v3310 = vld [vmem:[#allocation4 + $0x5b0] sm:$0xff]
    %v3311 = vld [vmem:[#allocation4 + $0x5b8] sm:$0xff]
    %v3312 = vld [vmem:[#allocation4 + $0x5c0] sm:$0xff]
    %v3313 = vld [vmem:[#allocation4 + $0x5c8] sm:$0xff]
    %v3314 = vld [vmem:[#allocation4 + $0x5d0] sm:$0xff]
    %v3315 = vld [vmem:[#allocation4 + $0x5d8] sm:$0xff]
    %v3316 = vld [vmem:[#allocation4 + $0x5e0] sm:$0xff]
    %v3317 = vld [vmem:[#allocation4 + $0x5e8] sm:$0xff]
    %v3318 = vld [vmem:[#allocation4 + $0x5f0] sm:$0x1]
    %v3319 = vperm.slane %v3318, 0
    %v3321 = vsel %vm675, %v3268, 0
    %v3324 = vsel %vm675, %v3269, 0
    %v3327 = vsel %vm675, %v3270, 0
    %3329 = vmatpush.msra.mxu0 0.0
    %3330 = vmatpush.msra.mxu0 0.0
    %3331 = vmatpush.msra.mxu0 0.0
    %3332 = vmatpush.msra.mxu0 0.0
    %3333 = vmatpush.msra.mxu0 0.0
    %3334 = vmatpush.msra.mxu0 0.0
    %3335 = vmatpush.msra.mxu0 0.0
    %3336 = vmatpush.msra.mxu0 0.0
    %3337 = vmatpush.msra.mxu0 %v3317
    %3338 = vmatpush.msra.mxu0 %v3316
    %3339 = vmatpush.msra.mxu0 %v3315
    %3340 = vmatpush.msra.mxu0 %v3314
    %3341 = vmatpush.msra.mxu0 %v3313
    %3342 = vmatpush.msra.mxu0 %v3312
    %3343 = vmatpush.msra.mxu0 %v3311
    %3344 = vmatpush.msra.mxu0 %v3310
    %3345 = vmatmul.f32.gmra.mxu0 %v3321
    %v3346 = vpop.f32.mrf.mxu0
    %v3347 = vadd.f32 %v3319, %v3346
    %3348 = vmatmul.f32.gmra.mxu0 %v3324
    %v3349 = vpop.f32.mrf.mxu0
    %v3350 = vadd.f32 %v3319, %v3349
    %3351 = vmatmul.f32.gmra.mxu0 %v3327
    %v3352 = vpop.f32.mrf.mxu0
    %v3353 = vadd.f32 %v3319, %v3352
    %3354 = vdwg.mxu0
    %v3355 = vld [vmem:[#allocation2] sm:$0xff]
    %v3356 = vld [vmem:[#allocation2 + $0x8] sm:$0xff]
    %v3357 = vadd.f32 %v3355, %v3305
    %v3358 = vadd.f32 %v3356, %v3308
    %3359 = vst.msk [vmem:[#allocation2] sm:$0xff] %vm42, %v3357
    %3360 = vst.msk [vmem:[#allocation2 + $0x8] sm:$0xff] %vm42, %v3358
    %v3361 = vld [vmem:[#allocation2 + $0x10] sm:$0xff]
    %v3362 = vld [vmem:[#allocation2 + $0x18] sm:$0xff]
    %v3363 = vld [vmem:[#allocation2 + $0x20] sm:$0xff]
    %v3364 = vadd.f32 %v3361, %v3347
    %v3365 = vadd.f32 %v3362, %v3350
    %v3366 = vadd.f32 %v3363, %v3353
    %3367 = vst.msk [vmem:[#allocation2 + $0x10] sm:$0xff] %vm42, %v3364
    %3368 = vst.msk [vmem:[#allocation2 + $0x18] sm:$0xff] %vm42, %v3365
    %3369 = vst.msk [vmem:[#allocation2 + $0x20] sm:$0xff] %vm42, %v3366
    %v3370 = vld [vmem:[#allocation2] sm:$0xff]
    %v3371 = vld [vmem:[#allocation2 + $0x8] sm:$0xff]
    %v3372 = vld [vmem:[#allocation2 + $0x10] sm:$0xff]
    %v3373 = vld [vmem:[#allocation2 + $0x18] sm:$0xff]
    %v3374 = vld [vmem:[#allocation2 + $0x20] sm:$0xff]
    %v3375 = vsel %vm42, %v3370, 0.0
    %3376 = vadd.xlane.f32.xlu0 %v3375
    %v3377 = vpop.xlane.xlu0 %3376
    %v3378 = vsel %vm42, %v3371, 0.0
    %3379 = vadd.xlane.f32.xlu0 %v3378
    %v3380 = vpop.xlane.xlu0 %3379
    %v3381 = vsel %vm42, %v3372, 0.0
    %3382 = vadd.xlane.f32.xlu0 %v3381
    %v3383 = vpop.xlane.xlu0 %3382
    %v3384 = vsel %vm42, %v3373, 0.0
    %3385 = vadd.xlane.f32.xlu0 %v3384
    %v3386 = vpop.xlane.xlu0 %3385
    %v3387 = vsel %vm42, %v3374, 0.0
    %3388 = vadd.xlane.f32.xlu0 %v3387
    %v3389 = vpop.xlane.xlu0 %3388
    %v3390 = vmul.f32 %v3377, %v143
    %v3391 = vmul.f32 %v3380, %v143
    %v3392 = vmul.f32 %v3383, %v143
    %v3393 = vmul.f32 %v3386, %v143
    %v3394 = vmul.f32 %v3389, %v143
    %v3395 = vsub.f32 %v3370, %v3390
    %v3396 = vsub.f32 %v3371, %v3391
    %v3397 = vsub.f32 %v3372, %v3392
    %v3398 = vsub.f32 %v3373, %v3393
    %v3399 = vsub.f32 %v3374, %v3394
    %v3400 = vmul.f32 %v3395, %v3395
    %v3401 = vmul.f32 %v3396, %v3396
    %v3402 = vmul.f32 %v3397, %v3397
    %v3403 = vmul.f32 %v3398, %v3398
    %v3404 = vmul.f32 %v3399, %v3399
    %v3405 = vsel %vm42, %v3400, 0.0
    %3406 = vadd.xlane.f32.xlu0 %v3405
    %v3407 = vpop.xlane.xlu0 %3406
    %v3408 = vsel %vm42, %v3401, 0.0
    %3409 = vadd.xlane.f32.xlu0 %v3408
    %v3410 = vpop.xlane.xlu0 %3409
    %v3411 = vsel %vm42, %v3402, 0.0
    %3412 = vadd.xlane.f32.xlu0 %v3411
    %v3413 = vpop.xlane.xlu0 %3412
    %v3414 = vsel %vm42, %v3403, 0.0
    %3415 = vadd.xlane.f32.xlu0 %v3414
    %v3416 = vpop.xlane.xlu0 %3415
    %v3417 = vsel %vm42, %v3404, 0.0
    %3418 = vadd.xlane.f32.xlu0 %v3417
    %v3419 = vpop.xlane.xlu0 %3418
    %v3420 = vmul.f32 %v3407, %v143
    %v3421 = vmul.f32 %v3410, %v143
    %v3422 = vmul.f32 %v3413, %v143
    %v3423 = vmul.f32 %v3416, %v143
    %v3424 = vmul.f32 %v3419, %v143
    %v3425 = vadd.f32 %v3420, 1e-05
    %v3426 = vadd.f32 %v3421, 1e-05
    %v3427 = vadd.f32 %v3422, 1e-05
    %v3428 = vadd.f32 %v3423, 1e-05
    %v3429 = vadd.f32 %v3424, 1e-05
    %v3430 = vrsqrt.pop %v3425
    %v3431 = vmul.f32 %v3430, %v3425
    %v3432 = vmul.f32 %v3431, %v3430
    %v3433 = vmul.f32 0.5, %v3432
    %v3434 = vsub.f32 1.5, %v3433
    %v3435 = vmul.f32 %v3430, %v3434
    %vm3436 = vweird.f32 %v3425
    %vm3437 = vweird.f32 %v3430
    %vm3438 = vmor %vm3436, %vm3437
    %v3439 = vsel %vm3438, %v3430, %v3435
    %v3440 = vrsqrt.pop %v3426
    %v3441 = vmul.f32 %v3440, %v3426
    %v3442 = vmul.f32 %v3441, %v3440
    %v3443 = vmul.f32 0.5, %v3442
    %v3444 = vsub.f32 1.5, %v3443
    %v3445 = vmul.f32 %v3440, %v3444
    %vm3446 = vweird.f32 %v3426
    %vm3447 = vweird.f32 %v3440
    %vm3448 = vmor %vm3446, %vm3447
    %v3449 = vsel %vm3448, %v3440, %v3445
    %v3450 = vrsqrt.pop %v3427
    %v3451 = vmul.f32 %v3450, %v3427
    %v3452 = vmul.f32 %v3451, %v3450
    %v3453 = vmul.f32 0.5, %v3452
    %v3454 = vsub.f32 1.5, %v3453
    %v3455 = vmul.f32 %v3450, %v3454
    %vm3456 = vweird.f32 %v3427
    %vm3457 = vweird.f32 %v3450
    %vm3458 = vmor %vm3456, %vm3457
    %v3459 = vsel %vm3458, %v3450, %v3455
    %v3460 = vrsqrt.pop %v3428
    %v3461 = vmul.f32 %v3460, %v3428
    %v3462 = vmul.f32 %v3461, %v3460
    %v3463 = vmul.f32 0.5, %v3462
    %v3464 = vsub.f32 1.5, %v3463
    %v3465 = vmul.f32 %v3460, %v3464
    %vm3466 = vweird.f32 %v3428
    %vm3467 = vweird.f32 %v3460
    %vm3468 = vmor %vm3466, %vm3467
    %v3469 = vsel %vm3468, %v3460, %v3465
    %v3470 = vrsqrt.pop %v3429
    %v3471 = vmul.f32 %v3470, %v3429
    %v3472 = vmul.f32 %v3471, %v3470
    %v3473 = vmul.f32 0.5, %v3472
    %v3474 = vsub.f32 1.5, %v3473
    %v3475 = vmul.f32 %v3470, %v3474
    %vm3476 = vweird.f32 %v3429
    %vm3477 = vweird.f32 %v3470
    %vm3478 = vmor %vm3476, %vm3477
    %v3479 = vsel %vm3478, %v3470, %v3475
    %v3480 = vmul.f32 %v3395, %v3439
    %v3481 = vmul.f32 %v3396, %v3449
    %v3482 = vmul.f32 %v3397, %v3459
    %v3483 = vmul.f32 %v3398, %v3469
    %v3484 = vmul.f32 %v3399, %v3479
    %v3485 = vld [vmem:[#allocation4 + $0x230] sm:$0xf]
    %vm3486 = vcmask 326656
    %v3488 = vsel %vm3486, %v3485, 0
    %3490 = vmatpush.msra.mxu0 0.0
    %3491 = vmatpush.msra.mxu0 0.0
    %3492 = vmatpush.msra.mxu0 0.0
    %3493 = vmatpush.msra.mxu0 0.0
    %3494 = vmatpush.msra.mxu0 0.0
    %3495 = vmatpush.msra.mxu0 0.0
    %3496 = vmatpush.msra.mxu0 0.0
    %3497 = vmatpush.msra.mxu0 0.0
    %3498 = vmatpush.msra.mxu0 0.0
    %3499 = vmatpush.msra.mxu0 0.0
    %3500 = vmatpush.msra.mxu0 0.0
    %3501 = vmatpush.msra.mxu0 %v3484
    %3502 = vmatpush.msra.mxu0 %v3483
    %3503 = vmatpush.msra.mxu0 %v3482
    %3504 = vmatpush.msra.mxu0 %v3481
    %3505 = vmatpush.msra.mxu0 %v3480
    %3506 = vmatmul.f32.gmra.mxu0 %v3488
    %v3507 = vpop.f32.mrf.mxu0
    %v3508 = vadd.f32 0.0, %v3507
    %3509 = vdwg.mxu0
    %v3510 = vld [vmem:[#allocation4 + $0x5f8] sm:$0x1]
    %v3511 = vperm.slane %v3510, 0
    %v3512 = vmul.f32 %v3508, %v3511
    %v3513 = vld [vmem:[#allocation4 + $0x600] sm:$0x1]
    %v3514 = vperm.slane %v3513, 0
    %v3515 = vadd.f32 %v3512, %v3514
    %v3516 = vld [vmem:[#allocation4 + $0x630] sm:$0x1]
    %v3517 = vperm.slane %v3516, 0
    %v3518 = vmul.f32 %v3508, %v3517
    %v3519 = vld [vmem:[#allocation4 + $0x638] sm:$0x1]
    %v3520 = vperm.slane %v3519, 0
    %v3521 = vadd.f32 %v3518, %v3520
    %v3522 = vld [vmem:[#allocation4 + $0x608] sm:$0xff]
    %v3523 = vld [vmem:[#allocation4 + $0x610] sm:$0xff]
    %v3524 = vld [vmem:[#allocation4 + $0x618] sm:$0xff]
    %v3525 = vld [vmem:[#allocation4 + $0x620] sm:$0xff]
    %v3526 = vld [vmem:[#allocation4 + $0x628] sm:$0x1]
    %v3527 = vperm.slane %v3526, 0
    %v3529 = vsel %vm42, %v3515, 0
    %3531 = vmatpush.msra.mxu0 0.0
    %3532 = vmatpush.msra.mxu0 0.0
    %3533 = vmatpush.msra.mxu0 0.0
    %3534 = vmatpush.msra.mxu0 0.0
    %3535 = vmatpush.msra.mxu0 0.0
    %3536 = vmatpush.msra.mxu0 0.0
    %3537 = vmatpush.msra.mxu0 0.0
    %3538 = vmatpush.msra.mxu0 0.0
    %3539 = vmatpush.msra.mxu0 0.0
    %3540 = vmatpush.msra.mxu0 0.0
    %3541 = vmatpush.msra.mxu0 0.0
    %3542 = vmatpush.msra.mxu0 0.0
    %3543 = vmatpush.msra.mxu0 %v3525
    %3544 = vmatpush.msra.mxu0 %v3524
    %3545 = vmatpush.msra.mxu0 %v3523
    %3546 = vmatpush.msra.mxu0 %v3522
    %3547 = vmatmul.f32.gmra.mxu0 %v3529
    %v3548 = vpop.f32.mrf.mxu0
    %v3549 = vadd.f32 %v3527, %v3548
    %3550 = vdwg.mxu0
    %v3551 = vld [vmem:[#allocation4 + $0x640] sm:$0xff]
    %v3552 = vld [vmem:[#allocation4 + $0x648] sm:$0xff]
    %v3553 = vld [vmem:[#allocation4 + $0x650] sm:$0xff]
    %v3554 = vld [vmem:[#allocation4 + $0x658] sm:$0xff]
    %v3555 = vld [vmem:[#allocation4 + $0x660] sm:$0x1]
    %v3556 = vperm.slane %v3555, 0
    %v3558 = vrot.slane %v3521, 2
    %v3559 = vsel %vm42, %v3558, 0
    %3561 = vmatpush.msra.mxu0 0.0
    %3562 = vmatpush.msra.mxu0 0.0
    %3563 = vmatpush.msra.mxu0 0.0
    %3564 = vmatpush.msra.mxu0 0.0
    %3565 = vmatpush.msra.mxu0 0.0
    %3566 = vmatpush.msra.mxu0 0.0
    %3567 = vmatpush.msra.mxu0 0.0
    %3568 = vmatpush.msra.mxu0 0.0
    %3569 = vmatpush.msra.mxu0 0.0
    %3570 = vmatpush.msra.mxu0 0.0
    %3571 = vmatpush.msra.mxu0 0.0
    %3572 = vmatpush.msra.mxu0 0.0
    %3573 = vmatpush.msra.mxu0 %v3554
    %3574 = vmatpush.msra.mxu0 %v3553
    %3575 = vmatpush.msra.mxu0 %v3552
    %3576 = vmatpush.msra.mxu0 %v3551
    %3577 = vmatmul.f32.gmra.mxu0 %v3559
    %v3578 = vpop.f32.mrf.mxu0
    %v3579 = vadd.f32 %v3556, %v3578
    %3580 = vdwg.mxu0
    %v3581 = vmul.f32 %v3549, %v3549
    %vm3582 = vcmask 123904
    %v3583 = vsel %vm3582, %v3581, 0.0
    %3584 = vadd.xlane.f32.xlu0 %v3583
    %v3585 = vpop.xlane.xlu0 %3584
    %v3586 = vmax.f32 %v3585, 1e-24
    %v3587 = vrsqrt.pop %v3586
    %v3588 = vmul.f32 %v3587, %v3586
    %v3589 = vmul.f32 %v3588, %v3587
    %v3590 = vmul.f32 0.5, %v3589
    %v3591 = vsub.f32 1.5, %v3590
    %v3592 = vmul.f32 %v3587, %v3591
    %vm3593 = vweird.f32 %v3586
    %vm3594 = vweird.f32 %v3587
    %vm3595 = vmor %vm3593, %vm3594
    %v3596 = vsel %vm3595, %v3587, %v3592
    %v3597 = vmul.f32 %v3549, %v3596
    %v3598 = vmul.f32 %v3579, %v3579
    %v3599 = vsel %vm3582, %v3598, 0.0
    %3600 = vadd.xlane.f32.xlu0 %v3599
    %v3601 = vpop.xlane.xlu0 %3600
    %v3602 = vmax.f32 %v3601, 1e-24
    %v3603 = vrsqrt.pop %v3602
    %v3604 = vmul.f32 %v3603, %v3602
    %v3605 = vmul.f32 %v3604, %v3603
    %v3606 = vmul.f32 0.5, %v3605
    %v3607 = vsub.f32 1.5, %v3606
    %v3608 = vmul.f32 %v3603, %v3607
    %vm3609 = vweird.f32 %v3602
    %vm3610 = vweird.f32 %v3603
    %vm3611 = vmor %vm3609, %vm3610
    %v3612 = vsel %vm3611, %v3603, %v3608
    %v3613 = vmul.f32 %v3579, %v3612
    %3615 = vrot.lane.b32.xlu0 %v3613, 16
    %v3616 = vpop.permute.xlu0 %3615
    %v3618 = vsel %vm334, %v3597, %v3616
    %vm3619 = vcmask 254976
    %3620 = vst.msk [vmem:[%s2] sm:$0x3] %vm3619, %v3618
    // Predicated region
    $region14: #{fwd.1} parent=1 // pred_check
      _
    $region15: #{fwd.1} parent=1 // pred_check_branch
      %3622 = sbr.rel (0) target = $region17
    $region16: #{fwd.1} parent=1 // pred_region
      _
    $region17: #{fwd.1} parent=1 // pred_fallthru
      _
    // Predicated region
    $region18: #{fwd.1} parent=1 // pred_check
      _
    $region19: #{fwd.1} parent=1 // pred_check_branch
      %3624 = sbr.rel (0) target = $region21
    $region20: #{fwd.1} parent=1 // pred_region
      _
    $region21: #{fwd.1} parent=1 // pred_fallthru
      _
    %3625 = vsyncpa [#allocation5], 1

</llo_original>
